<compile_context>
chip_gen: v7x
topology: tpu7x:2x2x1
jax: 0.10.0
libtpu: 0.0.40
codegen_flags: <defaults>
</compile_context>

<pallas_src>
import jax
import jax.numpy as jnp
from jax import lax
from jax.experimental import pallas as pl
from jax.experimental.pallas import tpu as pltpu


def _round_up(a, m):
    return ((a + m - 1) // m) * m


def _pick_block(B, C, T, itemsize, target_bytes=8 * 1024 * 1024):
    """Pick (Bb, Cb) so one *padded* (Bb, Cb, T) x block is <= target_bytes."""
    sub = {4: 8, 2: 16, 1: 32}.get(itemsize, 8)
    lane_t = _round_up(T, 128)

    def x_block_bytes(bb, cb):
        return bb * _round_up(cb, sub) * lane_t * itemsize

    # Channel chunk must be the full C or a multiple of the sublane packing so
    # the trailing (Cb, T) block dims satisfy the tiling constraint.
    cands = sorted(d for d in range(1, C + 1)
                   if C % d == 0 and (d == C or d % sub == 0))
    Cb = cands[0]
    for d in cands:
        if x_block_bytes(1, d) <= target_bytes:
            Cb = d

    Bb = 1
    if Cb == C:
        # Whole channel dim fits -> block batches too, but keep >= 2 iterations
        # on the parallel (batch) grid axis so both v7x TensorCores get work.
        max_bb = B // 2 if B >= 2 else 1
        for d in range(1, B + 1):
            if B % d == 0 and d <= max_bb and x_block_bytes(d, C) <= target_bytes:
                Bb = d
    return Bb, Cb, sub


def _spatial_tiles(T, Bb, max_carry_elems=2048):
    """Static (offset, size) tiles of the flattened spatial axis so the per-map
    fori_loop carry (Bb * size f32) stays within a few vregs (no spills)."""
    per_map = max(256, max_carry_elems // max(1, Bb))
    if T <= per_map:
        return [(0, T)]
    st = max(128, (per_map // 128) * 128)
    tiles, off = [], 0
    while off < T:
        sz = min(st, T - off)
        tiles.append((off, sz))
        off += sz
    return tiles


def _make_kernel(C_total, K, pad, Bb, Cb, H, W, tiles, unroll):
    inv_c = 1.0 / float(C_total)

    def kernel(w_ref, x_ref, o_ref, sum_acc, max_acc, pad_avg, pad_max):
        # w_ref: (2*K*K,) f32 SMEM            x_ref: (Bb, Cb, T)
        # o_ref: (Bb, 1, T)                   sum/max_acc: (Bb, T) f32 VMEM
        # pad_avg/pad_max: (Bb, H+2p, W+2p) f32 VMEM (conv epilogue only)
        c_idx = pl.program_id(1)

        # ---- init running channel sum / max on the first channel chunk ----
        @pl.when(c_idx == 0)
        def _init():
            sum_acc[...] = jnp.zeros(sum_acc.shape, sum_acc.dtype)
            max_acc[...] = jnp.full(max_acc.shape, -jnp.inf, max_acc.dtype)

        # ---- streaming channel reduction over this chunk -------------------
        # Outer: static loop over lane-dense spatial sub-tiles (bounded carry).
        # Inner: fori_loop over the Cb channels (pure VPU work: add + max).
        for off, size in tiles:
            sl = pl.ds(off, size)

            def body(ci, carry, sl=sl):
                s, m = carry
                xc = x_ref[:, ci, sl].astype(jnp.float32)      # (Bb, size)
                return s + xc, jnp.maximum(m, xc)

            s, m = lax.fori_loop(0, Cb, body,
                                 (sum_acc[:, sl], max_acc[:, sl]),
                                 unroll=unroll)
            sum_acc[:, sl] = s
            max_acc[:, sl] = m

        # ---- last chunk: KxK conv over [avg, max] + sigmoid, then store ----
        @pl.when(c_idx == pl.num_programs(1) - 1)
        def _finalize():
            pad_avg[...] = jnp.zeros(pad_avg.shape, pad_avg.dtype)
            pad_max[...] = jnp.zeros(pad_max.shape, pad_max.dtype)
            # Write interiors once, row by row (no in-register concatenates /
            # vector reshapes; only static slices).
            for h in range(H):
                row = pl.ds(h * W, W)
                pad_avg[:, pad + h, pad:pad + W] = sum_acc[:, row] * inv_c
                pad_max[:, pad + h, pad:pad + W] = max_acc[:, row]

            acc = jnp.zeros((Bb, H, W), jnp.float32)
            for c, pref in enumerate((pad_avg, pad_max)):   # conv chans: [avg, max]
                for dy in range(K):
                    for dx in range(K):
                        wv = w_ref[c * K * K + dy * K + dx]     # scalar from SMEM
                        acc = acc + wv * pref[:, dy:dy + H, dx:dx + W]

            res = jax.nn.sigmoid(acc)                       # (Bb, H, W) f32
            for h in range(H):                              # lane-dense flat output
                o_ref[:, 0, pl.ds(h * W, W)] = res[:, h, :].astype(o_ref.dtype)

    return kernel


def spatial_attention(x, w, *, target_block_bytes=8 * 1024 * 1024):
    """x: (B, C, H, W). w: (1, 2, K, K) -- PyTorch Conv2d(2, 1, K, bias=False) weight."""
    B, C, H, W = x.shape
    O, I, K, K2 = w.shape
    assert O == 1 and I == 2 and K == K2 and K % 2 == 1, "Conv2d(2, 1, odd K) expected"
    pad = (K - 1) // 2
    T = H * W
    Hp, Wp = H + 2 * pad, W + 2 * pad

    itemsize = jnp.dtype(x.dtype).itemsize
    Bb, Cb, sub = _pick_block(B, C, T, itemsize, target_block_bytes)
    grid = (B // Bb, C // Cb)
    tiles = _spatial_tiles(T, Bb)
    unroll = int(min(Cb, 8))

    # Real (padded, double-buffered) VMEM footprint -> explicit scoped limit.
    lane_t = _round_up(T, 128)
    est = 2 * Bb * _round_up(Cb, sub) * lane_t * itemsize          # x (2 buffers)
    est += 2 * Bb * sub * lane_t * itemsize                        # out (2 buffers)
    est += 2 * _round_up(Bb, 8) * lane_t * 4                       # f32 sum/max acc
    est += 2 * Bb * _round_up(Hp, 8) * _round_up(Wp, 128) * 4      # conv pad scratch
    vmem_limit = int(min(64 * 1024 * 1024, max(32 * 1024 * 1024, est * 3 // 2)))

    w_flat = w.astype(jnp.float32).reshape(-1)   # (2*K*K,) scalars, kept in SMEM
    x_flat = x.reshape(B, C, T)                  # free row-major reshape -> lane-dense

    kernel = _make_kernel(C, K, pad, Bb, Cb, H, W, tiles, unroll)

    out_flat = pl.pallas_call(
        kernel,
        out_shape=jax.ShapeDtypeStruct((B, 1, T), x.dtype),
        grid_spec=pltpu.PrefetchScalarGridSpec(
            num_scalar_prefetch=0,
            grid=grid,
            in_specs=[
                pl.BlockSpec(memory_space=pltpu.MemorySpace.SMEM),      # conv weights
                pl.BlockSpec((Bb, Cb, T), lambda b, c: (b, c, 0)),      # x tile
            ],
            out_specs=pl.BlockSpec((Bb, 1, T), lambda b, c: (b, 0, 0)),
            scratch_shapes=[
                pltpu.VMEM((Bb, T), jnp.float32),        # running channel sum
                pltpu.VMEM((Bb, T), jnp.float32),        # running channel max
                pltpu.VMEM((Bb, Hp, Wp), jnp.float32),   # zero-padded avg plane
                pltpu.VMEM((Bb, Hp, Wp), jnp.float32),   # zero-padded max plane
            ],
        ),
        compiler_params=pltpu.CompilerParams(
            dimension_semantics=("parallel", "arbitrary"),
            vmem_limit_bytes=vmem_limit),
    )(w_flat, x_flat)
    return out_flat.reshape(B, 1, H, W)


def spatial_attention_ref(x, w):
    pad = (w.shape[-1] - 1) // 2
    avg = jnp.mean(x, axis=1, keepdims=True)
    mx = jnp.max(x, axis=1, keepdims=True)
    s = jnp.concatenate([avg, mx], axis=1)                      # (B, 2, H, W)
    out = lax.conv_general_dilated(
        s, w, window_strides=(1, 1), padding=((pad, pad), (pad, pad)),
        dimension_numbers=("NCHW", "OIHW", "NCHW"))
    return jax.nn.sigmoid(out)


if __name__ == "__main__":
    key = jax.random.PRNGKey(0)
    B, C, H, W = 2, 4, 16, 16
    K = 7  # kernel_size=7 (default), padding=3, bias=False

    kx, kw = jax.random.split(key)
    x = jax.random.normal(kx, (B, C, H, W), dtype=jnp.float32)
    # PyTorch Conv2d weight layout: (out_channels=1, in_channels=2, K, K)
    w = jax.random.normal(kw, (1, 2, K, K), dtype=jnp.float32) * 0.1

    y = spatial_attention(x, w)
    y = jax.block_until_ready(y)

    y_ref = spatial_attention_ref(x, w)
    assert y.shape == (B, 1, H, W)
    assert jnp.allclose(y, y_ref, atol=1e-5, rtol=1e-5), "mismatch vs reference"

    print("KERNEL_OK")
</pallas_src>

<mosaic_0001>
module attributes {stable_mosaic.version = 11 : i64} {
  func.func @kernel(%arg0: i32, %arg1: i32, %arg2: memref<98xf32, #tpu.memory_space<smem>>, %arg3: memref<1x4x256xf32, #tpu.memory_space<vmem>>, %arg4: memref<1x1x256xf32, #tpu.memory_space<vmem>>, %arg5: memref<1x256xf32, #tpu.memory_space<vmem>>, %arg6: memref<1x256xf32, #tpu.memory_space<vmem>>, %arg7: memref<1x22x22xf32, #tpu.memory_space<vmem>>, %arg8: memref<1x22x22xf32, #tpu.memory_space<vmem>>) attributes {dimension_semantics = [#tpu.dimension_semantics<parallel>, #tpu.dimension_semantics<arbitrary>], iteration_bounds = array<i64: 2, 1>, scalar_prefetch = 0 : i64, scratch_operands = 4 : i64, tpu.core_type = #tpu.core_type<tc>, window_params = [{transform_indices = @transform_0, window_bounds = array<i64: 98>}, {transform_indices = @transform_1, window_bounds = array<i64: 1, 4, 256>}, {transform_indices = @transform_2, window_bounds = array<i64: 1, 1, 256>}]} {
    %c0_i32 = arith.constant 0 : i32
    %0 = arith.cmpi eq, %arg1, %c0_i32 : i32
    %1 = arith.extui %0 : i1 to i32
    %c0_i32_0 = arith.constant 0 : i32
    %2 = arith.cmpi ne, %1, %c0_i32_0 : i32
    scf.if %2 {
      %cst = arith.constant 0.000000e+00 : f32
      %30 = vector.broadcast %cst : f32 to vector<1x256xf32>
      %c0_19 = arith.constant 0 : index
      %c0_20 = arith.constant 0 : index
      %31 = vector.load %arg5[%c0_19, %c0_20] : memref<1x256xf32, #tpu.memory_space<vmem>>, vector<1x256xf32>
      tpu.vector_store %arg5[%c0_19, %c0_20], %30 {strides = array<i32>} : memref<1x256xf32, #tpu.memory_space<vmem>>, vector<1x256xf32>,
      %cst_21 = arith.constant 0xFF800000 : f32
      %32 = vector.broadcast %cst_21 : f32 to vector<1x256xf32>
      %c0_22 = arith.constant 0 : index
      %c0_23 = arith.constant 0 : index
      %33 = vector.load %arg6[%c0_22, %c0_23] : memref<1x256xf32, #tpu.memory_space<vmem>>, vector<1x256xf32>
      tpu.vector_store %arg6[%c0_22, %c0_23], %32 {strides = array<i32>} : memref<1x256xf32, #tpu.memory_space<vmem>>, vector<1x256xf32>,
    } else {
    }
    %c0 = arith.constant 0 : index
    %c0_1 = arith.constant 0 : index
    %3 = vector.load %arg5[%c0, %c0_1] : memref<1x256xf32, #tpu.memory_space<vmem>>, vector<1x256xf32>
    %c0_2 = arith.constant 0 : index
    %c0_3 = arith.constant 0 : index
    %4 = vector.load %arg6[%c0_2, %c0_3] : memref<1x256xf32, #tpu.memory_space<vmem>>, vector<1x256xf32>
    %c0_i32_4 = arith.constant 0 : i32
    %c0_5 = arith.constant 0 : index
    %5 = arith.index_cast %c0_i32_4 : i32 to index
    %c0_6 = arith.constant 0 : index
    %6 = vector.load %arg3[%c0_5, %5, %c0_6] : memref<1x4x256xf32, #tpu.memory_space<vmem>>, vector<1x1x256xf32>
    %7 = vector.shape_cast %6 : vector<1x1x256xf32> to vector<1x256xf32>
    %8 = arith.addf %3, %7 : vector<1x256xf32>
    %9 = arith.maximumf %4, %7 : vector<1x256xf32>
    %c1_i32 = arith.constant 1 : i32
    %c0_7 = arith.constant 0 : index
    %10 = arith.index_cast %c1_i32 : i32 to index
    %c0_8 = arith.constant 0 : index
    %11 = vector.load %arg3[%c0_7, %10, %c0_8] : memref<1x4x256xf32, #tpu.memory_space<vmem>>, vector<1x1x256xf32>
    %12 = vector.shape_cast %11 : vector<1x1x256xf32> to vector<1x256xf32>
    %13 = arith.addf %8, %12 : vector<1x256xf32>
    %14 = arith.maximumf %9, %12 : vector<1x256xf32>
    %c2_i32 = arith.constant 2 : i32
    %c0_9 = arith.constant 0 : index
    %15 = arith.index_cast %c2_i32 : i32 to index
    %c0_10 = arith.constant 0 : index
    %16 = vector.load %arg3[%c0_9, %15, %c0_10] : memref<1x4x256xf32, #tpu.memory_space<vmem>>, vector<1x1x256xf32>
    %17 = vector.shape_cast %16 : vector<1x1x256xf32> to vector<1x256xf32>
    %18 = arith.addf %13, %17 : vector<1x256xf32>
    %19 = arith.maximumf %14, %17 : vector<1x256xf32>
    %c3_i32 = arith.constant 3 : i32
    %c0_11 = arith.constant 0 : index
    %20 = arith.index_cast %c3_i32 : i32 to index
    %c0_12 = arith.constant 0 : index
    %21 = vector.load %arg3[%c0_11, %20, %c0_12] : memref<1x4x256xf32, #tpu.memory_space<vmem>>, vector<1x1x256xf32>
    %22 = vector.shape_cast %21 : vector<1x1x256xf32> to vector<1x256xf32>
    %23 = arith.addf %18, %22 : vector<1x256xf32>
    %24 = arith.maximumf %19, %22 : vector<1x256xf32>
    %c4_i32 = arith.constant 4 : i32
    %c0_13 = arith.constant 0 : index
    %c0_14 = arith.constant 0 : index
    %25 = vector.load %arg5[%c0_13, %c0_14] : memref<1x256xf32, #tpu.memory_space<vmem>>, vector<1x256xf32>
    tpu.vector_store %arg5[%c0_13, %c0_14], %23 {strides = array<i32>} : memref<1x256xf32, #tpu.memory_space<vmem>>, vector<1x256xf32>,
    %c0_15 = arith.constant 0 : index
    %c0_16 = arith.constant 0 : index
    %26 = vector.load %arg6[%c0_15, %c0_16] : memref<1x256xf32, #tpu.memory_space<vmem>>, vector<1x256xf32>
    tpu.vector_store %arg6[%c0_15, %c0_16], %24 {strides = array<i32>} : memref<1x256xf32, #tpu.memory_space<vmem>>, vector<1x256xf32>,
    %c0_i32_17 = arith.constant 0 : i32
    %27 = arith.cmpi eq, %arg1, %c0_i32_17 : i32
    %28 = arith.extui %27 : i1 to i32
    %c0_i32_18 = arith.constant 0 : i32
    %29 = arith.cmpi ne, %28, %c0_i32_18 : i32
    scf.if %29 {
      %cst = arith.constant 0.000000e+00 : f32
      %30 = vector.broadcast %cst : f32 to vector<1x22x22xf32>
      %c0_19 = arith.constant 0 : index
      %c0_20 = arith.constant 0 : index
      %c0_21 = arith.constant 0 : index
      %31 = vector.load %arg7[%c0_19, %c0_20, %c0_21] : memref<1x22x22xf32, #tpu.memory_space<vmem>>, vector<1x22x22xf32>
      tpu.vector_store %arg7[%c0_19, %c0_20, %c0_21], %30 {strides = array<i32>} : memref<1x22x22xf32, #tpu.memory_space<vmem>>, vector<1x22x22xf32>,
      %cst_22 = arith.constant 0.000000e+00 : f32
      %32 = vector.broadcast %cst_22 : f32 to vector<1x22x22xf32>
      %c0_23 = arith.constant 0 : index
      %c0_24 = arith.constant 0 : index
      %c0_25 = arith.constant 0 : index
      %33 = vector.load %arg8[%c0_23, %c0_24, %c0_25] : memref<1x22x22xf32, #tpu.memory_space<vmem>>, vector<1x22x22xf32>
      tpu.vector_store %arg8[%c0_23, %c0_24, %c0_25], %32 {strides = array<i32>} : memref<1x22x22xf32, #tpu.memory_space<vmem>>, vector<1x22x22xf32>,
      %c0_26 = arith.constant 0 : index
      %c0_27 = arith.constant 0 : index
      %34 = vector.load %arg5[%c0_26, %c0_27] : memref<1x256xf32, #tpu.memory_space<vmem>>, vector<1x16xf32>
      %cst_28 = arith.constant 2.500000e-01 : f32
      %35 = vector.broadcast %cst_28 : f32 to vector<1x16xf32>
      %36 = arith.mulf %34, %35 : vector<1x16xf32>
      %c0_29 = arith.constant 0 : index
      %c3 = arith.constant 3 : index
      %c3_30 = arith.constant 3 : index
      %37 = vector.load %arg7[%c0_29, %c3, %c3_30] : memref<1x22x22xf32, #tpu.memory_space<vmem>>, vector<1x1x16xf32>
      %38 = vector.shape_cast %37 : vector<1x1x16xf32> to vector<1x16xf32>
      %39 = vector.shape_cast %36 : vector<1x16xf32> to vector<1x1x16xf32>
      tpu.vector_store %arg7[%c0_29, %c3, %c3_30], %39 {strides = array<i32>} : memref<1x22x22xf32, #tpu.memory_space<vmem>>, vector<1x1x16xf32>,
      %c0_31 = arith.constant 0 : index
      %c0_32 = arith.constant 0 : index
      %40 = vector.load %arg6[%c0_31, %c0_32] : memref<1x256xf32, #tpu.memory_space<vmem>>, vector<1x16xf32>
      %c0_33 = arith.constant 0 : index
      %c3_34 = arith.constant 3 : index
      %c3_35 = arith.constant 3 : index
      %41 = vector.load %arg8[%c0_33, %c3_34, %c3_35] : memref<1x22x22xf32, #tpu.memory_space<vmem>>, vector<1x1x16xf32>
      %42 = vector.shape_cast %41 : vector<1x1x16xf32> to vector<1x16xf32>
      %43 = vector.shape_cast %40 : vector<1x16xf32> to vector<1x1x16xf32>
      tpu.vector_store %arg8[%c0_33, %c3_34, %c3_35], %43 {strides = array<i32>} : memref<1x22x22xf32, #tpu.memory_space<vmem>>, vector<1x1x16xf32>,
      %c0_36 = arith.constant 0 : index
      %c16 = arith.constant 16 : index
      %44 = vector.load %arg5[%c0_36, %c16] : memref<1x256xf32, #tpu.memory_space<vmem>>, vector<1x16xf32>
      %cst_37 = arith.constant 2.500000e-01 : f32
      %45 = vector.broadcast %cst_37 : f32 to vector<1x16xf32>
      %46 = arith.mulf %44, %45 : vector<1x16xf32>
      %c0_38 = arith.constant 0 : index
      %c4 = arith.constant 4 : index
      %c3_39 = arith.constant 3 : index
      %47 = vector.load %arg7[%c0_38, %c4, %c3_39] : memref<1x22x22xf32, #tpu.memory_space<vmem>>, vector<1x1x16xf32>
      %48 = vector.shape_cast %47 : vector<1x1x16xf32> to vector<1x16xf32>
      %49 = vector.shape_cast %46 : vector<1x16xf32> to vector<1x1x16xf32>
      tpu.vector_store %arg7[%c0_38, %c4, %c3_39], %49 {strides = array<i32>} : memref<1x22x22xf32, #tpu.memory_space<vmem>>, vector<1x1x16xf32>,
      %c0_40 = arith.constant 0 : index
      %c16_41 = arith.constant 16 : index
      %50 = vector.load %arg6[%c0_40, %c16_41] : memref<1x256xf32, #tpu.memory_space<vmem>>, vector<1x16xf32>
      %c0_42 = arith.constant 0 : index
      %c4_43 = arith.constant 4 : index
      %c3_44 = arith.constant 3 : index
      %51 = vector.load %arg8[%c0_42, %c4_43, %c3_44] : memref<1x22x22xf32, #tpu.memory_space<vmem>>, vector<1x1x16xf32>
      %52 = vector.shape_cast %51 : vector<1x1x16xf32> to vector<1x16xf32>
      %53 = vector.shape_cast %50 : vector<1x16xf32> to vector<1x1x16xf32>
      tpu.vector_store %arg8[%c0_42, %c4_43, %c3_44], %53 {strides = array<i32>} : memref<1x22x22xf32, #tpu.memory_space<vmem>>, vector<1x1x16xf32>,
      %c0_45 = arith.constant 0 : index
      %c32 = arith.constant 32 : index
      %54 = vector.load %arg5[%c0_45, %c32] : memref<1x256xf32, #tpu.memory_space<vmem>>, vector<1x16xf32>
      %cst_46 = arith.constant 2.500000e-01 : f32
      %55 = vector.broadcast %cst_46 : f32 to vector<1x16xf32>
      %56 = arith.mulf %54, %55 : vector<1x16xf32>
      %c0_47 = arith.constant 0 : index
      %c5 = arith.constant 5 : index
      %c3_48 = arith.constant 3 : index
      %57 = vector.load %arg7[%c0_47, %c5, %c3_48] : memref<1x22x22xf32, #tpu.memory_space<vmem>>, vector<1x1x16xf32>
      %58 = vector.shape_cast %57 : vector<1x1x16xf32> to vector<1x16xf32>
      %59 = vector.shape_cast %56 : vector<1x16xf32> to vector<1x1x16xf32>
      tpu.vector_store %arg7[%c0_47, %c5, %c3_48], %59 {strides = array<i32>} : memref<1x22x22xf32, #tpu.memory_space<vmem>>, vector<1x1x16xf32>,
      %c0_49 = arith.constant 0 : index
      %c32_50 = arith.constant 32 : index
      %60 = vector.load %arg6[%c0_49, %c32_50] : memref<1x256xf32, #tpu.memory_space<vmem>>, vector<1x16xf32>
      %c0_51 = arith.constant 0 : index
      %c5_52 = arith.constant 5 : index
      %c3_53 = arith.constant 3 : index
      %61 = vector.load %arg8[%c0_51, %c5_52, %c3_53] : memref<1x22x22xf32, #tpu.memory_space<vmem>>, vector<1x1x16xf32>
      %62 = vector.shape_cast %61 : vector<1x1x16xf32> to vector<1x16xf32>
      %63 = vector.shape_cast %60 : vector<1x16xf32> to vector<1x1x16xf32>
      tpu.vector_store %arg8[%c0_51, %c5_52, %c3_53], %63 {strides = array<i32>} : memref<1x22x22xf32, #tpu.memory_space<vmem>>, vector<1x1x16xf32>,
      %c0_54 = arith.constant 0 : index
      %c48 = arith.constant 48 : index
      %64 = vector.load %arg5[%c0_54, %c48] : memref<1x256xf32, #tpu.memory_space<vmem>>, vector<1x16xf32>
      %cst_55 = arith.constant 2.500000e-01 : f32
      %65 = vector.broadcast %cst_55 : f32 to vector<1x16xf32>
      %66 = arith.mulf %64, %65 : vector<1x16xf32>
      %c0_56 = arith.constant 0 : index
      %c6 = arith.constant 6 : index
      %c3_57 = arith.constant 3 : index
      %67 = vector.load %arg7[%c0_56, %c6, %c3_57] : memref<1x22x22xf32, #tpu.memory_space<vmem>>, vector<1x1x16xf32>
      %68 = vector.shape_cast %67 : vector<1x1x16xf32> to vector<1x16xf32>
      %69 = vector.shape_cast %66 : vector<1x16xf32> to vector<1x1x16xf32>
      tpu.vector_store %arg7[%c0_56, %c6, %c3_57], %69 {strides = array<i32>} : memref<1x22x22xf32, #tpu.memory_space<vmem>>, vector<1x1x16xf32>,
      %c0_58 = arith.constant 0 : index
      %c48_59 = arith.constant 48 : index
      %70 = vector.load %arg6[%c0_58, %c48_59] : memref<1x256xf32, #tpu.memory_space<vmem>>, vector<1x16xf32>
      %c0_60 = arith.constant 0 : index
      %c6_61 = arith.constant 6 : index
      %c3_62 = arith.constant 3 : index
      %71 = vector.load %arg8[%c0_60, %c6_61, %c3_62] : memref<1x22x22xf32, #tpu.memory_space<vmem>>, vector<1x1x16xf32>
      %72 = vector.shape_cast %71 : vector<1x1x16xf32> to vector<1x16xf32>
      %73 = vector.shape_cast %70 : vector<1x16xf32> to vector<1x1x16xf32>
      tpu.vector_store %arg8[%c0_60, %c6_61, %c3_62], %73 {strides = array<i32>} : memref<1x22x22xf32, #tpu.memory_space<vmem>>, vector<1x1x16xf32>,
      %c0_63 = arith.constant 0 : index
      %c64 = arith.constant 64 : index
      %74 = vector.load %arg5[%c0_63, %c64] : memref<1x256xf32, #tpu.memory_space<vmem>>, vector<1x16xf32>
      %cst_64 = arith.constant 2.500000e-01 : f32
      %75 = vector.broadcast %cst_64 : f32 to vector<1x16xf32>
      %76 = arith.mulf %74, %75 : vector<1x16xf32>
      %c0_65 = arith.constant 0 : index
      %c7 = arith.constant 7 : index
      %c3_66 = arith.constant 3 : index
      %77 = vector.load %arg7[%c0_65, %c7, %c3_66] : memref<1x22x22xf32, #tpu.memory_space<vmem>>, vector<1x1x16xf32>
      %78 = vector.shape_cast %77 : vector<1x1x16xf32> to vector<1x16xf32>
      %79 = vector.shape_cast %76 : vector<1x16xf32> to vector<1x1x16xf32>
      tpu.vector_store %arg7[%c0_65, %c7, %c3_66], %79 {strides = array<i32>} : memref<1x22x22xf32, #tpu.memory_space<vmem>>, vector<1x1x16xf32>,
      %c0_67 = arith.constant 0 : index
      %c64_68 = arith.constant 64 : index
      %80 = vector.load %arg6[%c0_67, %c64_68] : memref<1x256xf32, #tpu.memory_space<vmem>>, vector<1x16xf32>
      %c0_69 = arith.constant 0 : index
      %c7_70 = arith.constant 7 : index
      %c3_71 = arith.constant 3 : index
      %81 = vector.load %arg8[%c0_69, %c7_70, %c3_71] : memref<1x22x22xf32, #tpu.memory_space<vmem>>, vector<1x1x16xf32>
      %82 = vector.shape_cast %81 : vector<1x1x16xf32> to vector<1x16xf32>
      %83 = vector.shape_cast %80 : vector<1x16xf32> to vector<1x1x16xf32>
      tpu.vector_store %arg8[%c0_69, %c7_70, %c3_71], %83 {strides = array<i32>} : memref<1x22x22xf32, #tpu.memory_space<vmem>>, vector<1x1x16xf32>,
      %c0_72 = arith.constant 0 : index
      %c80 = arith.constant 80 : index
      %84 = vector.load %arg5[%c0_72, %c80] : memref<1x256xf32, #tpu.memory_space<vmem>>, vector<1x16xf32>
      %cst_73 = arith.constant 2.500000e-01 : f32
      %85 = vector.broadcast %cst_73 : f32 to vector<1x16xf32>
      %86 = arith.mulf %84, %85 : vector<1x16xf32>
      %c0_74 = arith.constant 0 : index
      %c8 = arith.constant 8 : index
      %c3_75 = arith.constant 3 : index
      %87 = vector.load %arg7[%c0_74, %c8, %c3_75] : memref<1x22x22xf32, #tpu.memory_space<vmem>>, vector<1x1x16xf32>
      %88 = vector.shape_cast %87 : vector<1x1x16xf32> to vector<1x16xf32>
      %89 = vector.shape_cast %86 : vector<1x16xf32> to vector<1x1x16xf32>
      tpu.vector_store %arg7[%c0_74, %c8, %c3_75], %89 {strides = array<i32>} : memref<1x22x22xf32, #tpu.memory_space<vmem>>, vector<1x1x16xf32>,
      %c0_76 = arith.constant 0 : index
      %c80_77 = arith.constant 80 : index
      %90 = vector.load %arg6[%c0_76, %c80_77] : memref<1x256xf32, #tpu.memory_space<vmem>>, vector<1x16xf32>
      %c0_78 = arith.constant 0 : index
      %c8_79 = arith.constant 8 : index
      %c3_80 = arith.constant 3 : index
      %91 = vector.load %arg8[%c0_78, %c8_79, %c3_80] : memref<1x22x22xf32, #tpu.memory_space<vmem>>, vector<1x1x16xf32>
      %92 = vector.shape_cast %91 : vector<1x1x16xf32> to vector<1x16xf32>
      %93 = vector.shape_cast %90 : vector<1x16xf32> to vector<1x1x16xf32>
      tpu.vector_store %arg8[%c0_78, %c8_79, %c3_80], %93 {strides = array<i32>} : memref<1x22x22xf32, #tpu.memory_space<vmem>>, vector<1x1x16xf32>,
      %c0_81 = arith.constant 0 : index
      %c96 = arith.constant 96 : index
      %94 = vector.load %arg5[%c0_81, %c96] : memref<1x256xf32, #tpu.memory_space<vmem>>, vector<1x16xf32>
      %cst_82 = arith.constant 2.500000e-01 : f32
      %95 = vector.broadcast %cst_82 : f32 to vector<1x16xf32>
      %96 = arith.mulf %94, %95 : vector<1x16xf32>
      %c0_83 = arith.constant 0 : index
      %c9 = arith.constant 9 : index
      %c3_84 = arith.constant 3 : index
      %97 = vector.load %arg7[%c0_83, %c9, %c3_84] : memref<1x22x22xf32, #tpu.memory_space<vmem>>, vector<1x1x16xf32>
      %98 = vector.shape_cast %97 : vector<1x1x16xf32> to vector<1x16xf32>
      %99 = vector.shape_cast %96 : vector<1x16xf32> to vector<1x1x16xf32>
      tpu.vector_store %arg7[%c0_83, %c9, %c3_84], %99 {strides = array<i32>} : memref<1x22x22xf32, #tpu.memory_space<vmem>>, vector<1x1x16xf32>,
      %c0_85 = arith.constant 0 : index
      %c96_86 = arith.constant 96 : index
      %100 = vector.load %arg6[%c0_85, %c96_86] : memref<1x256xf32, #tpu.memory_space<vmem>>, vector<1x16xf32>
      %c0_87 = arith.constant 0 : index
      %c9_88 = arith.constant 9 : index
      %c3_89 = arith.constant 3 : index
      %101 = vector.load %arg8[%c0_87, %c9_88, %c3_89] : memref<1x22x22xf32, #tpu.memory_space<vmem>>, vector<1x1x16xf32>
      %102 = vector.shape_cast %101 : vector<1x1x16xf32> to vector<1x16xf32>
      %103 = vector.shape_cast %100 : vector<1x16xf32> to vector<1x1x16xf32>
      tpu.vector_store %arg8[%c0_87, %c9_88, %c3_89], %103 {strides = array<i32>} : memref<1x22x22xf32, #tpu.memory_space<vmem>>, vector<1x1x16xf32>,
      %c0_90 = arith.constant 0 : index
      %c112 = arith.constant 112 : index
      %104 = vector.load %arg5[%c0_90, %c112] : memref<1x256xf32, #tpu.memory_space<vmem>>, vector<1x16xf32>
      %cst_91 = arith.constant 2.500000e-01 : f32
      %105 = vector.broadcast %cst_91 : f32 to vector<1x16xf32>
      %106 = arith.mulf %104, %105 : vector<1x16xf32>
      %c0_92 = arith.constant 0 : index
      %c10 = arith.constant 10 : index
      %c3_93 = arith.constant 3 : index
      %107 = vector.load %arg7[%c0_92, %c10, %c3_93] : memref<1x22x22xf32, #tpu.memory_space<vmem>>, vector<1x1x16xf32>
      %108 = vector.shape_cast %107 : vector<1x1x16xf32> to vector<1x16xf32>
      %109 = vector.shape_cast %106 : vector<1x16xf32> to vector<1x1x16xf32>
      tpu.vector_store %arg7[%c0_92, %c10, %c3_93], %109 {strides = array<i32>} : memref<1x22x22xf32, #tpu.memory_space<vmem>>, vector<1x1x16xf32>,
      %c0_94 = arith.constant 0 : index
      %c112_95 = arith.constant 112 : index
      %110 = vector.load %arg6[%c0_94, %c112_95] : memref<1x256xf32, #tpu.memory_space<vmem>>, vector<1x16xf32>
      %c0_96 = arith.constant 0 : index
      %c10_97 = arith.constant 10 : index
      %c3_98 = arith.constant 3 : index
      %111 = vector.load %arg8[%c0_96, %c10_97, %c3_98] : memref<1x22x22xf32, #tpu.memory_space<vmem>>, vector<1x1x16xf32>
      %112 = vector.shape_cast %111 : vector<1x1x16xf32> to vector<1x16xf32>
      %113 = vector.shape_cast %110 : vector<1x16xf32> to vector<1x1x16xf32>
      tpu.vector_store %arg8[%c0_96, %c10_97, %c3_98], %113 {strides = array<i32>} : memref<1x22x22xf32, #tpu.memory_space<vmem>>, vector<1x1x16xf32>,
      %c0_99 = arith.constant 0 : index
      %c128 = arith.constant 128 : index
      %114 = vector.load %arg5[%c0_99, %c128] : memref<1x256xf32, #tpu.memory_space<vmem>>, vector<1x16xf32>
      %cst_100 = arith.constant 2.500000e-01 : f32
      %115 = vector.broadcast %cst_100 : f32 to vector<1x16xf32>
      %116 = arith.mulf %114, %115 : vector<1x16xf32>
      %c0_101 = arith.constant 0 : index
      %c11 = arith.constant 11 : index
      %c3_102 = arith.constant 3 : index
      %117 = vector.load %arg7[%c0_101, %c11, %c3_102] : memref<1x22x22xf32, #tpu.memory_space<vmem>>, vector<1x1x16xf32>
      %118 = vector.shape_cast %117 : vector<1x1x16xf32> to vector<1x16xf32>
      %119 = vector.shape_cast %116 : vector<1x16xf32> to vector<1x1x16xf32>
      tpu.vector_store %arg7[%c0_101, %c11, %c3_102], %119 {strides = array<i32>} : memref<1x22x22xf32, #tpu.memory_space<vmem>>, vector<1x1x16xf32>,
      %c0_103 = arith.constant 0 : index
      %c128_104 = arith.constant 128 : index
      %120 = vector.load %arg6[%c0_103, %c128_104] : memref<1x256xf32, #tpu.memory_space<vmem>>, vector<1x16xf32>
      %c0_105 = arith.constant 0 : index
      %c11_106 = arith.constant 11 : index
      %c3_107 = arith.constant 3 : index
      %121 = vector.load %arg8[%c0_105, %c11_106, %c3_107] : memref<1x22x22xf32, #tpu.memory_space<vmem>>, vector<1x1x16xf32>
      %122 = vector.shape_cast %121 : vector<1x1x16xf32> to vector<1x16xf32>
      %123 = vector.shape_cast %120 : vector<1x16xf32> to vector<1x1x16xf32>
      tpu.vector_store %arg8[%c0_105, %c11_106, %c3_107], %123 {strides = array<i32>} : memref<1x22x22xf32, #tpu.memory_space<vmem>>, vector<1x1x16xf32>,
      %c0_108 = arith.constant 0 : index
      %c144 = arith.constant 144 : index
      %124 = vector.load %arg5[%c0_108, %c144] : memref<1x256xf32, #tpu.memory_space<vmem>>, vector<1x16xf32>
      %cst_109 = arith.constant 2.500000e-01 : f32
      %125 = vector.broadcast %cst_109 : f32 to vector<1x16xf32>
      %126 = arith.mulf %124, %125 : vector<1x16xf32>
      %c0_110 = arith.constant 0 : index
      %c12 = arith.constant 12 : index
      %c3_111 = arith.constant 3 : index
      %127 = vector.load %arg7[%c0_110, %c12, %c3_111] : memref<1x22x22xf32, #tpu.memory_space<vmem>>, vector<1x1x16xf32>
      %128 = vector.shape_cast %127 : vector<1x1x16xf32> to vector<1x16xf32>
      %129 = vector.shape_cast %126 : vector<1x16xf32> to vector<1x1x16xf32>
      tpu.vector_store %arg7[%c0_110, %c12, %c3_111], %129 {strides = array<i32>} : memref<1x22x22xf32, #tpu.memory_space<vmem>>, vector<1x1x16xf32>,
      %c0_112 = arith.constant 0 : index
      %c144_113 = arith.constant 144 : index
      %130 = vector.load %arg6[%c0_112, %c144_113] : memref<1x256xf32, #tpu.memory_space<vmem>>, vector<1x16xf32>
      %c0_114 = arith.constant 0 : index
      %c12_115 = arith.constant 12 : index
      %c3_116 = arith.constant 3 : index
      %131 = vector.load %arg8[%c0_114, %c12_115, %c3_116] : memref<1x22x22xf32, #tpu.memory_space<vmem>>, vector<1x1x16xf32>
      %132 = vector.shape_cast %131 : vector<1x1x16xf32> to vector<1x16xf32>
      %133 = vector.shape_cast %130 : vector<1x16xf32> to vector<1x1x16xf32>
      tpu.vector_store %arg8[%c0_114, %c12_115, %c3_116], %133 {strides = array<i32>} : memref<1x22x22xf32, #tpu.memory_space<vmem>>, vector<1x1x16xf32>,
      %c0_117 = arith.constant 0 : index
      %c160 = arith.constant 160 : index
      %134 = vector.load %arg5[%c0_117, %c160] : memref<1x256xf32, #tpu.memory_space<vmem>>, vector<1x16xf32>
      %cst_118 = arith.constant 2.500000e-01 : f32
      %135 = vector.broadcast %cst_118 : f32 to vector<1x16xf32>
      %136 = arith.mulf %134, %135 : vector<1x16xf32>
      %c0_119 = arith.constant 0 : index
      %c13 = arith.constant 13 : index
      %c3_120 = arith.constant 3 : index
      %137 = vector.load %arg7[%c0_119, %c13, %c3_120] : memref<1x22x22xf32, #tpu.memory_space<vmem>>, vector<1x1x16xf32>
      %138 = vector.shape_cast %137 : vector<1x1x16xf32> to vector<1x16xf32>
      %139 = vector.shape_cast %136 : vector<1x16xf32> to vector<1x1x16xf32>
      tpu.vector_store %arg7[%c0_119, %c13, %c3_120], %139 {strides = array<i32>} : memref<1x22x22xf32, #tpu.memory_space<vmem>>, vector<1x1x16xf32>,
      %c0_121 = arith.constant 0 : index
      %c160_122 = arith.constant 160 : index
      %140 = vector.load %arg6[%c0_121, %c160_122] : memref<1x256xf32, #tpu.memory_space<vmem>>, vector<1x16xf32>
      %c0_123 = arith.constant 0 : index
      %c13_124 = arith.constant 13 : index
      %c3_125 = arith.constant 3 : index
      %141 = vector.load %arg8[%c0_123, %c13_124, %c3_125] : memref<1x22x22xf32, #tpu.memory_space<vmem>>, vector<1x1x16xf32>
      %142 = vector.shape_cast %141 : vector<1x1x16xf32> to vector<1x16xf32>
      %143 = vector.shape_cast %140 : vector<1x16xf32> to vector<1x1x16xf32>
      tpu.vector_store %arg8[%c0_123, %c13_124, %c3_125], %143 {strides = array<i32>} : memref<1x22x22xf32, #tpu.memory_space<vmem>>, vector<1x1x16xf32>,
      %c0_126 = arith.constant 0 : index
      %c176 = arith.constant 176 : index
      %144 = vector.load %arg5[%c0_126, %c176] : memref<1x256xf32, #tpu.memory_space<vmem>>, vector<1x16xf32>
      %cst_127 = arith.constant 2.500000e-01 : f32
      %145 = vector.broadcast %cst_127 : f32 to vector<1x16xf32>
      %146 = arith.mulf %144, %145 : vector<1x16xf32>
      %c0_128 = arith.constant 0 : index
      %c14 = arith.constant 14 : index
      %c3_129 = arith.constant 3 : index
      %147 = vector.load %arg7[%c0_128, %c14, %c3_129] : memref<1x22x22xf32, #tpu.memory_space<vmem>>, vector<1x1x16xf32>
      %148 = vector.shape_cast %147 : vector<1x1x16xf32> to vector<1x16xf32>
      %149 = vector.shape_cast %146 : vector<1x16xf32> to vector<1x1x16xf32>
      tpu.vector_store %arg7[%c0_128, %c14, %c3_129], %149 {strides = array<i32>} : memref<1x22x22xf32, #tpu.memory_space<vmem>>, vector<1x1x16xf32>,
      %c0_130 = arith.constant 0 : index
      %c176_131 = arith.constant 176 : index
      %150 = vector.load %arg6[%c0_130, %c176_131] : memref<1x256xf32, #tpu.memory_space<vmem>>, vector<1x16xf32>
      %c0_132 = arith.constant 0 : index
      %c14_133 = arith.constant 14 : index
      %c3_134 = arith.constant 3 : index
      %151 = vector.load %arg8[%c0_132, %c14_133, %c3_134] : memref<1x22x22xf32, #tpu.memory_space<vmem>>, vector<1x1x16xf32>
      %152 = vector.shape_cast %151 : vector<1x1x16xf32> to vector<1x16xf32>
      %153 = vector.shape_cast %150 : vector<1x16xf32> to vector<1x1x16xf32>
      tpu.vector_store %arg8[%c0_132, %c14_133, %c3_134], %153 {strides = array<i32>} : memref<1x22x22xf32, #tpu.memory_space<vmem>>, vector<1x1x16xf32>,
      %c0_135 = arith.constant 0 : index
      %c192 = arith.constant 192 : index
      %154 = vector.load %arg5[%c0_135, %c192] : memref<1x256xf32, #tpu.memory_space<vmem>>, vector<1x16xf32>
      %cst_136 = arith.constant 2.500000e-01 : f32
      %155 = vector.broadcast %cst_136 : f32 to vector<1x16xf32>
      %156 = arith.mulf %154, %155 : vector<1x16xf32>
      %c0_137 = arith.constant 0 : index
      %c15 = arith.constant 15 : index
      %c3_138 = arith.constant 3 : index
      %157 = vector.load %arg7[%c0_137, %c15, %c3_138] : memref<1x22x22xf32, #tpu.memory_space<vmem>>, vector<1x1x16xf32>
      %158 = vector.shape_cast %157 : vector<1x1x16xf32> to vector<1x16xf32>
      %159 = vector.shape_cast %156 : vector<1x16xf32> to vector<1x1x16xf32>
      tpu.vector_store %arg7[%c0_137, %c15, %c3_138], %159 {strides = array<i32>} : memref<1x22x22xf32, #tpu.memory_space<vmem>>, vector<1x1x16xf32>,
      %c0_139 = arith.constant 0 : index
      %c192_140 = arith.constant 192 : index
      %160 = vector.load %arg6[%c0_139, %c192_140] : memref<1x256xf32, #tpu.memory_space<vmem>>, vector<1x16xf32>
      %c0_141 = arith.constant 0 : index
      %c15_142 = arith.constant 15 : index
      %c3_143 = arith.constant 3 : index
      %161 = vector.load %arg8[%c0_141, %c15_142, %c3_143] : memref<1x22x22xf32, #tpu.memory_space<vmem>>, vector<1x1x16xf32>
      %162 = vector.shape_cast %161 : vector<1x1x16xf32> to vector<1x16xf32>
      %163 = vector.shape_cast %160 : vector<1x16xf32> to vector<1x1x16xf32>
      tpu.vector_store %arg8[%c0_141, %c15_142, %c3_143], %163 {strides = array<i32>} : memref<1x22x22xf32, #tpu.memory_space<vmem>>, vector<1x1x16xf32>,
      %c0_144 = arith.constant 0 : index
      %c208 = arith.constant 208 : index
      %164 = vector.load %arg5[%c0_144, %c208] : memref<1x256xf32, #tpu.memory_space<vmem>>, vector<1x16xf32>
      %cst_145 = arith.constant 2.500000e-01 : f32
      %165 = vector.broadcast %cst_145 : f32 to vector<1x16xf32>
      %166 = arith.mulf %164, %165 : vector<1x16xf32>
      %c0_146 = arith.constant 0 : index
      %c16_147 = arith.constant 16 : index
      %c3_148 = arith.constant 3 : index
      %167 = vector.load %arg7[%c0_146, %c16_147, %c3_148] : memref<1x22x22xf32, #tpu.memory_space<vmem>>, vector<1x1x16xf32>
      %168 = vector.shape_cast %167 : vector<1x1x16xf32> to vector<1x16xf32>
      %169 = vector.shape_cast %166 : vector<1x16xf32> to vector<1x1x16xf32>
      tpu.vector_store %arg7[%c0_146, %c16_147, %c3_148], %169 {strides = array<i32>} : memref<1x22x22xf32, #tpu.memory_space<vmem>>, vector<1x1x16xf32>,
      %c0_149 = arith.constant 0 : index
      %c208_150 = arith.constant 208 : index
      %170 = vector.load %arg6[%c0_149, %c208_150] : memref<1x256xf32, #tpu.memory_space<vmem>>, vector<1x16xf32>
      %c0_151 = arith.constant 0 : index
      %c16_152 = arith.constant 16 : index
      %c3_153 = arith.constant 3 : index
      %171 = vector.load %arg8[%c0_151, %c16_152, %c3_153] : memref<1x22x22xf32, #tpu.memory_space<vmem>>, vector<1x1x16xf32>
      %172 = vector.shape_cast %171 : vector<1x1x16xf32> to vector<1x16xf32>
      %173 = vector.shape_cast %170 : vector<1x16xf32> to vector<1x1x16xf32>
      tpu.vector_store %arg8[%c0_151, %c16_152, %c3_153], %173 {strides = array<i32>} : memref<1x22x22xf32, #tpu.memory_space<vmem>>, vector<1x1x16xf32>,
      %c0_154 = arith.constant 0 : index
      %c224 = arith.constant 224 : index
      %174 = vector.load %arg5[%c0_154, %c224] : memref<1x256xf32, #tpu.memory_space<vmem>>, vector<1x16xf32>
      %cst_155 = arith.constant 2.500000e-01 : f32
      %175 = vector.broadcast %cst_155 : f32 to vector<1x16xf32>
      %176 = arith.mulf %174, %175 : vector<1x16xf32>
      %c0_156 = arith.constant 0 : index
      %c17 = arith.constant 17 : index
      %c3_157 = arith.constant 3 : index
      %177 = vector.load %arg7[%c0_156, %c17, %c3_157] : memref<1x22x22xf32, #tpu.memory_space<vmem>>, vector<1x1x16xf32>
      %178 = vector.shape_cast %177 : vector<1x1x16xf32> to vector<1x16xf32>
      %179 = vector.shape_cast %176 : vector<1x16xf32> to vector<1x1x16xf32>
      tpu.vector_store %arg7[%c0_156, %c17, %c3_157], %179 {strides = array<i32>} : memref<1x22x22xf32, #tpu.memory_space<vmem>>, vector<1x1x16xf32>,
      %c0_158 = arith.constant 0 : index
      %c224_159 = arith.constant 224 : index
      %180 = vector.load %arg6[%c0_158, %c224_159] : memref<1x256xf32, #tpu.memory_space<vmem>>, vector<1x16xf32>
      %c0_160 = arith.constant 0 : index
      %c17_161 = arith.constant 17 : index
      %c3_162 = arith.constant 3 : index
      %181 = vector.load %arg8[%c0_160, %c17_161, %c3_162] : memref<1x22x22xf32, #tpu.memory_space<vmem>>, vector<1x1x16xf32>
      %182 = vector.shape_cast %181 : vector<1x1x16xf32> to vector<1x16xf32>
      %183 = vector.shape_cast %180 : vector<1x16xf32> to vector<1x1x16xf32>
      tpu.vector_store %arg8[%c0_160, %c17_161, %c3_162], %183 {strides = array<i32>} : memref<1x22x22xf32, #tpu.memory_space<vmem>>, vector<1x1x16xf32>,
      %c0_163 = arith.constant 0 : index
      %c240 = arith.constant 240 : index
      %184 = vector.load %arg5[%c0_163, %c240] : memref<1x256xf32, #tpu.memory_space<vmem>>, vector<1x16xf32>
      %cst_164 = arith.constant 2.500000e-01 : f32
      %185 = vector.broadcast %cst_164 : f32 to vector<1x16xf32>
      %186 = arith.mulf %184, %185 : vector<1x16xf32>
      %c0_165 = arith.constant 0 : index
      %c18 = arith.constant 18 : index
      %c3_166 = arith.constant 3 : index
      %187 = vector.load %arg7[%c0_165, %c18, %c3_166] : memref<1x22x22xf32, #tpu.memory_space<vmem>>, vector<1x1x16xf32>
      %188 = vector.shape_cast %187 : vector<1x1x16xf32> to vector<1x16xf32>
      %189 = vector.shape_cast %186 : vector<1x16xf32> to vector<1x1x16xf32>
      tpu.vector_store %arg7[%c0_165, %c18, %c3_166], %189 {strides = array<i32>} : memref<1x22x22xf32, #tpu.memory_space<vmem>>, vector<1x1x16xf32>,
      %c0_167 = arith.constant 0 : index
      %c240_168 = arith.constant 240 : index
      %190 = vector.load %arg6[%c0_167, %c240_168] : memref<1x256xf32, #tpu.memory_space<vmem>>, vector<1x16xf32>
      %c0_169 = arith.constant 0 : index
      %c18_170 = arith.constant 18 : index
      %c3_171 = arith.constant 3 : index
      %191 = vector.load %arg8[%c0_169, %c18_170, %c3_171] : memref<1x22x22xf32, #tpu.memory_space<vmem>>, vector<1x1x16xf32>
      %192 = vector.shape_cast %191 : vector<1x1x16xf32> to vector<1x16xf32>
      %193 = vector.shape_cast %190 : vector<1x16xf32> to vector<1x1x16xf32>
      tpu.vector_store %arg8[%c0_169, %c18_170, %c3_171], %193 {strides = array<i32>} : memref<1x22x22xf32, #tpu.memory_space<vmem>>, vector<1x1x16xf32>,
      %cst_172 = arith.constant 0.000000e+00 : f32
      %194 = vector.broadcast %cst_172 : f32 to vector<1x16x16xf32>
      %c0_173 = arith.constant 0 : index
      %195 = memref.load %arg2[%c0_173] : memref<98xf32, #tpu.memory_space<smem>>
      %c0_174 = arith.constant 0 : index
      %c0_175 = arith.constant 0 : index
      %c0_176 = arith.constant 0 : index
      %196 = vector.load %arg7[%c0_174, %c0_175, %c0_176] : memref<1x22x22xf32, #tpu.memory_space<vmem>>, vector<1x16x16xf32>
      %197 = vector.broadcast %195 : f32 to vector<1x16x16xf32>
      %198 = arith.mulf %197, %196 : vector<1x16x16xf32>
      %199 = arith.addf %194, %198 : vector<1x16x16xf32>
      %c1 = arith.constant 1 : index
      %200 = memref.load %arg2[%c1] : memref<98xf32, #tpu.memory_space<smem>>
      %c0_177 = arith.constant 0 : index
      %c0_178 = arith.constant 0 : index
      %c1_179 = arith.constant 1 : index
      %201 = vector.load %arg7[%c0_177, %c0_178, %c1_179] : memref<1x22x22xf32, #tpu.memory_space<vmem>>, vector<1x16x16xf32>
      %202 = vector.broadcast %200 : f32 to vector<1x16x16xf32>
      %203 = arith.mulf %202, %201 : vector<1x16x16xf32>
      %204 = arith.addf %199, %203 : vector<1x16x16xf32>
      %c2 = arith.constant 2 : index
      %205 = memref.load %arg2[%c2] : memref<98xf32, #tpu.memory_space<smem>>
      %c0_180 = arith.constant 0 : index
      %c0_181 = arith.constant 0 : index
      %c2_182 = arith.constant 2 : index
      %206 = vector.load %arg7[%c0_180, %c0_181, %c2_182] : memref<1x22x22xf32, #tpu.memory_space<vmem>>, vector<1x16x16xf32>
      %207 = vector.broadcast %205 : f32 to vector<1x16x16xf32>
      %208 = arith.mulf %207, %206 : vector<1x16x16xf32>
      %209 = arith.addf %204, %208 : vector<1x16x16xf32>
      %c3_183 = arith.constant 3 : index
      %210 = memref.load %arg2[%c3_183] : memref<98xf32, #tpu.memory_space<smem>>
      %c0_184 = arith.constant 0 : index
      %c0_185 = arith.constant 0 : index
      %c3_186 = arith.constant 3 : index
      %211 = vector.load %arg7[%c0_184, %c0_185, %c3_186] : memref<1x22x22xf32, #tpu.memory_space<vmem>>, vector<1x16x16xf32>
      %212 = vector.broadcast %210 : f32 to vector<1x16x16xf32>
      %213 = arith.mulf %212, %211 : vector<1x16x16xf32>
      %214 = arith.addf %209, %213 : vector<1x16x16xf32>
      %c4_187 = arith.constant 4 : index
      %215 = memref.load %arg2[%c4_187] : memref<98xf32, #tpu.memory_space<smem>>
      %c0_188 = arith.constant 0 : index
      %c0_189 = arith.constant 0 : index
      %c4_190 = arith.constant 4 : index
      %216 = vector.load %arg7[%c0_188, %c0_189, %c4_190] : memref<1x22x22xf32, #tpu.memory_space<vmem>>, vector<1x16x16xf32>
      %217 = vector.broadcast %215 : f32 to vector<1x16x16xf32>
      %218 = arith.mulf %217, %216 : vector<1x16x16xf32>
      %219 = arith.addf %214, %218 : vector<1x16x16xf32>
      %c5_191 = arith.constant 5 : index
      %220 = memref.load %arg2[%c5_191] : memref<98xf32, #tpu.memory_space<smem>>
      %c0_192 = arith.constant 0 : index
      %c0_193 = arith.constant 0 : index
      %c5_194 = arith.constant 5 : index
      %221 = vector.load %arg7[%c0_192, %c0_193, %c5_194] : memref<1x22x22xf32, #tpu.memory_space<vmem>>, vector<1x16x16xf32>
      %222 = vector.broadcast %220 : f32 to vector<1x16x16xf32>
      %223 = arith.mulf %222, %221 : vector<1x16x16xf32>
      %224 = arith.addf %219, %223 : vector<1x16x16xf32>
      %c6_195 = arith.constant 6 : index
      %225 = memref.load %arg2[%c6_195] : memref<98xf32, #tpu.memory_space<smem>>
      %c0_196 = arith.constant 0 : index
      %c0_197 = arith.constant 0 : index
      %c6_198 = arith.constant 6 : index
      %226 = vector.load %arg7[%c0_196, %c0_197, %c6_198] : memref<1x22x22xf32, #tpu.memory_space<vmem>>, vector<1x16x16xf32>
      %227 = vector.broadcast %225 : f32 to vector<1x16x16xf32>
      %228 = arith.mulf %227, %226 : vector<1x16x16xf32>
      %229 = arith.addf %224, %228 : vector<1x16x16xf32>
      %c7_199 = arith.constant 7 : index
      %230 = memref.load %arg2[%c7_199] : memref<98xf32, #tpu.memory_space<smem>>
      %c0_200 = arith.constant 0 : index
      %c1_201 = arith.constant 1 : index
      %c0_202 = arith.constant 0 : index
      %231 = vector.load %arg7[%c0_200, %c1_201, %c0_202] : memref<1x22x22xf32, #tpu.memory_space<vmem>>, vector<1x16x16xf32>
      %232 = vector.broadcast %230 : f32 to vector<1x16x16xf32>
      %233 = arith.mulf %232, %231 : vector<1x16x16xf32>
      %234 = arith.addf %229, %233 : vector<1x16x16xf32>
      %c8_203 = arith.constant 8 : index
      %235 = memref.load %arg2[%c8_203] : memref<98xf32, #tpu.memory_space<smem>>
      %c0_204 = arith.constant 0 : index
      %c1_205 = arith.constant 1 : index
      %c1_206 = arith.constant 1 : index
      %236 = vector.load %arg7[%c0_204, %c1_205, %c1_206] : memref<1x22x22xf32, #tpu.memory_space<vmem>>, vector<1x16x16xf32>
      %237 = vector.broadcast %235 : f32 to vector<1x16x16xf32>
      %238 = arith.mulf %237, %236 : vector<1x16x16xf32>
      %239 = arith.addf %234, %238 : vector<1x16x16xf32>
      %c9_207 = arith.constant 9 : index
      %240 = memref.load %arg2[%c9_207] : memref<98xf32, #tpu.memory_space<smem>>
      %c0_208 = arith.constant 0 : index
      %c1_209 = arith.constant 1 : index
      %c2_210 = arith.constant 2 : index
      %241 = vector.load %arg7[%c0_208, %c1_209, %c2_210] : memref<1x22x22xf32, #tpu.memory_space<vmem>>, vector<1x16x16xf32>
      %242 = vector.broadcast %240 : f32 to vector<1x16x16xf32>
      %243 = arith.mulf %242, %241 : vector<1x16x16xf32>
      %244 = arith.addf %239, %243 : vector<1x16x16xf32>
      %c10_211 = arith.constant 10 : index
      %245 = memref.load %arg2[%c10_211] : memref<98xf32, #tpu.memory_space<smem>>
      %c0_212 = arith.constant 0 : index
      %c1_213 = arith.constant 1 : index
      %c3_214 = arith.constant 3 : index
      %246 = vector.load %arg7[%c0_212, %c1_213, %c3_214] : memref<1x22x22xf32, #tpu.memory_space<vmem>>, vector<1x16x16xf32>
      %247 = vector.broadcast %245 : f32 to vector<1x16x16xf32>
      %248 = arith.mulf %247, %246 : vector<1x16x16xf32>
      %249 = arith.addf %244, %248 : vector<1x16x16xf32>
      %c11_215 = arith.constant 11 : index
      %250 = memref.load %arg2[%c11_215] : memref<98xf32, #tpu.memory_space<smem>>
      %c0_216 = arith.constant 0 : index
      %c1_217 = arith.constant 1 : index
      %c4_218 = arith.constant 4 : index
      %251 = vector.load %arg7[%c0_216, %c1_217, %c4_218] : memref<1x22x22xf32, #tpu.memory_space<vmem>>, vector<1x16x16xf32>
      %252 = vector.broadcast %250 : f32 to vector<1x16x16xf32>
      %253 = arith.mulf %252, %251 : vector<1x16x16xf32>
      %254 = arith.addf %249, %253 : vector<1x16x16xf32>
      %c12_219 = arith.constant 12 : index
      %255 = memref.load %arg2[%c12_219] : memref<98xf32, #tpu.memory_space<smem>>
      %c0_220 = arith.constant 0 : index
      %c1_221 = arith.constant 1 : index
      %c5_222 = arith.constant 5 : index
      %256 = vector.load %arg7[%c0_220, %c1_221, %c5_222] : memref<1x22x22xf32, #tpu.memory_space<vmem>>, vector<1x16x16xf32>
      %257 = vector.broadcast %255 : f32 to vector<1x16x16xf32>
      %258 = arith.mulf %257, %256 : vector<1x16x16xf32>
      %259 = arith.addf %254, %258 : vector<1x16x16xf32>
      %c13_223 = arith.constant 13 : index
      %260 = memref.load %arg2[%c13_223] : memref<98xf32, #tpu.memory_space<smem>>
      %c0_224 = arith.constant 0 : index
      %c1_225 = arith.constant 1 : index
      %c6_226 = arith.constant 6 : index
      %261 = vector.load %arg7[%c0_224, %c1_225, %c6_226] : memref<1x22x22xf32, #tpu.memory_space<vmem>>, vector<1x16x16xf32>
      %262 = vector.broadcast %260 : f32 to vector<1x16x16xf32>
      %263 = arith.mulf %262, %261 : vector<1x16x16xf32>
      %264 = arith.addf %259, %263 : vector<1x16x16xf32>
      %c14_227 = arith.constant 14 : index
      %265 = memref.load %arg2[%c14_227] : memref<98xf32, #tpu.memory_space<smem>>
      %c0_228 = arith.constant 0 : index
      %c2_229 = arith.constant 2 : index
      %c0_230 = arith.constant 0 : index
      %266 = vector.load %arg7[%c0_228, %c2_229, %c0_230] : memref<1x22x22xf32, #tpu.memory_space<vmem>>, vector<1x16x16xf32>
      %267 = vector.broadcast %265 : f32 to vector<1x16x16xf32>
      %268 = arith.mulf %267, %266 : vector<1x16x16xf32>
      %269 = arith.addf %264, %268 : vector<1x16x16xf32>
      %c15_231 = arith.constant 15 : index
      %270 = memref.load %arg2[%c15_231] : memref<98xf32, #tpu.memory_space<smem>>
      %c0_232 = arith.constant 0 : index
      %c2_233 = arith.constant 2 : index
      %c1_234 = arith.constant 1 : index
      %271 = vector.load %arg7[%c0_232, %c2_233, %c1_234] : memref<1x22x22xf32, #tpu.memory_space<vmem>>, vector<1x16x16xf32>
      %272 = vector.broadcast %270 : f32 to vector<1x16x16xf32>
      %273 = arith.mulf %272, %271 : vector<1x16x16xf32>
      %274 = arith.addf %269, %273 : vector<1x16x16xf32>
      %c16_235 = arith.constant 16 : index
      %275 = memref.load %arg2[%c16_235] : memref<98xf32, #tpu.memory_space<smem>>
      %c0_236 = arith.constant 0 : index
      %c2_237 = arith.constant 2 : index
      %c2_238 = arith.constant 2 : index
      %276 = vector.load %arg7[%c0_236, %c2_237, %c2_238] : memref<1x22x22xf32, #tpu.memory_space<vmem>>, vector<1x16x16xf32>
      %277 = vector.broadcast %275 : f32 to vector<1x16x16xf32>
      %278 = arith.mulf %277, %276 : vector<1x16x16xf32>
      %279 = arith.addf %274, %278 : vector<1x16x16xf32>
      %c17_239 = arith.constant 17 : index
      %280 = memref.load %arg2[%c17_239] : memref<98xf32, #tpu.memory_space<smem>>
      %c0_240 = arith.constant 0 : index
      %c2_241 = arith.constant 2 : index
      %c3_242 = arith.constant 3 : index
      %281 = vector.load %arg7[%c0_240, %c2_241, %c3_242] : memref<1x22x22xf32, #tpu.memory_space<vmem>>, vector<1x16x16xf32>
      %282 = vector.broadcast %280 : f32 to vector<1x16x16xf32>
      %283 = arith.mulf %282, %281 : vector<1x16x16xf32>
      %284 = arith.addf %279, %283 : vector<1x16x16xf32>
      %c18_243 = arith.constant 18 : index
      %285 = memref.load %arg2[%c18_243] : memref<98xf32, #tpu.memory_space<smem>>
      %c0_244 = arith.constant 0 : index
      %c2_245 = arith.constant 2 : index
      %c4_246 = arith.constant 4 : index
      %286 = vector.load %arg7[%c0_244, %c2_245, %c4_246] : memref<1x22x22xf32, #tpu.memory_space<vmem>>, vector<1x16x16xf32>
      %287 = vector.broadcast %285 : f32 to vector<1x16x16xf32>
      %288 = arith.mulf %287, %286 : vector<1x16x16xf32>
      %289 = arith.addf %284, %288 : vector<1x16x16xf32>
      %c19 = arith.constant 19 : index
      %290 = memref.load %arg2[%c19] : memref<98xf32, #tpu.memory_space<smem>>
      %c0_247 = arith.constant 0 : index
      %c2_248 = arith.constant 2 : index
      %c5_249 = arith.constant 5 : index
      %291 = vector.load %arg7[%c0_247, %c2_248, %c5_249] : memref<1x22x22xf32, #tpu.memory_space<vmem>>, vector<1x16x16xf32>
      %292 = vector.broadcast %290 : f32 to vector<1x16x16xf32>
      %293 = arith.mulf %292, %291 : vector<1x16x16xf32>
      %294 = arith.addf %289, %293 : vector<1x16x16xf32>
      %c20 = arith.constant 20 : index
      %295 = memref.load %arg2[%c20] : memref<98xf32, #tpu.memory_space<smem>>
      %c0_250 = arith.constant 0 : index
      %c2_251 = arith.constant 2 : index
      %c6_252 = arith.constant 6 : index
      %296 = vector.load %arg7[%c0_250, %c2_251, %c6_252] : memref<1x22x22xf32, #tpu.memory_space<vmem>>, vector<1x16x16xf32>
      %297 = vector.broadcast %295 : f32 to vector<1x16x16xf32>
      %298 = arith.mulf %297, %296 : vector<1x16x16xf32>
      %299 = arith.addf %294, %298 : vector<1x16x16xf32>
      %c21 = arith.constant 21 : index
      %300 = memref.load %arg2[%c21] : memref<98xf32, #tpu.memory_space<smem>>
      %c0_253 = arith.constant 0 : index
      %c3_254 = arith.constant 3 : index
      %c0_255 = arith.constant 0 : index
      %301 = vector.load %arg7[%c0_253, %c3_254, %c0_255] : memref<1x22x22xf32, #tpu.memory_space<vmem>>, vector<1x16x16xf32>
      %302 = vector.broadcast %300 : f32 to vector<1x16x16xf32>
      %303 = arith.mulf %302, %301 : vector<1x16x16xf32>
      %304 = arith.addf %299, %303 : vector<1x16x16xf32>
      %c22 = arith.constant 22 : index
      %305 = memref.load %arg2[%c22] : memref<98xf32, #tpu.memory_space<smem>>
      %c0_256 = arith.constant 0 : index
      %c3_257 = arith.constant 3 : index
      %c1_258 = arith.constant 1 : index
      %306 = vector.load %arg7[%c0_256, %c3_257, %c1_258] : memref<1x22x22xf32, #tpu.memory_space<vmem>>, vector<1x16x16xf32>
      %307 = vector.broadcast %305 : f32 to vector<1x16x16xf32>
      %308 = arith.mulf %307, %306 : vector<1x16x16xf32>
      %309 = arith.addf %304, %308 : vector<1x16x16xf32>
      %c23 = arith.constant 23 : index
      %310 = memref.load %arg2[%c23] : memref<98xf32, #tpu.memory_space<smem>>
      %c0_259 = arith.constant 0 : index
      %c3_260 = arith.constant 3 : index
      %c2_261 = arith.constant 2 : index
      %311 = vector.load %arg7[%c0_259, %c3_260, %c2_261] : memref<1x22x22xf32, #tpu.memory_space<vmem>>, vector<1x16x16xf32>
      %312 = vector.broadcast %310 : f32 to vector<1x16x16xf32>
      %313 = arith.mulf %312, %311 : vector<1x16x16xf32>
      %314 = arith.addf %309, %313 : vector<1x16x16xf32>
      %c24 = arith.constant 24 : index
      %315 = memref.load %arg2[%c24] : memref<98xf32, #tpu.memory_space<smem>>
      %c0_262 = arith.constant 0 : index
      %c3_263 = arith.constant 3 : index
      %c3_264 = arith.constant 3 : index
      %316 = vector.load %arg7[%c0_262, %c3_263, %c3_264] : memref<1x22x22xf32, #tpu.memory_space<vmem>>, vector<1x16x16xf32>
      %317 = vector.broadcast %315 : f32 to vector<1x16x16xf32>
      %318 = arith.mulf %317, %316 : vector<1x16x16xf32>
      %319 = arith.addf %314, %318 : vector<1x16x16xf32>
      %c25 = arith.constant 25 : index
      %320 = memref.load %arg2[%c25] : memref<98xf32, #tpu.memory_space<smem>>
      %c0_265 = arith.constant 0 : index
      %c3_266 = arith.constant 3 : index
      %c4_267 = arith.constant 4 : index
      %321 = vector.load %arg7[%c0_265, %c3_266, %c4_267] : memref<1x22x22xf32, #tpu.memory_space<vmem>>, vector<1x16x16xf32>
      %322 = vector.broadcast %320 : f32 to vector<1x16x16xf32>
      %323 = arith.mulf %322, %321 : vector<1x16x16xf32>
      %324 = arith.addf %319, %323 : vector<1x16x16xf32>
      %c26 = arith.constant 26 : index
      %325 = memref.load %arg2[%c26] : memref<98xf32, #tpu.memory_space<smem>>
      %c0_268 = arith.constant 0 : index
      %c3_269 = arith.constant 3 : index
      %c5_270 = arith.constant 5 : index
      %326 = vector.load %arg7[%c0_268, %c3_269, %c5_270] : memref<1x22x22xf32, #tpu.memory_space<vmem>>, vector<1x16x16xf32>
      %327 = vector.broadcast %325 : f32 to vector<1x16x16xf32>
      %328 = arith.mulf %327, %326 : vector<1x16x16xf32>
      %329 = arith.addf %324, %328 : vector<1x16x16xf32>
      %c27 = arith.constant 27 : index
      %330 = memref.load %arg2[%c27] : memref<98xf32, #tpu.memory_space<smem>>
      %c0_271 = arith.constant 0 : index
      %c3_272 = arith.constant 3 : index
      %c6_273 = arith.constant 6 : index
      %331 = vector.load %arg7[%c0_271, %c3_272, %c6_273] : memref<1x22x22xf32, #tpu.memory_space<vmem>>, vector<1x16x16xf32>
      %332 = vector.broadcast %330 : f32 to vector<1x16x16xf32>
      %333 = arith.mulf %332, %331 : vector<1x16x16xf32>
      %334 = arith.addf %329, %333 : vector<1x16x16xf32>
      %c28 = arith.constant 28 : index
      %335 = memref.load %arg2[%c28] : memref<98xf32, #tpu.memory_space<smem>>
      %c0_274 = arith.constant 0 : index
      %c4_275 = arith.constant 4 : index
      %c0_276 = arith.constant 0 : index
      %336 = vector.load %arg7[%c0_274, %c4_275, %c0_276] : memref<1x22x22xf32, #tpu.memory_space<vmem>>, vector<1x16x16xf32>
      %337 = vector.broadcast %335 : f32 to vector<1x16x16xf32>
      %338 = arith.mulf %337, %336 : vector<1x16x16xf32>
      %339 = arith.addf %334, %338 : vector<1x16x16xf32>
      %c29 = arith.constant 29 : index
      %340 = memref.load %arg2[%c29] : memref<98xf32, #tpu.memory_space<smem>>
      %c0_277 = arith.constant 0 : index
      %c4_278 = arith.constant 4 : index
      %c1_279 = arith.constant 1 : index
      %341 = vector.load %arg7[%c0_277, %c4_278, %c1_279] : memref<1x22x22xf32, #tpu.memory_space<vmem>>, vector<1x16x16xf32>
      %342 = vector.broadcast %340 : f32 to vector<1x16x16xf32>
      %343 = arith.mulf %342, %341 : vector<1x16x16xf32>
      %344 = arith.addf %339, %343 : vector<1x16x16xf32>
      %c30 = arith.constant 30 : index
      %345 = memref.load %arg2[%c30] : memref<98xf32, #tpu.memory_space<smem>>
      %c0_280 = arith.constant 0 : index
      %c4_281 = arith.constant 4 : index
      %c2_282 = arith.constant 2 : index
      %346 = vector.load %arg7[%c0_280, %c4_281, %c2_282] : memref<1x22x22xf32, #tpu.memory_space<vmem>>, vector<1x16x16xf32>
      %347 = vector.broadcast %345 : f32 to vector<1x16x16xf32>
      %348 = arith.mulf %347, %346 : vector<1x16x16xf32>
      %349 = arith.addf %344, %348 : vector<1x16x16xf32>
      %c31 = arith.constant 31 : index
      %350 = memref.load %arg2[%c31] : memref<98xf32, #tpu.memory_space<smem>>
      %c0_283 = arith.constant 0 : index
      %c4_284 = arith.constant 4 : index
      %c3_285 = arith.constant 3 : index
      %351 = vector.load %arg7[%c0_283, %c4_284, %c3_285] : memref<1x22x22xf32, #tpu.memory_space<vmem>>, vector<1x16x16xf32>
      %352 = vector.broadcast %350 : f32 to vector<1x16x16xf32>
      %353 = arith.mulf %352, %351 : vector<1x16x16xf32>
      %354 = arith.addf %349, %353 : vector<1x16x16xf32>
      %c32_286 = arith.constant 32 : index
      %355 = memref.load %arg2[%c32_286] : memref<98xf32, #tpu.memory_space<smem>>
      %c0_287 = arith.constant 0 : index
      %c4_288 = arith.constant 4 : index
      %c4_289 = arith.constant 4 : index
      %356 = vector.load %arg7[%c0_287, %c4_288, %c4_289] : memref<1x22x22xf32, #tpu.memory_space<vmem>>, vector<1x16x16xf32>
      %357 = vector.broadcast %355 : f32 to vector<1x16x16xf32>
      %358 = arith.mulf %357, %356 : vector<1x16x16xf32>
      %359 = arith.addf %354, %358 : vector<1x16x16xf32>
      %c33 = arith.constant 33 : index
      %360 = memref.load %arg2[%c33] : memref<98xf32, #tpu.memory_space<smem>>
      %c0_290 = arith.constant 0 : index
      %c4_291 = arith.constant 4 : index
      %c5_292 = arith.constant 5 : index
      %361 = vector.load %arg7[%c0_290, %c4_291, %c5_292] : memref<1x22x22xf32, #tpu.memory_space<vmem>>, vector<1x16x16xf32>
      %362 = vector.broadcast %360 : f32 to vector<1x16x16xf32>
      %363 = arith.mulf %362, %361 : vector<1x16x16xf32>
      %364 = arith.addf %359, %363 : vector<1x16x16xf32>
      %c34 = arith.constant 34 : index
      %365 = memref.load %arg2[%c34] : memref<98xf32, #tpu.memory_space<smem>>
      %c0_293 = arith.constant 0 : index
      %c4_294 = arith.constant 4 : index
      %c6_295 = arith.constant 6 : index
      %366 = vector.load %arg7[%c0_293, %c4_294, %c6_295] : memref<1x22x22xf32, #tpu.memory_space<vmem>>, vector<1x16x16xf32>
      %367 = vector.broadcast %365 : f32 to vector<1x16x16xf32>
      %368 = arith.mulf %367, %366 : vector<1x16x16xf32>
      %369 = arith.addf %364, %368 : vector<1x16x16xf32>
      %c35 = arith.constant 35 : index
      %370 = memref.load %arg2[%c35] : memref<98xf32, #tpu.memory_space<smem>>
      %c0_296 = arith.constant 0 : index
      %c5_297 = arith.constant 5 : index
      %c0_298 = arith.constant 0 : index
      %371 = vector.load %arg7[%c0_296, %c5_297, %c0_298] : memref<1x22x22xf32, #tpu.memory_space<vmem>>, vector<1x16x16xf32>
      %372 = vector.broadcast %370 : f32 to vector<1x16x16xf32>
      %373 = arith.mulf %372, %371 : vector<1x16x16xf32>
      %374 = arith.addf %369, %373 : vector<1x16x16xf32>
      %c36 = arith.constant 36 : index
      %375 = memref.load %arg2[%c36] : memref<98xf32, #tpu.memory_space<smem>>
      %c0_299 = arith.constant 0 : index
      %c5_300 = arith.constant 5 : index
      %c1_301 = arith.constant 1 : index
      %376 = vector.load %arg7[%c0_299, %c5_300, %c1_301] : memref<1x22x22xf32, #tpu.memory_space<vmem>>, vector<1x16x16xf32>
      %377 = vector.broadcast %375 : f32 to vector<1x16x16xf32>
      %378 = arith.mulf %377, %376 : vector<1x16x16xf32>
      %379 = arith.addf %374, %378 : vector<1x16x16xf32>
      %c37 = arith.constant 37 : index
      %380 = memref.load %arg2[%c37] : memref<98xf32, #tpu.memory_space<smem>>
      %c0_302 = arith.constant 0 : index
      %c5_303 = arith.constant 5 : index
      %c2_304 = arith.constant 2 : index
      %381 = vector.load %arg7[%c0_302, %c5_303, %c2_304] : memref<1x22x22xf32, #tpu.memory_space<vmem>>, vector<1x16x16xf32>
      %382 = vector.broadcast %380 : f32 to vector<1x16x16xf32>
      %383 = arith.mulf %382, %381 : vector<1x16x16xf32>
      %384 = arith.addf %379, %383 : vector<1x16x16xf32>
      %c38 = arith.constant 38 : index
      %385 = memref.load %arg2[%c38] : memref<98xf32, #tpu.memory_space<smem>>
      %c0_305 = arith.constant 0 : index
      %c5_306 = arith.constant 5 : index
      %c3_307 = arith.constant 3 : index
      %386 = vector.load %arg7[%c0_305, %c5_306, %c3_307] : memref<1x22x22xf32, #tpu.memory_space<vmem>>, vector<1x16x16xf32>
      %387 = vector.broadcast %385 : f32 to vector<1x16x16xf32>
      %388 = arith.mulf %387, %386 : vector<1x16x16xf32>
      %389 = arith.addf %384, %388 : vector<1x16x16xf32>
      %c39 = arith.constant 39 : index
      %390 = memref.load %arg2[%c39] : memref<98xf32, #tpu.memory_space<smem>>
      %c0_308 = arith.constant 0 : index
      %c5_309 = arith.constant 5 : index
      %c4_310 = arith.constant 4 : index
      %391 = vector.load %arg7[%c0_308, %c5_309, %c4_310] : memref<1x22x22xf32, #tpu.memory_space<vmem>>, vector<1x16x16xf32>
      %392 = vector.broadcast %390 : f32 to vector<1x16x16xf32>
      %393 = arith.mulf %392, %391 : vector<1x16x16xf32>
      %394 = arith.addf %389, %393 : vector<1x16x16xf32>
      %c40 = arith.constant 40 : index
      %395 = memref.load %arg2[%c40] : memref<98xf32, #tpu.memory_space<smem>>
      %c0_311 = arith.constant 0 : index
      %c5_312 = arith.constant 5 : index
      %c5_313 = arith.constant 5 : index
      %396 = vector.load %arg7[%c0_311, %c5_312, %c5_313] : memref<1x22x22xf32, #tpu.memory_space<vmem>>, vector<1x16x16xf32>
      %397 = vector.broadcast %395 : f32 to vector<1x16x16xf32>
      %398 = arith.mulf %397, %396 : vector<1x16x16xf32>
      %399 = arith.addf %394, %398 : vector<1x16x16xf32>
      %c41 = arith.constant 41 : index
      %400 = memref.load %arg2[%c41] : memref<98xf32, #tpu.memory_space<smem>>
      %c0_314 = arith.constant 0 : index
      %c5_315 = arith.constant 5 : index
      %c6_316 = arith.constant 6 : index
      %401 = vector.load %arg7[%c0_314, %c5_315, %c6_316] : memref<1x22x22xf32, #tpu.memory_space<vmem>>, vector<1x16x16xf32>
      %402 = vector.broadcast %400 : f32 to vector<1x16x16xf32>
      %403 = arith.mulf %402, %401 : vector<1x16x16xf32>
      %404 = arith.addf %399, %403 : vector<1x16x16xf32>
      %c42 = arith.constant 42 : index
      %405 = memref.load %arg2[%c42] : memref<98xf32, #tpu.memory_space<smem>>
      %c0_317 = arith.constant 0 : index
      %c6_318 = arith.constant 6 : index
      %c0_319 = arith.constant 0 : index
      %406 = vector.load %arg7[%c0_317, %c6_318, %c0_319] : memref<1x22x22xf32, #tpu.memory_space<vmem>>, vector<1x16x16xf32>
      %407 = vector.broadcast %405 : f32 to vector<1x16x16xf32>
      %408 = arith.mulf %407, %406 : vector<1x16x16xf32>
      %409 = arith.addf %404, %408 : vector<1x16x16xf32>
      %c43 = arith.constant 43 : index
      %410 = memref.load %arg2[%c43] : memref<98xf32, #tpu.memory_space<smem>>
      %c0_320 = arith.constant 0 : index
      %c6_321 = arith.constant 6 : index
      %c1_322 = arith.constant 1 : index
      %411 = vector.load %arg7[%c0_320, %c6_321, %c1_322] : memref<1x22x22xf32, #tpu.memory_space<vmem>>, vector<1x16x16xf32>
      %412 = vector.broadcast %410 : f32 to vector<1x16x16xf32>
      %413 = arith.mulf %412, %411 : vector<1x16x16xf32>
      %414 = arith.addf %409, %413 : vector<1x16x16xf32>
      %c44 = arith.constant 44 : index
      %415 = memref.load %arg2[%c44] : memref<98xf32, #tpu.memory_space<smem>>
      %c0_323 = arith.constant 0 : index
      %c6_324 = arith.constant 6 : index
      %c2_325 = arith.constant 2 : index
      %416 = vector.load %arg7[%c0_323, %c6_324, %c2_325] : memref<1x22x22xf32, #tpu.memory_space<vmem>>, vector<1x16x16xf32>
      %417 = vector.broadcast %415 : f32 to vector<1x16x16xf32>
      %418 = arith.mulf %417, %416 : vector<1x16x16xf32>
      %419 = arith.addf %414, %418 : vector<1x16x16xf32>
      %c45 = arith.constant 45 : index
      %420 = memref.load %arg2[%c45] : memref<98xf32, #tpu.memory_space<smem>>
      %c0_326 = arith.constant 0 : index
      %c6_327 = arith.constant 6 : index
      %c3_328 = arith.constant 3 : index
      %421 = vector.load %arg7[%c0_326, %c6_327, %c3_328] : memref<1x22x22xf32, #tpu.memory_space<vmem>>, vector<1x16x16xf32>
      %422 = vector.broadcast %420 : f32 to vector<1x16x16xf32>
      %423 = arith.mulf %422, %421 : vector<1x16x16xf32>
      %424 = arith.addf %419, %423 : vector<1x16x16xf32>
      %c46 = arith.constant 46 : index
      %425 = memref.load %arg2[%c46] : memref<98xf32, #tpu.memory_space<smem>>
      %c0_329 = arith.constant 0 : index
      %c6_330 = arith.constant 6 : index
      %c4_331 = arith.constant 4 : index
      %426 = vector.load %arg7[%c0_329, %c6_330, %c4_331] : memref<1x22x22xf32, #tpu.memory_space<vmem>>, vector<1x16x16xf32>
      %427 = vector.broadcast %425 : f32 to vector<1x16x16xf32>
      %428 = arith.mulf %427, %426 : vector<1x16x16xf32>
      %429 = arith.addf %424, %428 : vector<1x16x16xf32>
      %c47 = arith.constant 47 : index
      %430 = memref.load %arg2[%c47] : memref<98xf32, #tpu.memory_space<smem>>
      %c0_332 = arith.constant 0 : index
      %c6_333 = arith.constant 6 : index
      %c5_334 = arith.constant 5 : index
      %431 = vector.load %arg7[%c0_332, %c6_333, %c5_334] : memref<1x22x22xf32, #tpu.memory_space<vmem>>, vector<1x16x16xf32>
      %432 = vector.broadcast %430 : f32 to vector<1x16x16xf32>
      %433 = arith.mulf %432, %431 : vector<1x16x16xf32>
      %434 = arith.addf %429, %433 : vector<1x16x16xf32>
      %c48_335 = arith.constant 48 : index
      %435 = memref.load %arg2[%c48_335] : memref<98xf32, #tpu.memory_space<smem>>
      %c0_336 = arith.constant 0 : index
      %c6_337 = arith.constant 6 : index
      %c6_338 = arith.constant 6 : index
      %436 = vector.load %arg7[%c0_336, %c6_337, %c6_338] : memref<1x22x22xf32, #tpu.memory_space<vmem>>, vector<1x16x16xf32>
      %437 = vector.broadcast %435 : f32 to vector<1x16x16xf32>
      %438 = arith.mulf %437, %436 : vector<1x16x16xf32>
      %439 = arith.addf %434, %438 : vector<1x16x16xf32>
      %c49 = arith.constant 49 : index
      %440 = memref.load %arg2[%c49] : memref<98xf32, #tpu.memory_space<smem>>
      %c0_339 = arith.constant 0 : index
      %c0_340 = arith.constant 0 : index
      %c0_341 = arith.constant 0 : index
      %441 = vector.load %arg8[%c0_339, %c0_340, %c0_341] : memref<1x22x22xf32, #tpu.memory_space<vmem>>, vector<1x16x16xf32>
      %442 = vector.broadcast %440 : f32 to vector<1x16x16xf32>
      %443 = arith.mulf %442, %441 : vector<1x16x16xf32>
      %444 = arith.addf %439, %443 : vector<1x16x16xf32>
      %c50 = arith.constant 50 : index
      %445 = memref.load %arg2[%c50] : memref<98xf32, #tpu.memory_space<smem>>
      %c0_342 = arith.constant 0 : index
      %c0_343 = arith.constant 0 : index
      %c1_344 = arith.constant 1 : index
      %446 = vector.load %arg8[%c0_342, %c0_343, %c1_344] : memref<1x22x22xf32, #tpu.memory_space<vmem>>, vector<1x16x16xf32>
      %447 = vector.broadcast %445 : f32 to vector<1x16x16xf32>
      %448 = arith.mulf %447, %446 : vector<1x16x16xf32>
      %449 = arith.addf %444, %448 : vector<1x16x16xf32>
      %c51 = arith.constant 51 : index
      %450 = memref.load %arg2[%c51] : memref<98xf32, #tpu.memory_space<smem>>
      %c0_345 = arith.constant 0 : index
      %c0_346 = arith.constant 0 : index
      %c2_347 = arith.constant 2 : index
      %451 = vector.load %arg8[%c0_345, %c0_346, %c2_347] : memref<1x22x22xf32, #tpu.memory_space<vmem>>, vector<1x16x16xf32>
      %452 = vector.broadcast %450 : f32 to vector<1x16x16xf32>
      %453 = arith.mulf %452, %451 : vector<1x16x16xf32>
      %454 = arith.addf %449, %453 : vector<1x16x16xf32>
      %c52 = arith.constant 52 : index
      %455 = memref.load %arg2[%c52] : memref<98xf32, #tpu.memory_space<smem>>
      %c0_348 = arith.constant 0 : index
      %c0_349 = arith.constant 0 : index
      %c3_350 = arith.constant 3 : index
      %456 = vector.load %arg8[%c0_348, %c0_349, %c3_350] : memref<1x22x22xf32, #tpu.memory_space<vmem>>, vector<1x16x16xf32>
      %457 = vector.broadcast %455 : f32 to vector<1x16x16xf32>
      %458 = arith.mulf %457, %456 : vector<1x16x16xf32>
      %459 = arith.addf %454, %458 : vector<1x16x16xf32>
      %c53 = arith.constant 53 : index
      %460 = memref.load %arg2[%c53] : memref<98xf32, #tpu.memory_space<smem>>
      %c0_351 = arith.constant 0 : index
      %c0_352 = arith.constant 0 : index
      %c4_353 = arith.constant 4 : index
      %461 = vector.load %arg8[%c0_351, %c0_352, %c4_353] : memref<1x22x22xf32, #tpu.memory_space<vmem>>, vector<1x16x16xf32>
      %462 = vector.broadcast %460 : f32 to vector<1x16x16xf32>
      %463 = arith.mulf %462, %461 : vector<1x16x16xf32>
      %464 = arith.addf %459, %463 : vector<1x16x16xf32>
      %c54 = arith.constant 54 : index
      %465 = memref.load %arg2[%c54] : memref<98xf32, #tpu.memory_space<smem>>
      %c0_354 = arith.constant 0 : index
      %c0_355 = arith.constant 0 : index
      %c5_356 = arith.constant 5 : index
      %466 = vector.load %arg8[%c0_354, %c0_355, %c5_356] : memref<1x22x22xf32, #tpu.memory_space<vmem>>, vector<1x16x16xf32>
      %467 = vector.broadcast %465 : f32 to vector<1x16x16xf32>
      %468 = arith.mulf %467, %466 : vector<1x16x16xf32>
      %469 = arith.addf %464, %468 : vector<1x16x16xf32>
      %c55 = arith.constant 55 : index
      %470 = memref.load %arg2[%c55] : memref<98xf32, #tpu.memory_space<smem>>
      %c0_357 = arith.constant 0 : index
      %c0_358 = arith.constant 0 : index
      %c6_359 = arith.constant 6 : index
      %471 = vector.load %arg8[%c0_357, %c0_358, %c6_359] : memref<1x22x22xf32, #tpu.memory_space<vmem>>, vector<1x16x16xf32>
      %472 = vector.broadcast %470 : f32 to vector<1x16x16xf32>
      %473 = arith.mulf %472, %471 : vector<1x16x16xf32>
      %474 = arith.addf %469, %473 : vector<1x16x16xf32>
      %c56 = arith.constant 56 : index
      %475 = memref.load %arg2[%c56] : memref<98xf32, #tpu.memory_space<smem>>
      %c0_360 = arith.constant 0 : index
      %c1_361 = arith.constant 1 : index
      %c0_362 = arith.constant 0 : index
      %476 = vector.load %arg8[%c0_360, %c1_361, %c0_362] : memref<1x22x22xf32, #tpu.memory_space<vmem>>, vector<1x16x16xf32>
      %477 = vector.broadcast %475 : f32 to vector<1x16x16xf32>
      %478 = arith.mulf %477, %476 : vector<1x16x16xf32>
      %479 = arith.addf %474, %478 : vector<1x16x16xf32>
      %c57 = arith.constant 57 : index
      %480 = memref.load %arg2[%c57] : memref<98xf32, #tpu.memory_space<smem>>
      %c0_363 = arith.constant 0 : index
      %c1_364 = arith.constant 1 : index
      %c1_365 = arith.constant 1 : index
      %481 = vector.load %arg8[%c0_363, %c1_364, %c1_365] : memref<1x22x22xf32, #tpu.memory_space<vmem>>, vector<1x16x16xf32>
      %482 = vector.broadcast %480 : f32 to vector<1x16x16xf32>
      %483 = arith.mulf %482, %481 : vector<1x16x16xf32>
      %484 = arith.addf %479, %483 : vector<1x16x16xf32>
      %c58 = arith.constant 58 : index
      %485 = memref.load %arg2[%c58] : memref<98xf32, #tpu.memory_space<smem>>
      %c0_366 = arith.constant 0 : index
      %c1_367 = arith.constant 1 : index
      %c2_368 = arith.constant 2 : index
      %486 = vector.load %arg8[%c0_366, %c1_367, %c2_368] : memref<1x22x22xf32, #tpu.memory_space<vmem>>, vector<1x16x16xf32>
      %487 = vector.broadcast %485 : f32 to vector<1x16x16xf32>
      %488 = arith.mulf %487, %486 : vector<1x16x16xf32>
      %489 = arith.addf %484, %488 : vector<1x16x16xf32>
      %c59 = arith.constant 59 : index
      %490 = memref.load %arg2[%c59] : memref<98xf32, #tpu.memory_space<smem>>
      %c0_369 = arith.constant 0 : index
      %c1_370 = arith.constant 1 : index
      %c3_371 = arith.constant 3 : index
      %491 = vector.load %arg8[%c0_369, %c1_370, %c3_371] : memref<1x22x22xf32, #tpu.memory_space<vmem>>, vector<1x16x16xf32>
      %492 = vector.broadcast %490 : f32 to vector<1x16x16xf32>
      %493 = arith.mulf %492, %491 : vector<1x16x16xf32>
      %494 = arith.addf %489, %493 : vector<1x16x16xf32>
      %c60 = arith.constant 60 : index
      %495 = memref.load %arg2[%c60] : memref<98xf32, #tpu.memory_space<smem>>
      %c0_372 = arith.constant 0 : index
      %c1_373 = arith.constant 1 : index
      %c4_374 = arith.constant 4 : index
      %496 = vector.load %arg8[%c0_372, %c1_373, %c4_374] : memref<1x22x22xf32, #tpu.memory_space<vmem>>, vector<1x16x16xf32>
      %497 = vector.broadcast %495 : f32 to vector<1x16x16xf32>
      %498 = arith.mulf %497, %496 : vector<1x16x16xf32>
      %499 = arith.addf %494, %498 : vector<1x16x16xf32>
      %c61 = arith.constant 61 : index
      %500 = memref.load %arg2[%c61] : memref<98xf32, #tpu.memory_space<smem>>
      %c0_375 = arith.constant 0 : index
      %c1_376 = arith.constant 1 : index
      %c5_377 = arith.constant 5 : index
      %501 = vector.load %arg8[%c0_375, %c1_376, %c5_377] : memref<1x22x22xf32, #tpu.memory_space<vmem>>, vector<1x16x16xf32>
      %502 = vector.broadcast %500 : f32 to vector<1x16x16xf32>
      %503 = arith.mulf %502, %501 : vector<1x16x16xf32>
      %504 = arith.addf %499, %503 : vector<1x16x16xf32>
      %c62 = arith.constant 62 : index
      %505 = memref.load %arg2[%c62] : memref<98xf32, #tpu.memory_space<smem>>
      %c0_378 = arith.constant 0 : index
      %c1_379 = arith.constant 1 : index
      %c6_380 = arith.constant 6 : index
      %506 = vector.load %arg8[%c0_378, %c1_379, %c6_380] : memref<1x22x22xf32, #tpu.memory_space<vmem>>, vector<1x16x16xf32>
      %507 = vector.broadcast %505 : f32 to vector<1x16x16xf32>
      %508 = arith.mulf %507, %506 : vector<1x16x16xf32>
      %509 = arith.addf %504, %508 : vector<1x16x16xf32>
      %c63 = arith.constant 63 : index
      %510 = memref.load %arg2[%c63] : memref<98xf32, #tpu.memory_space<smem>>
      %c0_381 = arith.constant 0 : index
      %c2_382 = arith.constant 2 : index
      %c0_383 = arith.constant 0 : index
      %511 = vector.load %arg8[%c0_381, %c2_382, %c0_383] : memref<1x22x22xf32, #tpu.memory_space<vmem>>, vector<1x16x16xf32>
      %512 = vector.broadcast %510 : f32 to vector<1x16x16xf32>
      %513 = arith.mulf %512, %511 : vector<1x16x16xf32>
      %514 = arith.addf %509, %513 : vector<1x16x16xf32>
      %c64_384 = arith.constant 64 : index
      %515 = memref.load %arg2[%c64_384] : memref<98xf32, #tpu.memory_space<smem>>
      %c0_385 = arith.constant 0 : index
      %c2_386 = arith.constant 2 : index
      %c1_387 = arith.constant 1 : index
      %516 = vector.load %arg8[%c0_385, %c2_386, %c1_387] : memref<1x22x22xf32, #tpu.memory_space<vmem>>, vector<1x16x16xf32>
      %517 = vector.broadcast %515 : f32 to vector<1x16x16xf32>
      %518 = arith.mulf %517, %516 : vector<1x16x16xf32>
      %519 = arith.addf %514, %518 : vector<1x16x16xf32>
      %c65 = arith.constant 65 : index
      %520 = memref.load %arg2[%c65] : memref<98xf32, #tpu.memory_space<smem>>
      %c0_388 = arith.constant 0 : index
      %c2_389 = arith.constant 2 : index
      %c2_390 = arith.constant 2 : index
      %521 = vector.load %arg8[%c0_388, %c2_389, %c2_390] : memref<1x22x22xf32, #tpu.memory_space<vmem>>, vector<1x16x16xf32>
      %522 = vector.broadcast %520 : f32 to vector<1x16x16xf32>
      %523 = arith.mulf %522, %521 : vector<1x16x16xf32>
      %524 = arith.addf %519, %523 : vector<1x16x16xf32>
      %c66 = arith.constant 66 : index
      %525 = memref.load %arg2[%c66] : memref<98xf32, #tpu.memory_space<smem>>
      %c0_391 = arith.constant 0 : index
      %c2_392 = arith.constant 2 : index
      %c3_393 = arith.constant 3 : index
      %526 = vector.load %arg8[%c0_391, %c2_392, %c3_393] : memref<1x22x22xf32, #tpu.memory_space<vmem>>, vector<1x16x16xf32>
      %527 = vector.broadcast %525 : f32 to vector<1x16x16xf32>
      %528 = arith.mulf %527, %526 : vector<1x16x16xf32>
      %529 = arith.addf %524, %528 : vector<1x16x16xf32>
      %c67 = arith.constant 67 : index
      %530 = memref.load %arg2[%c67] : memref<98xf32, #tpu.memory_space<smem>>
      %c0_394 = arith.constant 0 : index
      %c2_395 = arith.constant 2 : index
      %c4_396 = arith.constant 4 : index
      %531 = vector.load %arg8[%c0_394, %c2_395, %c4_396] : memref<1x22x22xf32, #tpu.memory_space<vmem>>, vector<1x16x16xf32>
      %532 = vector.broadcast %530 : f32 to vector<1x16x16xf32>
      %533 = arith.mulf %532, %531 : vector<1x16x16xf32>
      %534 = arith.addf %529, %533 : vector<1x16x16xf32>
      %c68 = arith.constant 68 : index
      %535 = memref.load %arg2[%c68] : memref<98xf32, #tpu.memory_space<smem>>
      %c0_397 = arith.constant 0 : index
      %c2_398 = arith.constant 2 : index
      %c5_399 = arith.constant 5 : index
      %536 = vector.load %arg8[%c0_397, %c2_398, %c5_399] : memref<1x22x22xf32, #tpu.memory_space<vmem>>, vector<1x16x16xf32>
      %537 = vector.broadcast %535 : f32 to vector<1x16x16xf32>
      %538 = arith.mulf %537, %536 : vector<1x16x16xf32>
      %539 = arith.addf %534, %538 : vector<1x16x16xf32>
      %c69 = arith.constant 69 : index
      %540 = memref.load %arg2[%c69] : memref<98xf32, #tpu.memory_space<smem>>
      %c0_400 = arith.constant 0 : index
      %c2_401 = arith.constant 2 : index
      %c6_402 = arith.constant 6 : index
      %541 = vector.load %arg8[%c0_400, %c2_401, %c6_402] : memref<1x22x22xf32, #tpu.memory_space<vmem>>, vector<1x16x16xf32>
      %542 = vector.broadcast %540 : f32 to vector<1x16x16xf32>
      %543 = arith.mulf %542, %541 : vector<1x16x16xf32>
      %544 = arith.addf %539, %543 : vector<1x16x16xf32>
      %c70 = arith.constant 70 : index
      %545 = memref.load %arg2[%c70] : memref<98xf32, #tpu.memory_space<smem>>
      %c0_403 = arith.constant 0 : index
      %c3_404 = arith.constant 3 : index
      %c0_405 = arith.constant 0 : index
      %546 = vector.load %arg8[%c0_403, %c3_404, %c0_405] : memref<1x22x22xf32, #tpu.memory_space<vmem>>, vector<1x16x16xf32>
      %547 = vector.broadcast %545 : f32 to vector<1x16x16xf32>
      %548 = arith.mulf %547, %546 : vector<1x16x16xf32>
      %549 = arith.addf %544, %548 : vector<1x16x16xf32>
      %c71 = arith.constant 71 : index
      %550 = memref.load %arg2[%c71] : memref<98xf32, #tpu.memory_space<smem>>
      %c0_406 = arith.constant 0 : index
      %c3_407 = arith.constant 3 : index
      %c1_408 = arith.constant 1 : index
      %551 = vector.load %arg8[%c0_406, %c3_407, %c1_408] : memref<1x22x22xf32, #tpu.memory_space<vmem>>, vector<1x16x16xf32>
      %552 = vector.broadcast %550 : f32 to vector<1x16x16xf32>
      %553 = arith.mulf %552, %551 : vector<1x16x16xf32>
      %554 = arith.addf %549, %553 : vector<1x16x16xf32>
      %c72 = arith.constant 72 : index
      %555 = memref.load %arg2[%c72] : memref<98xf32, #tpu.memory_space<smem>>
      %c0_409 = arith.constant 0 : index
      %c3_410 = arith.constant 3 : index
      %c2_411 = arith.constant 2 : index
      %556 = vector.load %arg8[%c0_409, %c3_410, %c2_411] : memref<1x22x22xf32, #tpu.memory_space<vmem>>, vector<1x16x16xf32>
      %557 = vector.broadcast %555 : f32 to vector<1x16x16xf32>
      %558 = arith.mulf %557, %556 : vector<1x16x16xf32>
      %559 = arith.addf %554, %558 : vector<1x16x16xf32>
      %c73 = arith.constant 73 : index
      %560 = memref.load %arg2[%c73] : memref<98xf32, #tpu.memory_space<smem>>
      %c0_412 = arith.constant 0 : index
      %c3_413 = arith.constant 3 : index
      %c3_414 = arith.constant 3 : index
      %561 = vector.load %arg8[%c0_412, %c3_413, %c3_414] : memref<1x22x22xf32, #tpu.memory_space<vmem>>, vector<1x16x16xf32>
      %562 = vector.broadcast %560 : f32 to vector<1x16x16xf32>
      %563 = arith.mulf %562, %561 : vector<1x16x16xf32>
      %564 = arith.addf %559, %563 : vector<1x16x16xf32>
      %c74 = arith.constant 74 : index
      %565 = memref.load %arg2[%c74] : memref<98xf32, #tpu.memory_space<smem>>
      %c0_415 = arith.constant 0 : index
      %c3_416 = arith.constant 3 : index
      %c4_417 = arith.constant 4 : index
      %566 = vector.load %arg8[%c0_415, %c3_416, %c4_417] : memref<1x22x22xf32, #tpu.memory_space<vmem>>, vector<1x16x16xf32>
      %567 = vector.broadcast %565 : f32 to vector<1x16x16xf32>
      %568 = arith.mulf %567, %566 : vector<1x16x16xf32>
      %569 = arith.addf %564, %568 : vector<1x16x16xf32>
      %c75 = arith.constant 75 : index
      %570 = memref.load %arg2[%c75] : memref<98xf32, #tpu.memory_space<smem>>
      %c0_418 = arith.constant 0 : index
      %c3_419 = arith.constant 3 : index
      %c5_420 = arith.constant 5 : index
      %571 = vector.load %arg8[%c0_418, %c3_419, %c5_420] : memref<1x22x22xf32, #tpu.memory_space<vmem>>, vector<1x16x16xf32>
      %572 = vector.broadcast %570 : f32 to vector<1x16x16xf32>
      %573 = arith.mulf %572, %571 : vector<1x16x16xf32>
      %574 = arith.addf %569, %573 : vector<1x16x16xf32>
      %c76 = arith.constant 76 : index
      %575 = memref.load %arg2[%c76] : memref<98xf32, #tpu.memory_space<smem>>
      %c0_421 = arith.constant 0 : index
      %c3_422 = arith.constant 3 : index
      %c6_423 = arith.constant 6 : index
      %576 = vector.load %arg8[%c0_421, %c3_422, %c6_423] : memref<1x22x22xf32, #tpu.memory_space<vmem>>, vector<1x16x16xf32>
      %577 = vector.broadcast %575 : f32 to vector<1x16x16xf32>
      %578 = arith.mulf %577, %576 : vector<1x16x16xf32>
      %579 = arith.addf %574, %578 : vector<1x16x16xf32>
      %c77 = arith.constant 77 : index
      %580 = memref.load %arg2[%c77] : memref<98xf32, #tpu.memory_space<smem>>
      %c0_424 = arith.constant 0 : index
      %c4_425 = arith.constant 4 : index
      %c0_426 = arith.constant 0 : index
      %581 = vector.load %arg8[%c0_424, %c4_425, %c0_426] : memref<1x22x22xf32, #tpu.memory_space<vmem>>, vector<1x16x16xf32>
      %582 = vector.broadcast %580 : f32 to vector<1x16x16xf32>
      %583 = arith.mulf %582, %581 : vector<1x16x16xf32>
      %584 = arith.addf %579, %583 : vector<1x16x16xf32>
      %c78 = arith.constant 78 : index
      %585 = memref.load %arg2[%c78] : memref<98xf32, #tpu.memory_space<smem>>
      %c0_427 = arith.constant 0 : index
      %c4_428 = arith.constant 4 : index
      %c1_429 = arith.constant 1 : index
      %586 = vector.load %arg8[%c0_427, %c4_428, %c1_429] : memref<1x22x22xf32, #tpu.memory_space<vmem>>, vector<1x16x16xf32>
      %587 = vector.broadcast %585 : f32 to vector<1x16x16xf32>
      %588 = arith.mulf %587, %586 : vector<1x16x16xf32>
      %589 = arith.addf %584, %588 : vector<1x16x16xf32>
      %c79 = arith.constant 79 : index
      %590 = memref.load %arg2[%c79] : memref<98xf32, #tpu.memory_space<smem>>
      %c0_430 = arith.constant 0 : index
      %c4_431 = arith.constant 4 : index
      %c2_432 = arith.constant 2 : index
      %591 = vector.load %arg8[%c0_430, %c4_431, %c2_432] : memref<1x22x22xf32, #tpu.memory_space<vmem>>, vector<1x16x16xf32>
      %592 = vector.broadcast %590 : f32 to vector<1x16x16xf32>
      %593 = arith.mulf %592, %591 : vector<1x16x16xf32>
      %594 = arith.addf %589, %593 : vector<1x16x16xf32>
      %c80_433 = arith.constant 80 : index
      %595 = memref.load %arg2[%c80_433] : memref<98xf32, #tpu.memory_space<smem>>
      %c0_434 = arith.constant 0 : index
      %c4_435 = arith.constant 4 : index
      %c3_436 = arith.constant 3 : index
      %596 = vector.load %arg8[%c0_434, %c4_435, %c3_436] : memref<1x22x22xf32, #tpu.memory_space<vmem>>, vector<1x16x16xf32>
      %597 = vector.broadcast %595 : f32 to vector<1x16x16xf32>
      %598 = arith.mulf %597, %596 : vector<1x16x16xf32>
      %599 = arith.addf %594, %598 : vector<1x16x16xf32>
      %c81 = arith.constant 81 : index
      %600 = memref.load %arg2[%c81] : memref<98xf32, #tpu.memory_space<smem>>
      %c0_437 = arith.constant 0 : index
      %c4_438 = arith.constant 4 : index
      %c4_439 = arith.constant 4 : index
      %601 = vector.load %arg8[%c0_437, %c4_438, %c4_439] : memref<1x22x22xf32, #tpu.memory_space<vmem>>, vector<1x16x16xf32>
      %602 = vector.broadcast %600 : f32 to vector<1x16x16xf32>
      %603 = arith.mulf %602, %601 : vector<1x16x16xf32>
      %604 = arith.addf %599, %603 : vector<1x16x16xf32>
      %c82 = arith.constant 82 : index
      %605 = memref.load %arg2[%c82] : memref<98xf32, #tpu.memory_space<smem>>
      %c0_440 = arith.constant 0 : index
      %c4_441 = arith.constant 4 : index
      %c5_442 = arith.constant 5 : index
      %606 = vector.load %arg8[%c0_440, %c4_441, %c5_442] : memref<1x22x22xf32, #tpu.memory_space<vmem>>, vector<1x16x16xf32>
      %607 = vector.broadcast %605 : f32 to vector<1x16x16xf32>
      %608 = arith.mulf %607, %606 : vector<1x16x16xf32>
      %609 = arith.addf %604, %608 : vector<1x16x16xf32>
      %c83 = arith.constant 83 : index
      %610 = memref.load %arg2[%c83] : memref<98xf32, #tpu.memory_space<smem>>
      %c0_443 = arith.constant 0 : index
      %c4_444 = arith.constant 4 : index
      %c6_445 = arith.constant 6 : index
      %611 = vector.load %arg8[%c0_443, %c4_444, %c6_445] : memref<1x22x22xf32, #tpu.memory_space<vmem>>, vector<1x16x16xf32>
      %612 = vector.broadcast %610 : f32 to vector<1x16x16xf32>
      %613 = arith.mulf %612, %611 : vector<1x16x16xf32>
      %614 = arith.addf %609, %613 : vector<1x16x16xf32>
      %c84 = arith.constant 84 : index
      %615 = memref.load %arg2[%c84] : memref<98xf32, #tpu.memory_space<smem>>
      %c0_446 = arith.constant 0 : index
      %c5_447 = arith.constant 5 : index
      %c0_448 = arith.constant 0 : index
      %616 = vector.load %arg8[%c0_446, %c5_447, %c0_448] : memref<1x22x22xf32, #tpu.memory_space<vmem>>, vector<1x16x16xf32>
      %617 = vector.broadcast %615 : f32 to vector<1x16x16xf32>
      %618 = arith.mulf %617, %616 : vector<1x16x16xf32>
      %619 = arith.addf %614, %618 : vector<1x16x16xf32>
      %c85 = arith.constant 85 : index
      %620 = memref.load %arg2[%c85] : memref<98xf32, #tpu.memory_space<smem>>
      %c0_449 = arith.constant 0 : index
      %c5_450 = arith.constant 5 : index
      %c1_451 = arith.constant 1 : index
      %621 = vector.load %arg8[%c0_449, %c5_450, %c1_451] : memref<1x22x22xf32, #tpu.memory_space<vmem>>, vector<1x16x16xf32>
      %622 = vector.broadcast %620 : f32 to vector<1x16x16xf32>
      %623 = arith.mulf %622, %621 : vector<1x16x16xf32>
      %624 = arith.addf %619, %623 : vector<1x16x16xf32>
      %c86 = arith.constant 86 : index
      %625 = memref.load %arg2[%c86] : memref<98xf32, #tpu.memory_space<smem>>
      %c0_452 = arith.constant 0 : index
      %c5_453 = arith.constant 5 : index
      %c2_454 = arith.constant 2 : index
      %626 = vector.load %arg8[%c0_452, %c5_453, %c2_454] : memref<1x22x22xf32, #tpu.memory_space<vmem>>, vector<1x16x16xf32>
      %627 = vector.broadcast %625 : f32 to vector<1x16x16xf32>
      %628 = arith.mulf %627, %626 : vector<1x16x16xf32>
      %629 = arith.addf %624, %628 : vector<1x16x16xf32>
      %c87 = arith.constant 87 : index
      %630 = memref.load %arg2[%c87] : memref<98xf32, #tpu.memory_space<smem>>
      %c0_455 = arith.constant 0 : index
      %c5_456 = arith.constant 5 : index
      %c3_457 = arith.constant 3 : index
      %631 = vector.load %arg8[%c0_455, %c5_456, %c3_457] : memref<1x22x22xf32, #tpu.memory_space<vmem>>, vector<1x16x16xf32>
      %632 = vector.broadcast %630 : f32 to vector<1x16x16xf32>
      %633 = arith.mulf %632, %631 : vector<1x16x16xf32>
      %634 = arith.addf %629, %633 : vector<1x16x16xf32>
      %c88 = arith.constant 88 : index
      %635 = memref.load %arg2[%c88] : memref<98xf32, #tpu.memory_space<smem>>
      %c0_458 = arith.constant 0 : index
      %c5_459 = arith.constant 5 : index
      %c4_460 = arith.constant 4 : index
      %636 = vector.load %arg8[%c0_458, %c5_459, %c4_460] : memref<1x22x22xf32, #tpu.memory_space<vmem>>, vector<1x16x16xf32>
      %637 = vector.broadcast %635 : f32 to vector<1x16x16xf32>
      %638 = arith.mulf %637, %636 : vector<1x16x16xf32>
      %639 = arith.addf %634, %638 : vector<1x16x16xf32>
      %c89 = arith.constant 89 : index
      %640 = memref.load %arg2[%c89] : memref<98xf32, #tpu.memory_space<smem>>
      %c0_461 = arith.constant 0 : index
      %c5_462 = arith.constant 5 : index
      %c5_463 = arith.constant 5 : index
      %641 = vector.load %arg8[%c0_461, %c5_462, %c5_463] : memref<1x22x22xf32, #tpu.memory_space<vmem>>, vector<1x16x16xf32>
      %642 = vector.broadcast %640 : f32 to vector<1x16x16xf32>
      %643 = arith.mulf %642, %641 : vector<1x16x16xf32>
      %644 = arith.addf %639, %643 : vector<1x16x16xf32>
      %c90 = arith.constant 90 : index
      %645 = memref.load %arg2[%c90] : memref<98xf32, #tpu.memory_space<smem>>
      %c0_464 = arith.constant 0 : index
      %c5_465 = arith.constant 5 : index
      %c6_466 = arith.constant 6 : index
      %646 = vector.load %arg8[%c0_464, %c5_465, %c6_466] : memref<1x22x22xf32, #tpu.memory_space<vmem>>, vector<1x16x16xf32>
      %647 = vector.broadcast %645 : f32 to vector<1x16x16xf32>
      %648 = arith.mulf %647, %646 : vector<1x16x16xf32>
      %649 = arith.addf %644, %648 : vector<1x16x16xf32>
      %c91 = arith.constant 91 : index
      %650 = memref.load %arg2[%c91] : memref<98xf32, #tpu.memory_space<smem>>
      %c0_467 = arith.constant 0 : index
      %c6_468 = arith.constant 6 : index
      %c0_469 = arith.constant 0 : index
      %651 = vector.load %arg8[%c0_467, %c6_468, %c0_469] : memref<1x22x22xf32, #tpu.memory_space<vmem>>, vector<1x16x16xf32>
      %652 = vector.broadcast %650 : f32 to vector<1x16x16xf32>
      %653 = arith.mulf %652, %651 : vector<1x16x16xf32>
      %654 = arith.addf %649, %653 : vector<1x16x16xf32>
      %c92 = arith.constant 92 : index
      %655 = memref.load %arg2[%c92] : memref<98xf32, #tpu.memory_space<smem>>
      %c0_470 = arith.constant 0 : index
      %c6_471 = arith.constant 6 : index
      %c1_472 = arith.constant 1 : index
      %656 = vector.load %arg8[%c0_470, %c6_471, %c1_472] : memref<1x22x22xf32, #tpu.memory_space<vmem>>, vector<1x16x16xf32>
      %657 = vector.broadcast %655 : f32 to vector<1x16x16xf32>
      %658 = arith.mulf %657, %656 : vector<1x16x16xf32>
      %659 = arith.addf %654, %658 : vector<1x16x16xf32>
      %c93 = arith.constant 93 : index
      %660 = memref.load %arg2[%c93] : memref<98xf32, #tpu.memory_space<smem>>
      %c0_473 = arith.constant 0 : index
      %c6_474 = arith.constant 6 : index
      %c2_475 = arith.constant 2 : index
      %661 = vector.load %arg8[%c0_473, %c6_474, %c2_475] : memref<1x22x22xf32, #tpu.memory_space<vmem>>, vector<1x16x16xf32>
      %662 = vector.broadcast %660 : f32 to vector<1x16x16xf32>
      %663 = arith.mulf %662, %661 : vector<1x16x16xf32>
      %664 = arith.addf %659, %663 : vector<1x16x16xf32>
      %c94 = arith.constant 94 : index
      %665 = memref.load %arg2[%c94] : memref<98xf32, #tpu.memory_space<smem>>
      %c0_476 = arith.constant 0 : index
      %c6_477 = arith.constant 6 : index
      %c3_478 = arith.constant 3 : index
      %666 = vector.load %arg8[%c0_476, %c6_477, %c3_478] : memref<1x22x22xf32, #tpu.memory_space<vmem>>, vector<1x16x16xf32>
      %667 = vector.broadcast %665 : f32 to vector<1x16x16xf32>
      %668 = arith.mulf %667, %666 : vector<1x16x16xf32>
      %669 = arith.addf %664, %668 : vector<1x16x16xf32>
      %c95 = arith.constant 95 : index
      %670 = memref.load %arg2[%c95] : memref<98xf32, #tpu.memory_space<smem>>
      %c0_479 = arith.constant 0 : index
      %c6_480 = arith.constant 6 : index
      %c4_481 = arith.constant 4 : index
      %671 = vector.load %arg8[%c0_479, %c6_480, %c4_481] : memref<1x22x22xf32, #tpu.memory_space<vmem>>, vector<1x16x16xf32>
      %672 = vector.broadcast %670 : f32 to vector<1x16x16xf32>
      %673 = arith.mulf %672, %671 : vector<1x16x16xf32>
      %674 = arith.addf %669, %673 : vector<1x16x16xf32>
      %c96_482 = arith.constant 96 : index
      %675 = memref.load %arg2[%c96_482] : memref<98xf32, #tpu.memory_space<smem>>
      %c0_483 = arith.constant 0 : index
      %c6_484 = arith.constant 6 : index
      %c5_485 = arith.constant 5 : index
      %676 = vector.load %arg8[%c0_483, %c6_484, %c5_485] : memref<1x22x22xf32, #tpu.memory_space<vmem>>, vector<1x16x16xf32>
      %677 = vector.broadcast %675 : f32 to vector<1x16x16xf32>
      %678 = arith.mulf %677, %676 : vector<1x16x16xf32>
      %679 = arith.addf %674, %678 : vector<1x16x16xf32>
      %c97 = arith.constant 97 : index
      %680 = memref.load %arg2[%c97] : memref<98xf32, #tpu.memory_space<smem>>
      %c0_486 = arith.constant 0 : index
      %c6_487 = arith.constant 6 : index
      %c6_488 = arith.constant 6 : index
      %681 = vector.load %arg8[%c0_486, %c6_487, %c6_488] : memref<1x22x22xf32, #tpu.memory_space<vmem>>, vector<1x16x16xf32>
      %682 = vector.broadcast %680 : f32 to vector<1x16x16xf32>
      %683 = arith.mulf %682, %681 : vector<1x16x16xf32>
      %684 = arith.addf %679, %683 : vector<1x16x16xf32>
      %685 = arith.negf %684 : vector<1x16x16xf32>
      %686 = math.exp %685 : vector<1x16x16xf32>
      %cst_489 = arith.constant 1.000000e+00 : f32
      %687 = vector.broadcast %cst_489 : f32 to vector<1x16x16xf32>
      %688 = arith.addf %687, %686 : vector<1x16x16xf32>
      %689 = arith.divf %687, %688 : vector<1x16x16xf32>
      %690 = vector.extract_strided_slice %689 {offsets = [0, 0, 0], sizes = [1, 1, 16], strides = [1, 1, 1]} : vector<1x16x16xf32> to vector<1x1x16xf32>
      %691 = vector.shape_cast %690 : vector<1x1x16xf32> to vector<1x16xf32>
      %c0_490 = arith.constant 0 : index
      %c0_491 = arith.constant 0 : index
      %c0_492 = arith.constant 0 : index
      %692 = vector.load %arg4[%c0_490, %c0_491, %c0_492] : memref<1x1x256xf32, #tpu.memory_space<vmem>>, vector<1x1x16xf32>
      %693 = vector.shape_cast %692 : vector<1x1x16xf32> to vector<1x16xf32>
      %694 = vector.shape_cast %691 : vector<1x16xf32> to vector<1x1x16xf32>
      tpu.vector_store %arg4[%c0_490, %c0_491, %c0_492], %694 {strides = array<i32>} : memref<1x1x256xf32, #tpu.memory_space<vmem>>, vector<1x1x16xf32>,
      %695 = vector.extract_strided_slice %689 {offsets = [0, 1, 0], sizes = [1, 1, 16], strides = [1, 1, 1]} : vector<1x16x16xf32> to vector<1x1x16xf32>
      %696 = vector.shape_cast %695 : vector<1x1x16xf32> to vector<1x16xf32>
      %c0_493 = arith.constant 0 : index
      %c0_494 = arith.constant 0 : index
      %c16_495 = arith.constant 16 : index
      %697 = vector.load %arg4[%c0_493, %c0_494, %c16_495] : memref<1x1x256xf32, #tpu.memory_space<vmem>>, vector<1x1x16xf32>
      %698 = vector.shape_cast %697 : vector<1x1x16xf32> to vector<1x16xf32>
      %699 = vector.shape_cast %696 : vector<1x16xf32> to vector<1x1x16xf32>
      tpu.vector_store %arg4[%c0_493, %c0_494, %c16_495], %699 {strides = array<i32>} : memref<1x1x256xf32, #tpu.memory_space<vmem>>, vector<1x1x16xf32>,
      %700 = vector.extract_strided_slice %689 {offsets = [0, 2, 0], sizes = [1, 1, 16], strides = [1, 1, 1]} : vector<1x16x16xf32> to vector<1x1x16xf32>
      %701 = vector.shape_cast %700 : vector<1x1x16xf32> to vector<1x16xf32>
      %c0_496 = arith.constant 0 : index
      %c0_497 = arith.constant 0 : index
      %c32_498 = arith.constant 32 : index
      %702 = vector.load %arg4[%c0_496, %c0_497, %c32_498] : memref<1x1x256xf32, #tpu.memory_space<vmem>>, vector<1x1x16xf32>
      %703 = vector.shape_cast %702 : vector<1x1x16xf32> to vector<1x16xf32>
      %704 = vector.shape_cast %701 : vector<1x16xf32> to vector<1x1x16xf32>
      tpu.vector_store %arg4[%c0_496, %c0_497, %c32_498], %704 {strides = array<i32>} : memref<1x1x256xf32, #tpu.memory_space<vmem>>, vector<1x1x16xf32>,
      %705 = vector.extract_strided_slice %689 {offsets = [0, 3, 0], sizes = [1, 1, 16], strides = [1, 1, 1]} : vector<1x16x16xf32> to vector<1x1x16xf32>
      %706 = vector.shape_cast %705 : vector<1x1x16xf32> to vector<1x16xf32>
      %c0_499 = arith.constant 0 : index
      %c0_500 = arith.constant 0 : index
      %c48_501 = arith.constant 48 : index
      %707 = vector.load %arg4[%c0_499, %c0_500, %c48_501] : memref<1x1x256xf32, #tpu.memory_space<vmem>>, vector<1x1x16xf32>
      %708 = vector.shape_cast %707 : vector<1x1x16xf32> to vector<1x16xf32>
      %709 = vector.shape_cast %706 : vector<1x16xf32> to vector<1x1x16xf32>
      tpu.vector_store %arg4[%c0_499, %c0_500, %c48_501], %709 {strides = array<i32>} : memref<1x1x256xf32, #tpu.memory_space<vmem>>, vector<1x1x16xf32>,
      %710 = vector.extract_strided_slice %689 {offsets = [0, 4, 0], sizes = [1, 1, 16], strides = [1, 1, 1]} : vector<1x16x16xf32> to vector<1x1x16xf32>
      %711 = vector.shape_cast %710 : vector<1x1x16xf32> to vector<1x16xf32>
      %c0_502 = arith.constant 0 : index
      %c0_503 = arith.constant 0 : index
      %c64_504 = arith.constant 64 : index
      %712 = vector.load %arg4[%c0_502, %c0_503, %c64_504] : memref<1x1x256xf32, #tpu.memory_space<vmem>>, vector<1x1x16xf32>
      %713 = vector.shape_cast %712 : vector<1x1x16xf32> to vector<1x16xf32>
      %714 = vector.shape_cast %711 : vector<1x16xf32> to vector<1x1x16xf32>
      tpu.vector_store %arg4[%c0_502, %c0_503, %c64_504], %714 {strides = array<i32>} : memref<1x1x256xf32, #tpu.memory_space<vmem>>, vector<1x1x16xf32>,
      %715 = vector.extract_strided_slice %689 {offsets = [0, 5, 0], sizes = [1, 1, 16], strides = [1, 1, 1]} : vector<1x16x16xf32> to vector<1x1x16xf32>
      %716 = vector.shape_cast %715 : vector<1x1x16xf32> to vector<1x16xf32>
      %c0_505 = arith.constant 0 : index
      %c0_506 = arith.constant 0 : index
      %c80_507 = arith.constant 80 : index
      %717 = vector.load %arg4[%c0_505, %c0_506, %c80_507] : memref<1x1x256xf32, #tpu.memory_space<vmem>>, vector<1x1x16xf32>
      %718 = vector.shape_cast %717 : vector<1x1x16xf32> to vector<1x16xf32>
      %719 = vector.shape_cast %716 : vector<1x16xf32> to vector<1x1x16xf32>
      tpu.vector_store %arg4[%c0_505, %c0_506, %c80_507], %719 {strides = array<i32>} : memref<1x1x256xf32, #tpu.memory_space<vmem>>, vector<1x1x16xf32>,
      %720 = vector.extract_strided_slice %689 {offsets = [0, 6, 0], sizes = [1, 1, 16], strides = [1, 1, 1]} : vector<1x16x16xf32> to vector<1x1x16xf32>
      %721 = vector.shape_cast %720 : vector<1x1x16xf32> to vector<1x16xf32>
      %c0_508 = arith.constant 0 : index
      %c0_509 = arith.constant 0 : index
      %c96_510 = arith.constant 96 : index
      %722 = vector.load %arg4[%c0_508, %c0_509, %c96_510] : memref<1x1x256xf32, #tpu.memory_space<vmem>>, vector<1x1x16xf32>
      %723 = vector.shape_cast %722 : vector<1x1x16xf32> to vector<1x16xf32>
      %724 = vector.shape_cast %721 : vector<1x16xf32> to vector<1x1x16xf32>
      tpu.vector_store %arg4[%c0_508, %c0_509, %c96_510], %724 {strides = array<i32>} : memref<1x1x256xf32, #tpu.memory_space<vmem>>, vector<1x1x16xf32>,
      %725 = vector.extract_strided_slice %689 {offsets = [0, 7, 0], sizes = [1, 1, 16], strides = [1, 1, 1]} : vector<1x16x16xf32> to vector<1x1x16xf32>
      %726 = vector.shape_cast %725 : vector<1x1x16xf32> to vector<1x16xf32>
      %c0_511 = arith.constant 0 : index
      %c0_512 = arith.constant 0 : index
      %c112_513 = arith.constant 112 : index
      %727 = vector.load %arg4[%c0_511, %c0_512, %c112_513] : memref<1x1x256xf32, #tpu.memory_space<vmem>>, vector<1x1x16xf32>
      %728 = vector.shape_cast %727 : vector<1x1x16xf32> to vector<1x16xf32>
      %729 = vector.shape_cast %726 : vector<1x16xf32> to vector<1x1x16xf32>
      tpu.vector_store %arg4[%c0_511, %c0_512, %c112_513], %729 {strides = array<i32>} : memref<1x1x256xf32, #tpu.memory_space<vmem>>, vector<1x1x16xf32>,
      %730 = vector.extract_strided_slice %689 {offsets = [0, 8, 0], sizes = [1, 1, 16], strides = [1, 1, 1]} : vector<1x16x16xf32> to vector<1x1x16xf32>
      %731 = vector.shape_cast %730 : vector<1x1x16xf32> to vector<1x16xf32>
      %c0_514 = arith.constant 0 : index
      %c0_515 = arith.constant 0 : index
      %c128_516 = arith.constant 128 : index
      %732 = vector.load %arg4[%c0_514, %c0_515, %c128_516] : memref<1x1x256xf32, #tpu.memory_space<vmem>>, vector<1x1x16xf32>
      %733 = vector.shape_cast %732 : vector<1x1x16xf32> to vector<1x16xf32>
      %734 = vector.shape_cast %731 : vector<1x16xf32> to vector<1x1x16xf32>
      tpu.vector_store %arg4[%c0_514, %c0_515, %c128_516], %734 {strides = array<i32>} : memref<1x1x256xf32, #tpu.memory_space<vmem>>, vector<1x1x16xf32>,
      %735 = vector.extract_strided_slice %689 {offsets = [0, 9, 0], sizes = [1, 1, 16], strides = [1, 1, 1]} : vector<1x16x16xf32> to vector<1x1x16xf32>
      %736 = vector.shape_cast %735 : vector<1x1x16xf32> to vector<1x16xf32>
      %c0_517 = arith.constant 0 : index
      %c0_518 = arith.constant 0 : index
      %c144_519 = arith.constant 144 : index
      %737 = vector.load %arg4[%c0_517, %c0_518, %c144_519] : memref<1x1x256xf32, #tpu.memory_space<vmem>>, vector<1x1x16xf32>
      %738 = vector.shape_cast %737 : vector<1x1x16xf32> to vector<1x16xf32>
      %739 = vector.shape_cast %736 : vector<1x16xf32> to vector<1x1x16xf32>
      tpu.vector_store %arg4[%c0_517, %c0_518, %c144_519], %739 {strides = array<i32>} : memref<1x1x256xf32, #tpu.memory_space<vmem>>, vector<1x1x16xf32>,
      %740 = vector.extract_strided_slice %689 {offsets = [0, 10, 0], sizes = [1, 1, 16], strides = [1, 1, 1]} : vector<1x16x16xf32> to vector<1x1x16xf32>
      %741 = vector.shape_cast %740 : vector<1x1x16xf32> to vector<1x16xf32>
      %c0_520 = arith.constant 0 : index
      %c0_521 = arith.constant 0 : index
      %c160_522 = arith.constant 160 : index
      %742 = vector.load %arg4[%c0_520, %c0_521, %c160_522] : memref<1x1x256xf32, #tpu.memory_space<vmem>>, vector<1x1x16xf32>
      %743 = vector.shape_cast %742 : vector<1x1x16xf32> to vector<1x16xf32>
      %744 = vector.shape_cast %741 : vector<1x16xf32> to vector<1x1x16xf32>
      tpu.vector_store %arg4[%c0_520, %c0_521, %c160_522], %744 {strides = array<i32>} : memref<1x1x256xf32, #tpu.memory_space<vmem>>, vector<1x1x16xf32>,
      %745 = vector.extract_strided_slice %689 {offsets = [0, 11, 0], sizes = [1, 1, 16], strides = [1, 1, 1]} : vector<1x16x16xf32> to vector<1x1x16xf32>
      %746 = vector.shape_cast %745 : vector<1x1x16xf32> to vector<1x16xf32>
      %c0_523 = arith.constant 0 : index
      %c0_524 = arith.constant 0 : index
      %c176_525 = arith.constant 176 : index
      %747 = vector.load %arg4[%c0_523, %c0_524, %c176_525] : memref<1x1x256xf32, #tpu.memory_space<vmem>>, vector<1x1x16xf32>
      %748 = vector.shape_cast %747 : vector<1x1x16xf32> to vector<1x16xf32>
      %749 = vector.shape_cast %746 : vector<1x16xf32> to vector<1x1x16xf32>
      tpu.vector_store %arg4[%c0_523, %c0_524, %c176_525], %749 {strides = array<i32>} : memref<1x1x256xf32, #tpu.memory_space<vmem>>, vector<1x1x16xf32>,
      %750 = vector.extract_strided_slice %689 {offsets = [0, 12, 0], sizes = [1, 1, 16], strides = [1, 1, 1]} : vector<1x16x16xf32> to vector<1x1x16xf32>
      %751 = vector.shape_cast %750 : vector<1x1x16xf32> to vector<1x16xf32>
      %c0_526 = arith.constant 0 : index
      %c0_527 = arith.constant 0 : index
      %c192_528 = arith.constant 192 : index
      %752 = vector.load %arg4[%c0_526, %c0_527, %c192_528] : memref<1x1x256xf32, #tpu.memory_space<vmem>>, vector<1x1x16xf32>
      %753 = vector.shape_cast %752 : vector<1x1x16xf32> to vector<1x16xf32>
      %754 = vector.shape_cast %751 : vector<1x16xf32> to vector<1x1x16xf32>
      tpu.vector_store %arg4[%c0_526, %c0_527, %c192_528], %754 {strides = array<i32>} : memref<1x1x256xf32, #tpu.memory_space<vmem>>, vector<1x1x16xf32>,
      %755 = vector.extract_strided_slice %689 {offsets = [0, 13, 0], sizes = [1, 1, 16], strides = [1, 1, 1]} : vector<1x16x16xf32> to vector<1x1x16xf32>
      %756 = vector.shape_cast %755 : vector<1x1x16xf32> to vector<1x16xf32>
      %c0_529 = arith.constant 0 : index
      %c0_530 = arith.constant 0 : index
      %c208_531 = arith.constant 208 : index
      %757 = vector.load %arg4[%c0_529, %c0_530, %c208_531] : memref<1x1x256xf32, #tpu.memory_space<vmem>>, vector<1x1x16xf32>
      %758 = vector.shape_cast %757 : vector<1x1x16xf32> to vector<1x16xf32>
      %759 = vector.shape_cast %756 : vector<1x16xf32> to vector<1x1x16xf32>
      tpu.vector_store %arg4[%c0_529, %c0_530, %c208_531], %759 {strides = array<i32>} : memref<1x1x256xf32, #tpu.memory_space<vmem>>, vector<1x1x16xf32>,
      %760 = vector.extract_strided_slice %689 {offsets = [0, 14, 0], sizes = [1, 1, 16], strides = [1, 1, 1]} : vector<1x16x16xf32> to vector<1x1x16xf32>
      %761 = vector.shape_cast %760 : vector<1x1x16xf32> to vector<1x16xf32>
      %c0_532 = arith.constant 0 : index
      %c0_533 = arith.constant 0 : index
      %c224_534 = arith.constant 224 : index
      %762 = vector.load %arg4[%c0_532, %c0_533, %c224_534] : memref<1x1x256xf32, #tpu.memory_space<vmem>>, vector<1x1x16xf32>
      %763 = vector.shape_cast %762 : vector<1x1x16xf32> to vector<1x16xf32>
      %764 = vector.shape_cast %761 : vector<1x16xf32> to vector<1x1x16xf32>
      tpu.vector_store %arg4[%c0_532, %c0_533, %c224_534], %764 {strides = array<i32>} : memref<1x1x256xf32, #tpu.memory_space<vmem>>, vector<1x1x16xf32>,
      %765 = vector.extract_strided_slice %689 {offsets = [0, 15, 0], sizes = [1, 1, 16], strides = [1, 1, 1]} : vector<1x16x16xf32> to vector<1x1x16xf32>
      %766 = vector.shape_cast %765 : vector<1x1x16xf32> to vector<1x16xf32>
      %c0_535 = arith.constant 0 : index
      %c0_536 = arith.constant 0 : index
      %c240_537 = arith.constant 240 : index
      %767 = vector.load %arg4[%c0_535, %c0_536, %c240_537] : memref<1x1x256xf32, #tpu.memory_space<vmem>>, vector<1x1x16xf32>
      %768 = vector.shape_cast %767 : vector<1x1x16xf32> to vector<1x16xf32>
      %769 = vector.shape_cast %766 : vector<1x16xf32> to vector<1x1x16xf32>
      tpu.vector_store %arg4[%c0_535, %c0_536, %c240_537], %769 {strides = array<i32>} : memref<1x1x256xf32, #tpu.memory_space<vmem>>, vector<1x1x16xf32>,
    } else {
    }
    return
  }
  func.func @transform_0(%arg0: i32, %arg1: i32) -> i32 {
    %c0_i32 = arith.constant 0 : i32
    %c0_i32_0 = arith.constant 0 : i32
    return %c0_i32 : i32
  }
  func.func @transform_1(%arg0: i32, %arg1: i32) -> (i32, i32, i32) {
    %c0_i32 = arith.constant 0 : i32
    %c0_i32_0 = arith.constant 0 : i32
    return %arg0, %arg1, %c0_i32 : i32, i32, i32
  }
  func.func @transform_2(%arg0: i32, %arg1: i32) -> (i32, i32, i32) {
    %c0_i32 = arith.constant 0 : i32
    %c0_i32_0 = arith.constant 0 : i32
    %c0_i32_1 = arith.constant 0 : i32
    return %arg0, %c0_i32, %c0_i32_0 : i32, i32, i32
  }
}

</mosaic_0001>

<llo_original>
// kernel: tpu_custom_call.1
$region0: #{tpu_custom_call.1}
  #allocation0 [shape = 'u32[]', space=smem, size = 0x4, offset = 0x4, fixed_abs, tag = 'smem constant byte address 0x4 - core index']
  #allocation1 [shape = 'u32[144,128]{1,0:T(1,128)}', space=vmem, size = 0x12000, scoped, tag = 'internal scratch']
  #allocation2 [shape = 'f32[1,256]{1,0:T(1,128)}', space=vmem, size = 0x400, scoped, tag = 'scratch operand']
  #allocation3 [shape = 'f32[1,256]{1,0:T(1,128)}', space=vmem, size = 0x400, scoped, tag = 'scratch operand']
  #allocation4 [shape = 'f32[1,22,22]{2,1,0:T(8,128)}', space=vmem, size = 0x3000, scoped, tag = 'scratch operand']
  #allocation5 [shape = 'f32[1,22,22]{2,1,0:T(8,128)}', space=vmem, size = 0x3000, scoped, tag = 'scratch operand']
  %s0 = inlined_call_operand.hbm [shape: f32[98], index: 0, kind: input, shape index: {}]
  %s1 = inlined_call_operand.hbm [shape: f32[2,4,256], index: 1, kind: input, shape index: {}]
  %s2 = inlined_call_operand.hbm [shape: f32[2,1,256], index: 2, kind: output, shape index: {}]
  %s3 = sld [smem:[#allocation0]]
  $region57: #{tpu_custom_call.1} parent=0
    _
  %s5 = ssub.s32 1, %s3
  %s6 = scalar_select 0, %s5, %s3
  $region1: #{tpu_custom_call.1} parent=0
    #allocation6 [shape = 'u8[512]{0}', space=smem, size = 0x200, scoped, tag = 'input window, operand 0, single buffered']
    #allocation7 [shape = 's32[2]{0}', space=sflag, size = 0x8, scoped, tag = 'scoped memory for tpu_custom_call.1']
    #allocation8 [shape = 's32[2]{0}', space=sflag, size = 0x8, scoped, tag = 'scoped memory for tpu_custom_call.1']
    #allocation9 [shape = 's32[2]{0}', space=sflag, size = 0x8, scoped, tag = 'scoped memory for tpu_custom_call.1']
    #allocation10 [shape = 'u8[8192]{0}', space=vmem, size = 0x2000, scoped, tag = 'input window, operand 1']
    #allocation11 [shape = 'u8[2048]{0}', space=vmem, size = 0x800, scoped, tag = 'output window, operand 0']
    %7 = vsyncpa [#allocation9], 0
    %8 = vsyncpa [#allocation7], 0
    %s9 = scalar_lea.sflag [#allocation7], 1
    %10 = vsyncpa %s9, 0
    %11 = vsyncpa [#allocation8], 0
    %s12 = scalar_lea.sflag [#allocation8], 1
    %13 = vsyncpa %s12, 0
    loop: start=0, step=1, limit=4
    $region2: #{tpu_custom_call.1} parent=1 // loop_pre_header
      _
    $region3: #{tpu_custom_call.1} parent=1 // loop_header
      %s15 = sphi 0, %s19
      %p16 = scmp.ge.s32.totalorder %s15, 4
      %s22 = sphi 0, %s34
      %s23 = sphi 0, %s30
      %s24 = sphi 0, %s22
      %s25 = sphi 0, %s23
      %s26 = sphi 0, %s24
      %s27 = sphi 0, %s25
      %s35 = sphi 0, %s35
      %s37 = sphi 0, %s35
      %s38 = sphi 0, %s37
      %s52 = sphi 0, %s38
      %s60 = sphi 0, %s62
      %s63 = sphi 0, %s60
      %s64 = sphi 0, %s63
      %s80 = sphi 0, %s64
      %s86 = sphi 0, %s88
      %s89 = sphi 0, %s86
      %s90 = sphi 0, %s89
      %s106 = sphi 0, %s90
    $region4: #{tpu_custom_call.1} parent=1 // loop_header_branch
      %18 = sbr.rel (%p16) target = $region8
    $region5: #{tpu_custom_call.1} parent=1 // loop_body
      %s20 = ssub.s32 %s15, 1
      %s21 = ssub.s32 %s15, 2
      %s28 = sadd.s32 1, %s23
      %p29 = scmp.ge.s32.totalorder %s28, 1
      %s30 = scalar_select %p29, 0, %s28
      %s31 = sadd.s32 1, %s22
      %s32 = scalar_select %p29, %s31, %s22
      %p33 = scmp.ge.s32.totalorder %s32, 2
      %s34 = scalar_select %p33, 0, %s32
      %s36 = sadd.s32 %s35, 1
      %p39 = scmp.eq.s32.totalorder %s15, 1
      %p40 = scmp.ne.s32.totalorder %s35, %s37
      %p41 = scmp.eq.s32.totalorder %s15, 0
      %p42 = por %p40, %p41
      %p43 = scmp.ne.s32.totalorder %s35, %s37
      %p44 = scmp.eq.s32.totalorder %s20, 1
      %p45 = por %p43, %p44
      %p46 = scmp.ne.s32.totalorder %s37, %s38
      %p47 = scmp.eq.s32.totalorder %s20, 0
      %p48 = por %p46, %p47
      %p49 = scmp.ne.s32.totalorder %s37, %s38
      %p50 = scmp.eq.s32.totalorder %s21, 1
      %p51 = por %p49, %p50
      %p53 = scmp.ne.s32.totalorder %s38, %s52
      %p54 = scmp.eq.s32.totalorder %s21, 0
      %p55 = por %p53, %p54
      %s56 = ssub.s32 %s22, %s34
      %s57 = ssub.s32 %s23, %s30
      %s58 = sor.u32 %s56, %s57
      %p59 = scmp.eq.s32.totalorder %s58, 0
      %s61 = sadd.s32 %s60, 1
      %s62 = scalar_select %p59, %s60, %s61
      %p65 = pneg %p59
      %p66 = scmp.eq.s32.totalorder %s15, 1
      %p67 = por %p65, %p66
      %p68 = scmp.ne.s32.totalorder %s60, %s63
      %p69 = scmp.eq.s32.totalorder %s15, 0
      %p70 = por %p68, %p69
      %p71 = scmp.ne.s32.totalorder %s60, %s63
      %p72 = scmp.eq.s32.totalorder %s20, 1
      %p73 = por %p71, %p72
      %p74 = scmp.ne.s32.totalorder %s63, %s64
      %p75 = scmp.eq.s32.totalorder %s20, 0
      %p76 = por %p74, %p75
      %p77 = scmp.ne.s32.totalorder %s63, %s64
      %p78 = scmp.eq.s32.totalorder %s21, 1
      %p79 = por %p77, %p78
      %p81 = scmp.ne.s32.totalorder %s64, %s80
      %p82 = scmp.eq.s32.totalorder %s21, 0
      %p83 = por %p81, %p82
      %s84 = ssub.s32 %s22, %s34
      %p85 = scmp.eq.s32.totalorder %s84, 0
      %s87 = sadd.s32 %s86, 1
      %s88 = scalar_select %p85, %s86, %s87
      %p91 = pneg %p85
      %p92 = scmp.eq.s32.totalorder %s15, 1
      %p93 = por %p91, %p92
      %p94 = scmp.ne.s32.totalorder %s86, %s89
      %p95 = scmp.eq.s32.totalorder %s15, 0
      %p96 = por %p94, %p95
      %p97 = scmp.ne.s32.totalorder %s86, %s89
      %p98 = scmp.eq.s32.totalorder %s20, 1
      %p99 = por %p97, %p98
      %p100 = scmp.ne.s32.totalorder %s89, %s90
      %p101 = scmp.eq.s32.totalorder %s20, 0
      %p102 = por %p100, %p101
      %p103 = scmp.ne.s32.totalorder %s89, %s90
      %p104 = scmp.eq.s32.totalorder %s21, 1
      %p105 = por %p103, %p104
      %p107 = scmp.ne.s32.totalorder %s90, %s106
      %p108 = scmp.eq.s32.totalorder %s21, 0
      %p109 = por %p107, %p108
      %p110 = scmp.le.s32.totalorder 1, %s15
      %p111 = scmp.lt.s32.totalorder %s15, 3
      %p112 = pnand %p110, %p111
      %p113 = pneg %p112
      // Predicated region
      $region9: #{tpu_custom_call.1} parent=5 // pred_check
        _
      $region10: #{tpu_custom_call.1} parent=5 // pred_check_branch
        %115 = sbr.rel (%p112) target = $region12
      $region11: #{tpu_custom_call.1} parent=5 // pred_region
        %s116 = ssub.s32 %s15, 1
        // Predicated region
        $region13: #{tpu_custom_call.1} parent=11 // pred_check
          %p117 = pneg %p48
        $region14: #{tpu_custom_call.1} parent=11 // pred_check_branch
          %119 = sbr.rel (%p117) target = $region16
        $region15: #{tpu_custom_call.1} parent=11 // pred_region
          %s121 = ssub.s32 16, 16
          %122 = vsyncadd [#allocation9], %s121
          %125 = dma.hbm_to_smem %s0, 16, [#allocation6], [#allocation9]
        $region16: #{tpu_custom_call.1} parent=11 // pred_fallthru
          _
      $region12: #{tpu_custom_call.1} parent=5 // pred_fallthru
        _
      %p126 = scmp.lt.s32.totalorder %s15, 2
      // Predicated region
      $region17: #{tpu_custom_call.1} parent=5 // pred_check
        %p127 = pneg %p126
      $region18: #{tpu_custom_call.1} parent=5 // pred_check_branch
        %129 = sbr.rel (%p127) target = $region20
      $region19: #{tpu_custom_call.1} parent=5 // pred_region
        // Predicated region
        $region21: #{tpu_custom_call.1} parent=19 // pred_check
          %p130 = pneg %p70
        $region22: #{tpu_custom_call.1} parent=19 // pred_check_branch
          %132 = sbr.rel (%p130) target = $region24
        $region23: #{tpu_custom_call.1} parent=19 // pred_region
          %s133 = sand.u32 %s60, 1
          %s134 = scalar_lea.sflag [#allocation7], %s133
          %s135 = sand.u32 %s60, 1
          %s136 = smul.addr %s135, 8
          %s137 = scalar_lea.vmem [#allocation10], %s136
          %s139 = ssub.s32 128, 128
          %140 = vsyncadd %s134, %s139
          %s141 = smul.addr %s23, 2
          %s142 = smul.addr %s22, 2
          %s143 = sadd.s32 %s141, %s142
          %s144 = smul.addr %s143, 64
          %s145 = scalar_lea.hbm %s1, %s144
          %s147 = sshll.u32 %s137, 4
          %s148 = int_to_ptr.vmem [resolvable:$true] %s147
          %150 = dma.hbm_to_vmem [thread:$0]  %s145, 128, %s148, %s134
        $region24: #{tpu_custom_call.1} parent=19 // pred_fallthru
          _
      $region20: #{tpu_custom_call.1} parent=5 // pred_fallthru
        _
      %p151 = scmp.le.s32.totalorder 1, %s15
      %p152 = scmp.lt.s32.totalorder %s15, 3
      %p153 = pnand %p151, %p152
      %p154 = pneg %p153
      // Predicated region
      $region25: #{tpu_custom_call.1} parent=5 // pred_check
        _
      $region26: #{tpu_custom_call.1} parent=5 // pred_check_branch
        %156 = sbr.rel (%p153) target = $region28
      $region27: #{tpu_custom_call.1} parent=5 // pred_region
        %s157 = ssub.s32 %s15, 1
        // Predicated region
        $region29: #{tpu_custom_call.1} parent=27 // pred_check
          %p158 = pneg %p48
        $region30: #{tpu_custom_call.1} parent=27 // pred_check_branch
          %160 = sbr.rel (%p158) target = $region32
        $region31: #{tpu_custom_call.1} parent=27 // pred_region
          %161 = dma.done [#allocation9], 16
        $region32: #{tpu_custom_call.1} parent=27 // pred_fallthru
          _
        %s162 = sand.u32 %s63, 1
        %s163 = scalar_lea.sflag [#allocation7], %s162
        %s164 = sand.u32 %s63, 1
        %s165 = smul.addr %s164, 8
        %s166 = scalar_lea.vmem [#allocation10], %s165
        // Predicated region
        $region33: #{tpu_custom_call.1} parent=27 // pred_check
          %p167 = pneg %p76
        $region34: #{tpu_custom_call.1} parent=27 // pred_check_branch
          %169 = sbr.rel (%p167) target = $region36
        $region35: #{tpu_custom_call.1} parent=27 // pred_region
          %170 = dma.done %s163, 128
        $region36: #{tpu_custom_call.1} parent=27 // pred_fallthru
          _
        %171 = sfence
        %p172 = pneg %p48
        %p173 = pneg %p45
        %s174 = sand.u32 %s63, 1
        %s175 = scalar_lea.sflag [#allocation7], %s174
        %s176 = sand.u32 %s63, 1
        %s177 = smul.addr %s176, 8
        %s178 = scalar_lea.vmem [#allocation10], %s177
        %p179 = pneg %p76
        %p180 = pneg %p73
        %p181 = pneg %p102
        %p182 = pneg %p99
        %s183 = sand.u32 %s89, 1
        %s184 = scalar_lea.sflag [#allocation8], %s183
        %s185 = sand.u32 %s89, 1
        %s186 = smul.addr %s185, 2
        %s187 = scalar_lea.vmem [#allocation11], %s186
        %p188 = scmp.eq.s32.totalorder %s25, 0
        // Predicated region
        $region37: #{tpu_custom_call.1} parent=27 // pred_check
          %p189 = pneg %p188
        $region38: #{tpu_custom_call.1} parent=27 // pred_check_branch
          %191 = sbr.rel (%p189) target = $region40
        $region39: #{tpu_custom_call.1} parent=27 // pred_region
          %v192 = vlaneseq
          %vm193 = vcmp.ge.s32.totalorder %v192, 0
          %vm194 = vcmp.lt.s32.totalorder %v192, 256
          %vm195 = vmand %vm193, %vm194
          %196 = vst.msk [vmem:[#allocation2] sm:$0x3] %vm195, 0.0
          %197 = vst.msk [vmem:[#allocation3] sm:$0x3] %vm195, -inf
        $region40: #{tpu_custom_call.1} parent=27 // pred_fallthru
          _
        %v198 = vld [vmem:[#allocation2] sm:$0x3]
        %v199 = vld [vmem:[#allocation3] sm:$0x3]
        %v200 = vld [vmem:[%s166] ss:$4 sm:$0x3]
        %v201 = vadd.f32 %v198, %v200
        %v202 = vmax.f32 %v199, %v200
        %s203 = scalar_lea.vmem %s166, 1 [#allocation10]
        %v204 = vld [vmem:[%s203] ss:$4 sm:$0x3]
        %v205 = vadd.f32 %v201, %v204
        %v206 = vmax.f32 %v202, %v204
        %s207 = scalar_lea.vmem %s166, 2 [#allocation10]
        %v208 = vld [vmem:[%s207] ss:$4 sm:$0x3]
        %v209 = vadd.f32 %v205, %v208
        %v210 = vmax.f32 %v206, %v208
        %s211 = scalar_lea.vmem %s166, 3 [#allocation10]
        %v212 = vld [vmem:[%s211] ss:$4 sm:$0x3]
        %v213 = vadd.f32 %v209, %v212
        %v214 = vmax.f32 %v210, %v212
        %v215 = vlaneseq
        %vm216 = vcmp.ge.s32.totalorder %v215, 0
        %vm217 = vcmp.lt.s32.totalorder %v215, 256
        %vm218 = vmand %vm216, %vm217
        %219 = vst.msk [vmem:[#allocation2] sm:$0x3] %vm218, %v213
        %220 = vst.msk [vmem:[#allocation3] sm:$0x3] %vm218, %v214
        // Predicated region
        $region41: #{tpu_custom_call.1} parent=27 // pred_check
          %p221 = pneg %p188
        $region42: #{tpu_custom_call.1} parent=27 // pred_check_branch
          %223 = sbr.rel (%p221) target = $region44
        $region43: #{tpu_custom_call.1} parent=27 // pred_region
          %vm224 = vcmask 179200
          %225 = vst.msk [vmem:[#allocation4] sm:$0xff] %vm224, 0.0
          %226 = vst.msk [vmem:[#allocation4 + $0x8] sm:$0xff] %vm224, 0.0
          %vm227 = vcmask 177152
          %228 = vst.msk [vmem:[#allocation4 + $0x10] sm:$0x3f] %vm227, 0.0
          %229 = vst.msk [vmem:[#allocation5] sm:$0xff] %vm224, 0.0
          %230 = vst.msk [vmem:[#allocation5 + $0x8] sm:$0xff] %vm224, 0.0
          %231 = vst.msk [vmem:[#allocation5 + $0x10] sm:$0x3f] %vm227, 0.0
          %v232 = vld [vmem:[#allocation2] sm:$0x1]
          %v233 = vmul.f32 %v232, 0.25
          %v235 = vlaneseq
          %v236 = vshrl.u32 %v235, 7
          %v237 = vsub.s32 0, %v236
          %v238 = vrot.slane %v233, %v237
          %239 = vrot.lane.b32.xlu0 %v238, 3
          %v240 = vpop.permute.xlu0 %239
          %vm242 = vcmask 147480
          %243 = vst.msk [vmem:[#allocation4 + $0x3] sm:$0x1] %vm242, %v240
          %v244 = vld [vmem:[#allocation3] sm:$0x1]
          %v246 = vlaneseq
          %v247 = vshrl.u32 %v246, 7
          %v248 = vsub.s32 0, %v247
          %v249 = vrot.slane %v244, %v248
          %250 = vrot.lane.b32.xlu0 %v249, 3
          %v251 = vpop.permute.xlu0 %250
          %253 = vst.msk [vmem:[#allocation5 + $0x3] sm:$0x1] %vm242, %v251
          %v254 = vld [vmem:[#allocation2] sm:$0x1]
          %v255 = vmul.f32 %v254, 0.25
          %v257 = vlaneseq
          %v258 = vshrl.u32 %v257, 7
          %v259 = vsub.s32 0, %v258
          %v260 = vrot.slane %v255, %v259
          %261 = vrot.lane.b32.xlu0 %v260, 115
          %v262 = vpop.permute.xlu0 %261
          %264 = vst.msk [vmem:[#allocation4 + $0x4] sm:$0x1] %vm242, %v262
          %v265 = vld [vmem:[#allocation3] sm:$0x1]
          %v267 = vlaneseq
          %v268 = vshrl.u32 %v267, 7
          %v269 = vsub.s32 0, %v268
          %v270 = vrot.slane %v265, %v269
          %271 = vrot.lane.b32.xlu0 %v270, 115
          %v272 = vpop.permute.xlu0 %271
          %274 = vst.msk [vmem:[#allocation5 + $0x4] sm:$0x1] %vm242, %v272
          %v275 = vld [vmem:[#allocation2] sm:$0x1]
          %v276 = vmul.f32 %v275, 0.25
          %v278 = vlaneseq
          %v279 = vshrl.u32 %v278, 7
          %v280 = vsub.s32 0, %v279
          %v281 = vrot.slane %v276, %v280
          %282 = vrot.lane.b32.xlu0 %v281, 99
          %v283 = vpop.permute.xlu0 %282
          %285 = vst.msk [vmem:[#allocation4 + $0x5] sm:$0x1] %vm242, %v283
          %v286 = vld [vmem:[#allocation3] sm:$0x1]
          %v288 = vlaneseq
          %v289 = vshrl.u32 %v288, 7
          %v290 = vsub.s32 0, %v289
          %v291 = vrot.slane %v286, %v290
          %292 = vrot.lane.b32.xlu0 %v291, 99
          %v293 = vpop.permute.xlu0 %292
          %295 = vst.msk [vmem:[#allocation5 + $0x5] sm:$0x1] %vm242, %v293
          %v296 = vld [vmem:[#allocation2] sm:$0x1]
          %v297 = vmul.f32 %v296, 0.25
          %v299 = vlaneseq
          %v300 = vshrl.u32 %v299, 7
          %v301 = vsub.s32 0, %v300
          %v302 = vrot.slane %v297, %v301
          %303 = vrot.lane.b32.xlu0 %v302, 83
          %v304 = vpop.permute.xlu0 %303
          %306 = vst.msk [vmem:[#allocation4 + $0x6] sm:$0x1] %vm242, %v304
          %v307 = vld [vmem:[#allocation3] sm:$0x1]
          %v309 = vlaneseq
          %v310 = vshrl.u32 %v309, 7
          %v311 = vsub.s32 0, %v310
          %v312 = vrot.slane %v307, %v311
          %313 = vrot.lane.b32.xlu0 %v312, 83
          %v314 = vpop.permute.xlu0 %313
          %316 = vst.msk [vmem:[#allocation5 + $0x6] sm:$0x1] %vm242, %v314
          %v317 = vld [vmem:[#allocation2] sm:$0x1]
          %v318 = vmul.f32 %v317, 0.25
          %v320 = vlaneseq
          %v321 = vshrl.u32 %v320, 7
          %v322 = vsub.s32 0, %v321
          %v323 = vrot.slane %v318, %v322
          %324 = vrot.lane.b32.xlu0 %v323, 67
          %v325 = vpop.permute.xlu0 %324
          %327 = vst.msk [vmem:[#allocation4 + $0x7] sm:$0x1] %vm242, %v325
          %v328 = vld [vmem:[#allocation3] sm:$0x1]
          %v330 = vlaneseq
          %v331 = vshrl.u32 %v330, 7
          %v332 = vsub.s32 0, %v331
          %v333 = vrot.slane %v328, %v332
          %334 = vrot.lane.b32.xlu0 %v333, 67
          %v335 = vpop.permute.xlu0 %334
          %337 = vst.msk [vmem:[#allocation5 + $0x7] sm:$0x1] %vm242, %v335
          %v338 = vld [vmem:[#allocation2] sm:$0x1]
          %v339 = vmul.f32 %v338, 0.25
          %v341 = vlaneseq
          %v342 = vshrl.u32 %v341, 7
          %v343 = vsub.s32 0, %v342
          %v344 = vrot.slane %v339, %v343
          %345 = vrot.lane.b32.xlu0 %v344, 51
          %v346 = vpop.permute.xlu0 %345
          %348 = vst.msk [vmem:[#allocation4 + $0x8] sm:$0x1] %vm242, %v346
          %v349 = vld [vmem:[#allocation3] sm:$0x1]
          %v351 = vlaneseq
          %v352 = vshrl.u32 %v351, 7
          %v353 = vsub.s32 0, %v352
          %v354 = vrot.slane %v349, %v353
          %355 = vrot.lane.b32.xlu0 %v354, 51
          %v356 = vpop.permute.xlu0 %355
          %358 = vst.msk [vmem:[#allocation5 + $0x8] sm:$0x1] %vm242, %v356
          %v359 = vld [vmem:[#allocation2] sm:$0x1]
          %v360 = vmul.f32 %v359, 0.25
          %v362 = vlaneseq
          %v363 = vshrl.u32 %v362, 7
          %v364 = vsub.s32 0, %v363
          %v365 = vrot.slane %v360, %v364
          %366 = vrot.lane.b32.xlu0 %v365, 35
          %v367 = vpop.permute.xlu0 %366
          %369 = vst.msk [vmem:[#allocation4 + $0x9] sm:$0x1] %vm242, %v367
          %v370 = vld [vmem:[#allocation3] sm:$0x1]
          %v372 = vlaneseq
          %v373 = vshrl.u32 %v372, 7
          %v374 = vsub.s32 0, %v373
          %v375 = vrot.slane %v370, %v374
          %376 = vrot.lane.b32.xlu0 %v375, 35
          %v377 = vpop.permute.xlu0 %376
          %379 = vst.msk [vmem:[#allocation5 + $0x9] sm:$0x1] %vm242, %v377
          %v380 = vld [vmem:[#allocation2] sm:$0x1]
          %v381 = vmul.f32 %v380, 0.25
          %v383 = vlaneseq
          %v384 = vshrl.u32 %v383, 7
          %v385 = vsub.s32 0, %v384
          %v386 = vrot.slane %v381, %v385
          %387 = vrot.lane.b32.xlu0 %v386, 19
          %v388 = vpop.permute.xlu0 %387
          %390 = vst.msk [vmem:[#allocation4 + $0xa] sm:$0x1] %vm242, %v388
          %v391 = vld [vmem:[#allocation3] sm:$0x1]
          %v393 = vlaneseq
          %v394 = vshrl.u32 %v393, 7
          %v395 = vsub.s32 0, %v394
          %v396 = vrot.slane %v391, %v395
          %397 = vrot.lane.b32.xlu0 %v396, 19
          %v398 = vpop.permute.xlu0 %397
          %400 = vst.msk [vmem:[#allocation5 + $0xa] sm:$0x1] %vm242, %v398
          %v401 = vld [vmem:[#allocation2 + $0x1] sm:$0x1]
          %v402 = vmul.f32 %v401, 0.25
          %v404 = vlaneseq
          %v405 = vshrl.u32 %v404, 7
          %v406 = vsub.s32 0, %v405
          %v407 = vrot.slane %v402, %v406
          %408 = vrot.lane.b32.xlu0 %v407, 3
          %v409 = vpop.permute.xlu0 %408
          %411 = vst.msk [vmem:[#allocation4 + $0xb] sm:$0x1] %vm242, %v409
          %v412 = vld [vmem:[#allocation3 + $0x1] sm:$0x1]
          %v414 = vlaneseq
          %v415 = vshrl.u32 %v414, 7
          %v416 = vsub.s32 0, %v415
          %v417 = vrot.slane %v412, %v416
          %418 = vrot.lane.b32.xlu0 %v417, 3
          %v419 = vpop.permute.xlu0 %418
          %421 = vst.msk [vmem:[#allocation5 + $0xb] sm:$0x1] %vm242, %v419
          %v422 = vld [vmem:[#allocation2 + $0x1] sm:$0x1]
          %v423 = vmul.f32 %v422, 0.25
          %v425 = vlaneseq
          %v426 = vshrl.u32 %v425, 7
          %v427 = vsub.s32 0, %v426
          %v428 = vrot.slane %v423, %v427
          %429 = vrot.lane.b32.xlu0 %v428, 115
          %v430 = vpop.permute.xlu0 %429
          %432 = vst.msk [vmem:[#allocation4 + $0xc] sm:$0x1] %vm242, %v430
          %v433 = vld [vmem:[#allocation3 + $0x1] sm:$0x1]
          %v435 = vlaneseq
          %v436 = vshrl.u32 %v435, 7
          %v437 = vsub.s32 0, %v436
          %v438 = vrot.slane %v433, %v437
          %439 = vrot.lane.b32.xlu0 %v438, 115
          %v440 = vpop.permute.xlu0 %439
          %442 = vst.msk [vmem:[#allocation5 + $0xc] sm:$0x1] %vm242, %v440
          %v443 = vld [vmem:[#allocation2 + $0x1] sm:$0x1]
          %v444 = vmul.f32 %v443, 0.25
          %v446 = vlaneseq
          %v447 = vshrl.u32 %v446, 7
          %v448 = vsub.s32 0, %v447
          %v449 = vrot.slane %v444, %v448
          %450 = vrot.lane.b32.xlu0 %v449, 99
          %v451 = vpop.permute.xlu0 %450
          %453 = vst.msk [vmem:[#allocation4 + $0xd] sm:$0x1] %vm242, %v451
          %v454 = vld [vmem:[#allocation3 + $0x1] sm:$0x1]
          %v456 = vlaneseq
          %v457 = vshrl.u32 %v456, 7
          %v458 = vsub.s32 0, %v457
          %v459 = vrot.slane %v454, %v458
          %460 = vrot.lane.b32.xlu0 %v459, 99
          %v461 = vpop.permute.xlu0 %460
          %463 = vst.msk [vmem:[#allocation5 + $0xd] sm:$0x1] %vm242, %v461
          %v464 = vld [vmem:[#allocation2 + $0x1] sm:$0x1]
          %v465 = vmul.f32 %v464, 0.25
          %v467 = vlaneseq
          %v468 = vshrl.u32 %v467, 7
          %v469 = vsub.s32 0, %v468
          %v470 = vrot.slane %v465, %v469
          %471 = vrot.lane.b32.xlu0 %v470, 83
          %v472 = vpop.permute.xlu0 %471
          %474 = vst.msk [vmem:[#allocation4 + $0xe] sm:$0x1] %vm242, %v472
          %v475 = vld [vmem:[#allocation3 + $0x1] sm:$0x1]
          %v477 = vlaneseq
          %v478 = vshrl.u32 %v477, 7
          %v479 = vsub.s32 0, %v478
          %v480 = vrot.slane %v475, %v479
          %481 = vrot.lane.b32.xlu0 %v480, 83
          %v482 = vpop.permute.xlu0 %481
          %484 = vst.msk [vmem:[#allocation5 + $0xe] sm:$0x1] %vm242, %v482
          %v485 = vld [vmem:[#allocation2 + $0x1] sm:$0x1]
          %v486 = vmul.f32 %v485, 0.25
          %v488 = vlaneseq
          %v489 = vshrl.u32 %v488, 7
          %v490 = vsub.s32 0, %v489
          %v491 = vrot.slane %v486, %v490
          %492 = vrot.lane.b32.xlu0 %v491, 67
          %v493 = vpop.permute.xlu0 %492
          %495 = vst.msk [vmem:[#allocation4 + $0xf] sm:$0x1] %vm242, %v493
          %v496 = vld [vmem:[#allocation3 + $0x1] sm:$0x1]
          %v498 = vlaneseq
          %v499 = vshrl.u32 %v498, 7
          %v500 = vsub.s32 0, %v499
          %v501 = vrot.slane %v496, %v500
          %502 = vrot.lane.b32.xlu0 %v501, 67
          %v503 = vpop.permute.xlu0 %502
          %505 = vst.msk [vmem:[#allocation5 + $0xf] sm:$0x1] %vm242, %v503
          %v506 = vld [vmem:[#allocation2 + $0x1] sm:$0x1]
          %v507 = vmul.f32 %v506, 0.25
          %v509 = vlaneseq
          %v510 = vshrl.u32 %v509, 7
          %v511 = vsub.s32 0, %v510
          %v512 = vrot.slane %v507, %v511
          %513 = vrot.lane.b32.xlu0 %v512, 51
          %v514 = vpop.permute.xlu0 %513
          %516 = vst.msk [vmem:[#allocation4 + $0x10] sm:$0x1] %vm242, %v514
          %v517 = vld [vmem:[#allocation3 + $0x1] sm:$0x1]
          %v519 = vlaneseq
          %v520 = vshrl.u32 %v519, 7
          %v521 = vsub.s32 0, %v520
          %v522 = vrot.slane %v517, %v521
          %523 = vrot.lane.b32.xlu0 %v522, 51
          %v524 = vpop.permute.xlu0 %523
          %526 = vst.msk [vmem:[#allocation5 + $0x10] sm:$0x1] %vm242, %v524
          %v527 = vld [vmem:[#allocation2 + $0x1] sm:$0x1]
          %v528 = vmul.f32 %v527, 0.25
          %v530 = vlaneseq
          %v531 = vshrl.u32 %v530, 7
          %v532 = vsub.s32 0, %v531
          %v533 = vrot.slane %v528, %v532
          %534 = vrot.lane.b32.xlu0 %v533, 35
          %v535 = vpop.permute.xlu0 %534
          %537 = vst.msk [vmem:[#allocation4 + $0x11] sm:$0x1] %vm242, %v535
          %v538 = vld [vmem:[#allocation3 + $0x1] sm:$0x1]
          %v540 = vlaneseq
          %v541 = vshrl.u32 %v540, 7
          %v542 = vsub.s32 0, %v541
          %v543 = vrot.slane %v538, %v542
          %544 = vrot.lane.b32.xlu0 %v543, 35
          %v545 = vpop.permute.xlu0 %544
          %547 = vst.msk [vmem:[#allocation5 + $0x11] sm:$0x1] %vm242, %v545
          %v548 = vld [vmem:[#allocation2 + $0x1] sm:$0x1]
          %v549 = vmul.f32 %v548, 0.25
          %v551 = vlaneseq
          %v552 = vshrl.u32 %v551, 7
          %v553 = vsub.s32 0, %v552
          %v554 = vrot.slane %v549, %v553
          %555 = vrot.lane.b32.xlu0 %v554, 19
          %v556 = vpop.permute.xlu0 %555
          %558 = vst.msk [vmem:[#allocation4 + $0x12] sm:$0x1] %vm242, %v556
          %v559 = vld [vmem:[#allocation3 + $0x1] sm:$0x1]
          %v561 = vlaneseq
          %v562 = vshrl.u32 %v561, 7
          %v563 = vsub.s32 0, %v562
          %v564 = vrot.slane %v559, %v563
          %565 = vrot.lane.b32.xlu0 %v564, 19
          %v566 = vpop.permute.xlu0 %565
          %568 = vst.msk [vmem:[#allocation5 + $0x12] sm:$0x1] %vm242, %v566
          %s569 = sld [smem:[#allocation6]]
          %v570 = vld [vmem:[#allocation4] sm:$0xff]
          %v571 = vld [vmem:[#allocation4 + $0x8] sm:$0xff]
          %v572 = vstv %s569
          %v573 = vmul.f32 %v572, %v570
          %v574 = vmul.f32 %v572, %v571
          %v575 = vadd.f32 %v573, 0.0
          %v576 = vadd.f32 %v574, 0.0
          %s577 = sld [smem:[#allocation6 + $0x1]]
          %v578 = vstv %s577
          %v579 = vmul.f32 %v578, %v570
          %v580 = vmul.f32 %v578, %v571
          %583 = vrot.lane.b32.xlu0 %v579, 127
          %v584 = vpop.permute.xlu0 %583
          %585 = vrot.lane.b32.xlu0 %v580, 127
          %v586 = vpop.permute.xlu0 %585
          %v589 = vadd.f32 %v575, %v584
          %v590 = vadd.f32 %v576, %v586
          %s591 = sld [smem:[#allocation6 + $0x2]]
          %v592 = vstv %s591
          %v593 = vmul.f32 %v592, %v570
          %v594 = vmul.f32 %v592, %v571
          %597 = vrot.lane.b32.xlu0 %v593, 126
          %v598 = vpop.permute.xlu0 %597
          %599 = vrot.lane.b32.xlu0 %v594, 126
          %v600 = vpop.permute.xlu0 %599
          %v603 = vadd.f32 %v589, %v598
          %v604 = vadd.f32 %v590, %v600
          %s605 = sld [smem:[#allocation6 + $0x3]]
          %v606 = vstv %s605
          %v607 = vmul.f32 %v606, %v570
          %v608 = vmul.f32 %v606, %v571
          %611 = vrot.lane.b32.xlu0 %v607, 125
          %v612 = vpop.permute.xlu0 %611
          %613 = vrot.lane.b32.xlu0 %v608, 125
          %v614 = vpop.permute.xlu0 %613
          %v617 = vadd.f32 %v603, %v612
          %v618 = vadd.f32 %v604, %v614
          %s619 = sld [smem:[#allocation6 + $0x4]]
          %v620 = vstv %s619
          %v621 = vmul.f32 %v620, %v570
          %v622 = vmul.f32 %v620, %v571
          %625 = vrot.lane.b32.xlu0 %v621, 124
          %v626 = vpop.permute.xlu0 %625
          %627 = vrot.lane.b32.xlu0 %v622, 124
          %v628 = vpop.permute.xlu0 %627
          %v631 = vadd.f32 %v617, %v626
          %v632 = vadd.f32 %v618, %v628
          %s633 = sld [smem:[#allocation6 + $0x5]]
          %v634 = vstv %s633
          %v635 = vmul.f32 %v634, %v570
          %v636 = vmul.f32 %v634, %v571
          %639 = vrot.lane.b32.xlu0 %v635, 123
          %v640 = vpop.permute.xlu0 %639
          %641 = vrot.lane.b32.xlu0 %v636, 123
          %v642 = vpop.permute.xlu0 %641
          %v645 = vadd.f32 %v631, %v640
          %v646 = vadd.f32 %v632, %v642
          %s647 = sld [smem:[#allocation6 + $0x6]]
          %v648 = vstv %s647
          %v649 = vmul.f32 %v648, %v570
          %v650 = vmul.f32 %v648, %v571
          %653 = vrot.lane.b32.xlu0 %v649, 122
          %v654 = vpop.permute.xlu0 %653
          %655 = vrot.lane.b32.xlu0 %v650, 122
          %v656 = vpop.permute.xlu0 %655
          %v659 = vadd.f32 %v645, %v654
          %v660 = vadd.f32 %v646, %v656
          %s661 = sld [smem:[#allocation6 + $0x7]]
          %v662 = vld [vmem:[#allocation4 + $0x1] sm:$0xff]
          %v663 = vld [vmem:[#allocation4 + $0x9] sm:$0xff]
          %v664 = vstv %s661
          %v665 = vmul.f32 %v664, %v662
          %v666 = vmul.f32 %v664, %v663
          %v667 = vadd.f32 %v659, %v665
          %v668 = vadd.f32 %v660, %v666
          %s669 = sld [smem:[#allocation6 + $0x8]]
          %v670 = vstv %s669
          %v671 = vmul.f32 %v670, %v662
          %v672 = vmul.f32 %v670, %v663
          %675 = vrot.lane.b32.xlu0 %v671, 127
          %v676 = vpop.permute.xlu0 %675
          %677 = vrot.lane.b32.xlu0 %v672, 127
          %v678 = vpop.permute.xlu0 %677
          %v681 = vadd.f32 %v667, %v676
          %v682 = vadd.f32 %v668, %v678
          %s683 = sld [smem:[#allocation6 + $0x9]]
          %v684 = vstv %s683
          %v685 = vmul.f32 %v684, %v662
          %v686 = vmul.f32 %v684, %v663
          %689 = vrot.lane.b32.xlu0 %v685, 126
          %v690 = vpop.permute.xlu0 %689
          %691 = vrot.lane.b32.xlu0 %v686, 126
          %v692 = vpop.permute.xlu0 %691
          %v695 = vadd.f32 %v681, %v690
          %v696 = vadd.f32 %v682, %v692
          %s697 = sld [smem:[#allocation6 + $0xa]]
          %v698 = vstv %s697
          %v699 = vmul.f32 %v698, %v662
          %v700 = vmul.f32 %v698, %v663
          %703 = vrot.lane.b32.xlu0 %v699, 125
          %v704 = vpop.permute.xlu0 %703
          %705 = vrot.lane.b32.xlu0 %v700, 125
          %v706 = vpop.permute.xlu0 %705
          %v709 = vadd.f32 %v695, %v704
          %v710 = vadd.f32 %v696, %v706
          %s711 = sld [smem:[#allocation6 + $0xb]]
          %v712 = vstv %s711
          %v713 = vmul.f32 %v712, %v662
          %v714 = vmul.f32 %v712, %v663
          %717 = vrot.lane.b32.xlu0 %v713, 124
          %v718 = vpop.permute.xlu0 %717
          %719 = vrot.lane.b32.xlu0 %v714, 124
          %v720 = vpop.permute.xlu0 %719
          %v723 = vadd.f32 %v709, %v718
          %v724 = vadd.f32 %v710, %v720
          %s725 = sld [smem:[#allocation6 + $0xc]]
          %v726 = vstv %s725
          %v727 = vmul.f32 %v726, %v662
          %v728 = vmul.f32 %v726, %v663
          %731 = vrot.lane.b32.xlu0 %v727, 123
          %v732 = vpop.permute.xlu0 %731
          %733 = vrot.lane.b32.xlu0 %v728, 123
          %v734 = vpop.permute.xlu0 %733
          %v737 = vadd.f32 %v723, %v732
          %v738 = vadd.f32 %v724, %v734
          %s739 = sld [smem:[#allocation6 + $0xd]]
          %v740 = vstv %s739
          %v741 = vmul.f32 %v740, %v662
          %v742 = vmul.f32 %v740, %v663
          %745 = vrot.lane.b32.xlu0 %v741, 122
          %v746 = vpop.permute.xlu0 %745
          %747 = vrot.lane.b32.xlu0 %v742, 122
          %v748 = vpop.permute.xlu0 %747
          %v751 = vadd.f32 %v737, %v746
          %v752 = vadd.f32 %v738, %v748
          %s753 = sld [smem:[#allocation6 + $0xe]]
          %v754 = vld [vmem:[#allocation4 + $0x2] sm:$0xff]
          %v755 = vld [vmem:[#allocation4 + $0xa] sm:$0xff]
          %v756 = vstv %s753
          %v757 = vmul.f32 %v756, %v754
          %v758 = vmul.f32 %v756, %v755
          %v759 = vadd.f32 %v751, %v757
          %v760 = vadd.f32 %v752, %v758
          %s761 = sld [smem:[#allocation6 + $0xf]]
          %v762 = vstv %s761
          %v763 = vmul.f32 %v762, %v754
          %v764 = vmul.f32 %v762, %v755
          %767 = vrot.lane.b32.xlu0 %v763, 127
          %v768 = vpop.permute.xlu0 %767
          %769 = vrot.lane.b32.xlu0 %v764, 127
          %v770 = vpop.permute.xlu0 %769
          %v773 = vadd.f32 %v759, %v768
          %v774 = vadd.f32 %v760, %v770
          %s775 = sld [smem:[#allocation6 + $0x10]]
          %v776 = vstv %s775
          %v777 = vmul.f32 %v776, %v754
          %v778 = vmul.f32 %v776, %v755
          %781 = vrot.lane.b32.xlu0 %v777, 126
          %v782 = vpop.permute.xlu0 %781
          %783 = vrot.lane.b32.xlu0 %v778, 126
          %v784 = vpop.permute.xlu0 %783
          %v787 = vadd.f32 %v773, %v782
          %v788 = vadd.f32 %v774, %v784
          %s789 = sld [smem:[#allocation6 + $0x11]]
          %v790 = vstv %s789
          %v791 = vmul.f32 %v790, %v754
          %v792 = vmul.f32 %v790, %v755
          %795 = vrot.lane.b32.xlu0 %v791, 125
          %v796 = vpop.permute.xlu0 %795
          %797 = vrot.lane.b32.xlu0 %v792, 125
          %v798 = vpop.permute.xlu0 %797
          %v801 = vadd.f32 %v787, %v796
          %v802 = vadd.f32 %v788, %v798
          %s803 = sld [smem:[#allocation6 + $0x12]]
          %v804 = vstv %s803
          %v805 = vmul.f32 %v804, %v754
          %v806 = vmul.f32 %v804, %v755
          %809 = vrot.lane.b32.xlu0 %v805, 124
          %v810 = vpop.permute.xlu0 %809
          %811 = vrot.lane.b32.xlu0 %v806, 124
          %v812 = vpop.permute.xlu0 %811
          %v815 = vadd.f32 %v801, %v810
          %v816 = vadd.f32 %v802, %v812
          %s817 = sld [smem:[#allocation6 + $0x13]]
          %v818 = vstv %s817
          %v819 = vmul.f32 %v818, %v754
          %v820 = vmul.f32 %v818, %v755
          %823 = vrot.lane.b32.xlu0 %v819, 123
          %v824 = vpop.permute.xlu0 %823
          %825 = vrot.lane.b32.xlu0 %v820, 123
          %v826 = vpop.permute.xlu0 %825
          %v829 = vadd.f32 %v815, %v824
          %v830 = vadd.f32 %v816, %v826
          %s831 = sld [smem:[#allocation6 + $0x14]]
          %v832 = vstv %s831
          %v833 = vmul.f32 %v832, %v754
          %v834 = vmul.f32 %v832, %v755
          %837 = vrot.lane.b32.xlu0 %v833, 122
          %v838 = vpop.permute.xlu0 %837
          %839 = vrot.lane.b32.xlu0 %v834, 122
          %v840 = vpop.permute.xlu0 %839
          %v843 = vadd.f32 %v829, %v838
          %v844 = vadd.f32 %v830, %v840
          %s845 = sld [smem:[#allocation6 + $0x15]]
          %v846 = vld [vmem:[#allocation4 + $0x3] sm:$0xff]
          %v847 = vld [vmem:[#allocation4 + $0xb] sm:$0xff]
          %v848 = vstv %s845
          %v849 = vmul.f32 %v848, %v846
          %v850 = vmul.f32 %v848, %v847
          %v851 = vadd.f32 %v843, %v849
          %v852 = vadd.f32 %v844, %v850
          %s853 = sld [smem:[#allocation6 + $0x16]]
          %v854 = vstv %s853
          %v855 = vmul.f32 %v854, %v846
          %v856 = vmul.f32 %v854, %v847
          %859 = vrot.lane.b32.xlu0 %v855, 127
          %v860 = vpop.permute.xlu0 %859
          %861 = vrot.lane.b32.xlu0 %v856, 127
          %v862 = vpop.permute.xlu0 %861
          %v865 = vadd.f32 %v851, %v860
          %v866 = vadd.f32 %v852, %v862
          %s867 = sld [smem:[#allocation6 + $0x17]]
          %v868 = vstv %s867
          %v869 = vmul.f32 %v868, %v846
          %v870 = vmul.f32 %v868, %v847
          %873 = vrot.lane.b32.xlu0 %v869, 126
          %v874 = vpop.permute.xlu0 %873
          %875 = vrot.lane.b32.xlu0 %v870, 126
          %v876 = vpop.permute.xlu0 %875
          %v879 = vadd.f32 %v865, %v874
          %v880 = vadd.f32 %v866, %v876
          %s881 = sld [smem:[#allocation6 + $0x18]]
          %v882 = vstv %s881
          %v883 = vmul.f32 %v882, %v846
          %v884 = vmul.f32 %v882, %v847
          %887 = vrot.lane.b32.xlu0 %v883, 125
          %v888 = vpop.permute.xlu0 %887
          %889 = vrot.lane.b32.xlu0 %v884, 125
          %v890 = vpop.permute.xlu0 %889
          %v893 = vadd.f32 %v879, %v888
          %v894 = vadd.f32 %v880, %v890
          %s895 = sld [smem:[#allocation6 + $0x19]]
          %v896 = vstv %s895
          %v897 = vmul.f32 %v896, %v846
          %v898 = vmul.f32 %v896, %v847
          %901 = vrot.lane.b32.xlu0 %v897, 124
          %v902 = vpop.permute.xlu0 %901
          %903 = vrot.lane.b32.xlu0 %v898, 124
          %v904 = vpop.permute.xlu0 %903
          %v907 = vadd.f32 %v893, %v902
          %v908 = vadd.f32 %v894, %v904
          %s909 = sld [smem:[#allocation6 + $0x1a]]
          %v910 = vstv %s909
          %v911 = vmul.f32 %v910, %v846
          %v912 = vmul.f32 %v910, %v847
          %915 = vrot.lane.b32.xlu0 %v911, 123
          %v916 = vpop.permute.xlu0 %915
          %917 = vrot.lane.b32.xlu0 %v912, 123
          %v918 = vpop.permute.xlu0 %917
          %v921 = vadd.f32 %v907, %v916
          %v922 = vadd.f32 %v908, %v918
          %s923 = sld [smem:[#allocation6 + $0x1b]]
          %v924 = vstv %s923
          %v925 = vmul.f32 %v924, %v846
          %v926 = vmul.f32 %v924, %v847
          %929 = vrot.lane.b32.xlu0 %v925, 122
          %v930 = vpop.permute.xlu0 %929
          %931 = vrot.lane.b32.xlu0 %v926, 122
          %v932 = vpop.permute.xlu0 %931
          %v935 = vadd.f32 %v921, %v930
          %v936 = vadd.f32 %v922, %v932
          %s937 = sld [smem:[#allocation6 + $0x1c]]
          %v938 = vld [vmem:[#allocation4 + $0x4] sm:$0xff]
          %v939 = vld [vmem:[#allocation4 + $0xc] sm:$0xff]
          %v940 = vstv %s937
          %v941 = vmul.f32 %v940, %v938
          %v942 = vmul.f32 %v940, %v939
          %v943 = vadd.f32 %v935, %v941
          %v944 = vadd.f32 %v936, %v942
          %s945 = sld [smem:[#allocation6 + $0x1d]]
          %v946 = vstv %s945
          %v947 = vmul.f32 %v946, %v938
          %v948 = vmul.f32 %v946, %v939
          %951 = vrot.lane.b32.xlu0 %v947, 127
          %v952 = vpop.permute.xlu0 %951
          %953 = vrot.lane.b32.xlu0 %v948, 127
          %v954 = vpop.permute.xlu0 %953
          %v957 = vadd.f32 %v943, %v952
          %v958 = vadd.f32 %v944, %v954
          %s959 = sld [smem:[#allocation6 + $0x1e]]
          %v960 = vstv %s959
          %v961 = vmul.f32 %v960, %v938
          %v962 = vmul.f32 %v960, %v939
          %965 = vrot.lane.b32.xlu0 %v961, 126
          %v966 = vpop.permute.xlu0 %965
          %967 = vrot.lane.b32.xlu0 %v962, 126
          %v968 = vpop.permute.xlu0 %967
          %v971 = vadd.f32 %v957, %v966
          %v972 = vadd.f32 %v958, %v968
          %s973 = sld [smem:[#allocation6 + $0x1f]]
          %v974 = vstv %s973
          %v975 = vmul.f32 %v974, %v938
          %v976 = vmul.f32 %v974, %v939
          %979 = vrot.lane.b32.xlu0 %v975, 125
          %v980 = vpop.permute.xlu0 %979
          %981 = vrot.lane.b32.xlu0 %v976, 125
          %v982 = vpop.permute.xlu0 %981
          %v985 = vadd.f32 %v971, %v980
          %v986 = vadd.f32 %v972, %v982
          %s987 = sld [smem:[#allocation6 + $0x20]]
          %v988 = vstv %s987
          %v989 = vmul.f32 %v988, %v938
          %v990 = vmul.f32 %v988, %v939
          %993 = vrot.lane.b32.xlu0 %v989, 124
          %v994 = vpop.permute.xlu0 %993
          %995 = vrot.lane.b32.xlu0 %v990, 124
          %v996 = vpop.permute.xlu0 %995
          %v999 = vadd.f32 %v985, %v994
          %v1000 = vadd.f32 %v986, %v996
          %s1001 = sld [smem:[#allocation6 + $0x21]]
          %v1002 = vstv %s1001
          %v1003 = vmul.f32 %v1002, %v938
          %v1004 = vmul.f32 %v1002, %v939
          %1007 = vrot.lane.b32.xlu0 %v1003, 123
          %v1008 = vpop.permute.xlu0 %1007
          %1009 = vrot.lane.b32.xlu0 %v1004, 123
          %v1010 = vpop.permute.xlu0 %1009
          %v1013 = vadd.f32 %v999, %v1008
          %v1014 = vadd.f32 %v1000, %v1010
          %s1015 = sld [smem:[#allocation6 + $0x22]]
          %v1016 = vstv %s1015
          %v1017 = vmul.f32 %v1016, %v938
          %v1018 = vmul.f32 %v1016, %v939
          %1021 = vrot.lane.b32.xlu0 %v1017, 122
          %v1022 = vpop.permute.xlu0 %1021
          %1023 = vrot.lane.b32.xlu0 %v1018, 122
          %v1024 = vpop.permute.xlu0 %1023
          %v1027 = vadd.f32 %v1013, %v1022
          %v1028 = vadd.f32 %v1014, %v1024
          %s1029 = sld [smem:[#allocation6 + $0x23]]
          %v1030 = vld [vmem:[#allocation4 + $0x5] sm:$0xff]
          %v1031 = vld [vmem:[#allocation4 + $0xd] sm:$0xff]
          %v1032 = vstv %s1029
          %v1033 = vmul.f32 %v1032, %v1030
          %v1034 = vmul.f32 %v1032, %v1031
          %v1035 = vadd.f32 %v1027, %v1033
          %v1036 = vadd.f32 %v1028, %v1034
          %s1037 = sld [smem:[#allocation6 + $0x24]]
          %v1038 = vstv %s1037
          %v1039 = vmul.f32 %v1038, %v1030
          %v1040 = vmul.f32 %v1038, %v1031
          %1043 = vrot.lane.b32.xlu0 %v1039, 127
          %v1044 = vpop.permute.xlu0 %1043
          %1045 = vrot.lane.b32.xlu0 %v1040, 127
          %v1046 = vpop.permute.xlu0 %1045
          %v1049 = vadd.f32 %v1035, %v1044
          %v1050 = vadd.f32 %v1036, %v1046
          %s1051 = sld [smem:[#allocation6 + $0x25]]
          %v1052 = vstv %s1051
          %v1053 = vmul.f32 %v1052, %v1030
          %v1054 = vmul.f32 %v1052, %v1031
          %1057 = vrot.lane.b32.xlu0 %v1053, 126
          %v1058 = vpop.permute.xlu0 %1057
          %1059 = vrot.lane.b32.xlu0 %v1054, 126
          %v1060 = vpop.permute.xlu0 %1059
          %v1063 = vadd.f32 %v1049, %v1058
          %v1064 = vadd.f32 %v1050, %v1060
          %s1065 = sld [smem:[#allocation6 + $0x26]]
          %v1066 = vstv %s1065
          %v1067 = vmul.f32 %v1066, %v1030
          %v1068 = vmul.f32 %v1066, %v1031
          %1071 = vrot.lane.b32.xlu0 %v1067, 125
          %v1072 = vpop.permute.xlu0 %1071
          %1073 = vrot.lane.b32.xlu0 %v1068, 125
          %v1074 = vpop.permute.xlu0 %1073
          %v1077 = vadd.f32 %v1063, %v1072
          %v1078 = vadd.f32 %v1064, %v1074
          %s1079 = sld [smem:[#allocation6 + $0x27]]
          %v1080 = vstv %s1079
          %v1081 = vmul.f32 %v1080, %v1030
          %v1082 = vmul.f32 %v1080, %v1031
          %1085 = vrot.lane.b32.xlu0 %v1081, 124
          %v1086 = vpop.permute.xlu0 %1085
          %1087 = vrot.lane.b32.xlu0 %v1082, 124
          %v1088 = vpop.permute.xlu0 %1087
          %v1091 = vadd.f32 %v1077, %v1086
          %v1092 = vadd.f32 %v1078, %v1088
          %s1093 = sld [smem:[#allocation6 + $0x28]]
          %v1094 = vstv %s1093
          %v1095 = vmul.f32 %v1094, %v1030
          %v1096 = vmul.f32 %v1094, %v1031
          %1099 = vrot.lane.b32.xlu0 %v1095, 123
          %v1100 = vpop.permute.xlu0 %1099
          %1101 = vrot.lane.b32.xlu0 %v1096, 123
          %v1102 = vpop.permute.xlu0 %1101
          %v1105 = vadd.f32 %v1091, %v1100
          %v1106 = vadd.f32 %v1092, %v1102
          %s1107 = sld [smem:[#allocation6 + $0x29]]
          %v1108 = vstv %s1107
          %v1109 = vmul.f32 %v1108, %v1030
          %v1110 = vmul.f32 %v1108, %v1031
          %1113 = vrot.lane.b32.xlu0 %v1109, 122
          %v1114 = vpop.permute.xlu0 %1113
          %1115 = vrot.lane.b32.xlu0 %v1110, 122
          %v1116 = vpop.permute.xlu0 %1115
          %v1119 = vadd.f32 %v1105, %v1114
          %v1120 = vadd.f32 %v1106, %v1116
          %s1121 = sld [smem:[#allocation6 + $0x2a]]
          %v1122 = vld [vmem:[#allocation4 + $0x6] sm:$0xff]
          %v1123 = vld [vmem:[#allocation4 + $0xe] sm:$0xff]
          %v1124 = vstv %s1121
          %v1125 = vmul.f32 %v1124, %v1122
          %v1126 = vmul.f32 %v1124, %v1123
          %v1127 = vadd.f32 %v1119, %v1125
          %v1128 = vadd.f32 %v1120, %v1126
          %s1129 = sld [smem:[#allocation6 + $0x2b]]
          %v1130 = vstv %s1129
          %v1131 = vmul.f32 %v1130, %v1122
          %v1132 = vmul.f32 %v1130, %v1123
          %1135 = vrot.lane.b32.xlu0 %v1131, 127
          %v1136 = vpop.permute.xlu0 %1135
          %1137 = vrot.lane.b32.xlu0 %v1132, 127
          %v1138 = vpop.permute.xlu0 %1137
          %v1141 = vadd.f32 %v1127, %v1136
          %v1142 = vadd.f32 %v1128, %v1138
          %s1143 = sld [smem:[#allocation6 + $0x2c]]
          %v1144 = vstv %s1143
          %v1145 = vmul.f32 %v1144, %v1122
          %v1146 = vmul.f32 %v1144, %v1123
          %1149 = vrot.lane.b32.xlu0 %v1145, 126
          %v1150 = vpop.permute.xlu0 %1149
          %1151 = vrot.lane.b32.xlu0 %v1146, 126
          %v1152 = vpop.permute.xlu0 %1151
          %v1155 = vadd.f32 %v1141, %v1150
          %v1156 = vadd.f32 %v1142, %v1152
          %s1157 = sld [smem:[#allocation6 + $0x2d]]
          %v1158 = vstv %s1157
          %v1159 = vmul.f32 %v1158, %v1122
          %v1160 = vmul.f32 %v1158, %v1123
          %1163 = vrot.lane.b32.xlu0 %v1159, 125
          %v1164 = vpop.permute.xlu0 %1163
          %1165 = vrot.lane.b32.xlu0 %v1160, 125
          %v1166 = vpop.permute.xlu0 %1165
          %v1169 = vadd.f32 %v1155, %v1164
          %v1170 = vadd.f32 %v1156, %v1166
          %s1171 = sld [smem:[#allocation6 + $0x2e]]
          %v1172 = vstv %s1171
          %v1173 = vmul.f32 %v1172, %v1122
          %v1174 = vmul.f32 %v1172, %v1123
          %1177 = vrot.lane.b32.xlu0 %v1173, 124
          %v1178 = vpop.permute.xlu0 %1177
          %1179 = vrot.lane.b32.xlu0 %v1174, 124
          %v1180 = vpop.permute.xlu0 %1179
          %v1183 = vadd.f32 %v1169, %v1178
          %v1184 = vadd.f32 %v1170, %v1180
          %s1185 = sld [smem:[#allocation6 + $0x2f]]
          %v1186 = vstv %s1185
          %v1187 = vmul.f32 %v1186, %v1122
          %v1188 = vmul.f32 %v1186, %v1123
          %1191 = vrot.lane.b32.xlu0 %v1187, 123
          %v1192 = vpop.permute.xlu0 %1191
          %1193 = vrot.lane.b32.xlu0 %v1188, 123
          %v1194 = vpop.permute.xlu0 %1193
          %v1197 = vadd.f32 %v1183, %v1192
          %v1198 = vadd.f32 %v1184, %v1194
          %s1199 = sld [smem:[#allocation6 + $0x30]]
          %v1200 = vstv %s1199
          %v1201 = vmul.f32 %v1200, %v1122
          %v1202 = vmul.f32 %v1200, %v1123
          %1205 = vrot.lane.b32.xlu0 %v1201, 122
          %v1206 = vpop.permute.xlu0 %1205
          %1207 = vrot.lane.b32.xlu0 %v1202, 122
          %v1208 = vpop.permute.xlu0 %1207
          %v1211 = vadd.f32 %v1197, %v1206
          %v1212 = vadd.f32 %v1198, %v1208
          %s1213 = sld [smem:[#allocation6 + $0x31]]
          %v1214 = vld [vmem:[#allocation5] sm:$0xff]
          %v1215 = vld [vmem:[#allocation5 + $0x8] sm:$0xff]
          %v1216 = vstv %s1213
          %v1217 = vmul.f32 %v1216, %v1214
          %v1218 = vmul.f32 %v1216, %v1215
          %v1219 = vadd.f32 %v1211, %v1217
          %v1220 = vadd.f32 %v1212, %v1218
          %s1221 = sld [smem:[#allocation6 + $0x32]]
          %v1222 = vstv %s1221
          %v1223 = vmul.f32 %v1222, %v1214
          %v1224 = vmul.f32 %v1222, %v1215
          %1227 = vrot.lane.b32.xlu0 %v1223, 127
          %v1228 = vpop.permute.xlu0 %1227
          %1229 = vrot.lane.b32.xlu0 %v1224, 127
          %v1230 = vpop.permute.xlu0 %1229
          %v1233 = vadd.f32 %v1219, %v1228
          %v1234 = vadd.f32 %v1220, %v1230
          %s1235 = sld [smem:[#allocation6 + $0x33]]
          %v1236 = vstv %s1235
          %v1237 = vmul.f32 %v1236, %v1214
          %v1238 = vmul.f32 %v1236, %v1215
          %1241 = vrot.lane.b32.xlu0 %v1237, 126
          %v1242 = vpop.permute.xlu0 %1241
          %1243 = vrot.lane.b32.xlu0 %v1238, 126
          %v1244 = vpop.permute.xlu0 %1243
          %v1247 = vadd.f32 %v1233, %v1242
          %v1248 = vadd.f32 %v1234, %v1244
          %s1249 = sld [smem:[#allocation6 + $0x34]]
          %v1250 = vstv %s1249
          %v1251 = vmul.f32 %v1250, %v1214
          %v1252 = vmul.f32 %v1250, %v1215
          %1255 = vrot.lane.b32.xlu0 %v1251, 125
          %v1256 = vpop.permute.xlu0 %1255
          %1257 = vrot.lane.b32.xlu0 %v1252, 125
          %v1258 = vpop.permute.xlu0 %1257
          %v1261 = vadd.f32 %v1247, %v1256
          %v1262 = vadd.f32 %v1248, %v1258
          %s1263 = sld [smem:[#allocation6 + $0x35]]
          %v1264 = vstv %s1263
          %v1265 = vmul.f32 %v1264, %v1214
          %v1266 = vmul.f32 %v1264, %v1215
          %1269 = vrot.lane.b32.xlu0 %v1265, 124
          %v1270 = vpop.permute.xlu0 %1269
          %1271 = vrot.lane.b32.xlu0 %v1266, 124
          %v1272 = vpop.permute.xlu0 %1271
          %v1275 = vadd.f32 %v1261, %v1270
          %v1276 = vadd.f32 %v1262, %v1272
          %s1277 = sld [smem:[#allocation6 + $0x36]]
          %v1278 = vstv %s1277
          %v1279 = vmul.f32 %v1278, %v1214
          %v1280 = vmul.f32 %v1278, %v1215
          %1283 = vrot.lane.b32.xlu0 %v1279, 123
          %v1284 = vpop.permute.xlu0 %1283
          %1285 = vrot.lane.b32.xlu0 %v1280, 123
          %v1286 = vpop.permute.xlu0 %1285
          %v1289 = vadd.f32 %v1275, %v1284
          %v1290 = vadd.f32 %v1276, %v1286
          %s1291 = sld [smem:[#allocation6 + $0x37]]
          %v1292 = vstv %s1291
          %v1293 = vmul.f32 %v1292, %v1214
          %v1294 = vmul.f32 %v1292, %v1215
          %1297 = vrot.lane.b32.xlu0 %v1293, 122
          %v1298 = vpop.permute.xlu0 %1297
          %1299 = vrot.lane.b32.xlu0 %v1294, 122
          %v1300 = vpop.permute.xlu0 %1299
          %v1303 = vadd.f32 %v1289, %v1298
          %v1304 = vadd.f32 %v1290, %v1300
          %s1305 = sld [smem:[#allocation6 + $0x38]]
          %v1306 = vld [vmem:[#allocation5 + $0x1] sm:$0xff]
          %v1307 = vld [vmem:[#allocation5 + $0x9] sm:$0xff]
          %v1308 = vstv %s1305
          %v1309 = vmul.f32 %v1308, %v1306
          %v1310 = vmul.f32 %v1308, %v1307
          %v1311 = vadd.f32 %v1303, %v1309
          %v1312 = vadd.f32 %v1304, %v1310
          %s1313 = sld [smem:[#allocation6 + $0x39]]
          %v1314 = vstv %s1313
          %v1315 = vmul.f32 %v1314, %v1306
          %v1316 = vmul.f32 %v1314, %v1307
          %1319 = vrot.lane.b32.xlu0 %v1315, 127
          %v1320 = vpop.permute.xlu0 %1319
          %1321 = vrot.lane.b32.xlu0 %v1316, 127
          %v1322 = vpop.permute.xlu0 %1321
          %v1325 = vadd.f32 %v1311, %v1320
          %v1326 = vadd.f32 %v1312, %v1322
          %s1327 = sld [smem:[#allocation6 + $0x3a]]
          %v1328 = vstv %s1327
          %v1329 = vmul.f32 %v1328, %v1306
          %v1330 = vmul.f32 %v1328, %v1307
          %1333 = vrot.lane.b32.xlu0 %v1329, 126
          %v1334 = vpop.permute.xlu0 %1333
          %1335 = vrot.lane.b32.xlu0 %v1330, 126
          %v1336 = vpop.permute.xlu0 %1335
          %v1339 = vadd.f32 %v1325, %v1334
          %v1340 = vadd.f32 %v1326, %v1336
          %s1341 = sld [smem:[#allocation6 + $0x3b]]
          %v1342 = vstv %s1341
          %v1343 = vmul.f32 %v1342, %v1306
          %v1344 = vmul.f32 %v1342, %v1307
          %1347 = vrot.lane.b32.xlu0 %v1343, 125
          %v1348 = vpop.permute.xlu0 %1347
          %1349 = vrot.lane.b32.xlu0 %v1344, 125
          %v1350 = vpop.permute.xlu0 %1349
          %v1353 = vadd.f32 %v1339, %v1348
          %v1354 = vadd.f32 %v1340, %v1350
          %s1355 = sld [smem:[#allocation6 + $0x3c]]
          %v1356 = vstv %s1355
          %v1357 = vmul.f32 %v1356, %v1306
          %v1358 = vmul.f32 %v1356, %v1307
          %1361 = vrot.lane.b32.xlu0 %v1357, 124
          %v1362 = vpop.permute.xlu0 %1361
          %1363 = vrot.lane.b32.xlu0 %v1358, 124
          %v1364 = vpop.permute.xlu0 %1363
          %v1367 = vadd.f32 %v1353, %v1362
          %v1368 = vadd.f32 %v1354, %v1364
          %s1369 = sld [smem:[#allocation6 + $0x3d]]
          %v1370 = vstv %s1369
          %v1371 = vmul.f32 %v1370, %v1306
          %v1372 = vmul.f32 %v1370, %v1307
          %1375 = vrot.lane.b32.xlu0 %v1371, 123
          %v1376 = vpop.permute.xlu0 %1375
          %1377 = vrot.lane.b32.xlu0 %v1372, 123
          %v1378 = vpop.permute.xlu0 %1377
          %v1381 = vadd.f32 %v1367, %v1376
          %v1382 = vadd.f32 %v1368, %v1378
          %s1383 = sld [smem:[#allocation6 + $0x3e]]
          %v1384 = vstv %s1383
          %v1385 = vmul.f32 %v1384, %v1306
          %v1386 = vmul.f32 %v1384, %v1307
          %1389 = vrot.lane.b32.xlu0 %v1385, 122
          %v1390 = vpop.permute.xlu0 %1389
          %1391 = vrot.lane.b32.xlu0 %v1386, 122
          %v1392 = vpop.permute.xlu0 %1391
          %v1395 = vadd.f32 %v1381, %v1390
          %v1396 = vadd.f32 %v1382, %v1392
          %s1397 = sld [smem:[#allocation6 + $0x3f]]
          %v1398 = vld [vmem:[#allocation5 + $0x2] sm:$0xff]
          %v1399 = vld [vmem:[#allocation5 + $0xa] sm:$0xff]
          %v1400 = vstv %s1397
          %v1401 = vmul.f32 %v1400, %v1398
          %v1402 = vmul.f32 %v1400, %v1399
          %v1403 = vadd.f32 %v1395, %v1401
          %v1404 = vadd.f32 %v1396, %v1402
          %s1405 = sld [smem:[#allocation6 + $0x40]]
          %v1406 = vstv %s1405
          %v1407 = vmul.f32 %v1406, %v1398
          %v1408 = vmul.f32 %v1406, %v1399
          %1411 = vrot.lane.b32.xlu0 %v1407, 127
          %v1412 = vpop.permute.xlu0 %1411
          %1413 = vrot.lane.b32.xlu0 %v1408, 127
          %v1414 = vpop.permute.xlu0 %1413
          %v1417 = vadd.f32 %v1403, %v1412
          %v1418 = vadd.f32 %v1404, %v1414
          %s1419 = sld [smem:[#allocation6 + $0x41]]
          %v1420 = vstv %s1419
          %v1421 = vmul.f32 %v1420, %v1398
          %v1422 = vmul.f32 %v1420, %v1399
          %1425 = vrot.lane.b32.xlu0 %v1421, 126
          %v1426 = vpop.permute.xlu0 %1425
          %1427 = vrot.lane.b32.xlu0 %v1422, 126
          %v1428 = vpop.permute.xlu0 %1427
          %v1431 = vadd.f32 %v1417, %v1426
          %v1432 = vadd.f32 %v1418, %v1428
          %s1433 = sld [smem:[#allocation6 + $0x42]]
          %v1434 = vstv %s1433
          %v1435 = vmul.f32 %v1434, %v1398
          %v1436 = vmul.f32 %v1434, %v1399
          %1439 = vrot.lane.b32.xlu0 %v1435, 125
          %v1440 = vpop.permute.xlu0 %1439
          %1441 = vrot.lane.b32.xlu0 %v1436, 125
          %v1442 = vpop.permute.xlu0 %1441
          %v1445 = vadd.f32 %v1431, %v1440
          %v1446 = vadd.f32 %v1432, %v1442
          %s1447 = sld [smem:[#allocation6 + $0x43]]
          %v1448 = vstv %s1447
          %v1449 = vmul.f32 %v1448, %v1398
          %v1450 = vmul.f32 %v1448, %v1399
          %1453 = vrot.lane.b32.xlu0 %v1449, 124
          %v1454 = vpop.permute.xlu0 %1453
          %1455 = vrot.lane.b32.xlu0 %v1450, 124
          %v1456 = vpop.permute.xlu0 %1455
          %v1459 = vadd.f32 %v1445, %v1454
          %v1460 = vadd.f32 %v1446, %v1456
          %s1461 = sld [smem:[#allocation6 + $0x44]]
          %v1462 = vstv %s1461
          %v1463 = vmul.f32 %v1462, %v1398
          %v1464 = vmul.f32 %v1462, %v1399
          %1467 = vrot.lane.b32.xlu0 %v1463, 123
          %v1468 = vpop.permute.xlu0 %1467
          %1469 = vrot.lane.b32.xlu0 %v1464, 123
          %v1470 = vpop.permute.xlu0 %1469
          %v1473 = vadd.f32 %v1459, %v1468
          %v1474 = vadd.f32 %v1460, %v1470
          %s1475 = sld [smem:[#allocation6 + $0x45]]
          %v1476 = vstv %s1475
          %v1477 = vmul.f32 %v1476, %v1398
          %v1478 = vmul.f32 %v1476, %v1399
          %1481 = vrot.lane.b32.xlu0 %v1477, 122
          %v1482 = vpop.permute.xlu0 %1481
          %1483 = vrot.lane.b32.xlu0 %v1478, 122
          %v1484 = vpop.permute.xlu0 %1483
          %v1487 = vadd.f32 %v1473, %v1482
          %v1488 = vadd.f32 %v1474, %v1484
          %s1489 = sld [smem:[#allocation6 + $0x46]]
          %v1490 = vld [vmem:[#allocation5 + $0x3] sm:$0xff]
          %v1491 = vld [vmem:[#allocation5 + $0xb] sm:$0xff]
          %v1492 = vstv %s1489
          %v1493 = vmul.f32 %v1492, %v1490
          %v1494 = vmul.f32 %v1492, %v1491
          %v1495 = vadd.f32 %v1487, %v1493
          %v1496 = vadd.f32 %v1488, %v1494
          %s1497 = sld [smem:[#allocation6 + $0x47]]
          %v1498 = vstv %s1497
          %v1499 = vmul.f32 %v1498, %v1490
          %v1500 = vmul.f32 %v1498, %v1491
          %1503 = vrot.lane.b32.xlu0 %v1499, 127
          %v1504 = vpop.permute.xlu0 %1503
          %1505 = vrot.lane.b32.xlu0 %v1500, 127
          %v1506 = vpop.permute.xlu0 %1505
          %v1509 = vadd.f32 %v1495, %v1504
          %v1510 = vadd.f32 %v1496, %v1506
          %s1511 = sld [smem:[#allocation6 + $0x48]]
          %v1512 = vstv %s1511
          %v1513 = vmul.f32 %v1512, %v1490
          %v1514 = vmul.f32 %v1512, %v1491
          %1517 = vrot.lane.b32.xlu0 %v1513, 126
          %v1518 = vpop.permute.xlu0 %1517
          %1519 = vrot.lane.b32.xlu0 %v1514, 126
          %v1520 = vpop.permute.xlu0 %1519
          %v1523 = vadd.f32 %v1509, %v1518
          %v1524 = vadd.f32 %v1510, %v1520
          %s1525 = sld [smem:[#allocation6 + $0x49]]
          %v1526 = vstv %s1525
          %v1527 = vmul.f32 %v1526, %v1490
          %v1528 = vmul.f32 %v1526, %v1491
          %1531 = vrot.lane.b32.xlu0 %v1527, 125
          %v1532 = vpop.permute.xlu0 %1531
          %1533 = vrot.lane.b32.xlu0 %v1528, 125
          %v1534 = vpop.permute.xlu0 %1533
          %v1537 = vadd.f32 %v1523, %v1532
          %v1538 = vadd.f32 %v1524, %v1534
          %s1539 = sld [smem:[#allocation6 + $0x4a]]
          %v1540 = vstv %s1539
          %v1541 = vmul.f32 %v1540, %v1490
          %v1542 = vmul.f32 %v1540, %v1491
          %1545 = vrot.lane.b32.xlu0 %v1541, 124
          %v1546 = vpop.permute.xlu0 %1545
          %1547 = vrot.lane.b32.xlu0 %v1542, 124
          %v1548 = vpop.permute.xlu0 %1547
          %v1551 = vadd.f32 %v1537, %v1546
          %v1552 = vadd.f32 %v1538, %v1548
          %s1553 = sld [smem:[#allocation6 + $0x4b]]
          %v1554 = vstv %s1553
          %v1555 = vmul.f32 %v1554, %v1490
          %v1556 = vmul.f32 %v1554, %v1491
          %1559 = vrot.lane.b32.xlu0 %v1555, 123
          %v1560 = vpop.permute.xlu0 %1559
          %1561 = vrot.lane.b32.xlu0 %v1556, 123
          %v1562 = vpop.permute.xlu0 %1561
          %v1565 = vadd.f32 %v1551, %v1560
          %v1566 = vadd.f32 %v1552, %v1562
          %s1567 = sld [smem:[#allocation6 + $0x4c]]
          %v1568 = vstv %s1567
          %v1569 = vmul.f32 %v1568, %v1490
          %v1570 = vmul.f32 %v1568, %v1491
          %1573 = vrot.lane.b32.xlu0 %v1569, 122
          %v1574 = vpop.permute.xlu0 %1573
          %1575 = vrot.lane.b32.xlu0 %v1570, 122
          %v1576 = vpop.permute.xlu0 %1575
          %v1579 = vadd.f32 %v1565, %v1574
          %v1580 = vadd.f32 %v1566, %v1576
          %s1581 = sld [smem:[#allocation6 + $0x4d]]
          %v1582 = vld [vmem:[#allocation5 + $0x4] sm:$0xff]
          %v1583 = vld [vmem:[#allocation5 + $0xc] sm:$0xff]
          %v1584 = vstv %s1581
          %v1585 = vmul.f32 %v1584, %v1582
          %v1586 = vmul.f32 %v1584, %v1583
          %v1587 = vadd.f32 %v1579, %v1585
          %v1588 = vadd.f32 %v1580, %v1586
          %s1589 = sld [smem:[#allocation6 + $0x4e]]
          %v1590 = vstv %s1589
          %v1591 = vmul.f32 %v1590, %v1582
          %v1592 = vmul.f32 %v1590, %v1583
          %1595 = vrot.lane.b32.xlu0 %v1591, 127
          %v1596 = vpop.permute.xlu0 %1595
          %1597 = vrot.lane.b32.xlu0 %v1592, 127
          %v1598 = vpop.permute.xlu0 %1597
          %v1601 = vadd.f32 %v1587, %v1596
          %v1602 = vadd.f32 %v1588, %v1598
          %s1603 = sld [smem:[#allocation6 + $0x4f]]
          %v1604 = vstv %s1603
          %v1605 = vmul.f32 %v1604, %v1582
          %v1606 = vmul.f32 %v1604, %v1583
          %1609 = vrot.lane.b32.xlu0 %v1605, 126
          %v1610 = vpop.permute.xlu0 %1609
          %1611 = vrot.lane.b32.xlu0 %v1606, 126
          %v1612 = vpop.permute.xlu0 %1611
          %v1615 = vadd.f32 %v1601, %v1610
          %v1616 = vadd.f32 %v1602, %v1612
          %s1617 = sld [smem:[#allocation6 + $0x50]]
          %v1618 = vstv %s1617
          %v1619 = vmul.f32 %v1618, %v1582
          %v1620 = vmul.f32 %v1618, %v1583
          %1623 = vrot.lane.b32.xlu0 %v1619, 125
          %v1624 = vpop.permute.xlu0 %1623
          %1625 = vrot.lane.b32.xlu0 %v1620, 125
          %v1626 = vpop.permute.xlu0 %1625
          %v1629 = vadd.f32 %v1615, %v1624
          %v1630 = vadd.f32 %v1616, %v1626
          %s1631 = sld [smem:[#allocation6 + $0x51]]
          %v1632 = vstv %s1631
          %v1633 = vmul.f32 %v1632, %v1582
          %v1634 = vmul.f32 %v1632, %v1583
          %1637 = vrot.lane.b32.xlu0 %v1633, 124
          %v1638 = vpop.permute.xlu0 %1637
          %1639 = vrot.lane.b32.xlu0 %v1634, 124
          %v1640 = vpop.permute.xlu0 %1639
          %v1643 = vadd.f32 %v1629, %v1638
          %v1644 = vadd.f32 %v1630, %v1640
          %s1645 = sld [smem:[#allocation6 + $0x52]]
          %v1646 = vstv %s1645
          %v1647 = vmul.f32 %v1646, %v1582
          %v1648 = vmul.f32 %v1646, %v1583
          %1651 = vrot.lane.b32.xlu0 %v1647, 123
          %v1652 = vpop.permute.xlu0 %1651
          %1653 = vrot.lane.b32.xlu0 %v1648, 123
          %v1654 = vpop.permute.xlu0 %1653
          %v1657 = vadd.f32 %v1643, %v1652
          %v1658 = vadd.f32 %v1644, %v1654
          %s1659 = sld [smem:[#allocation6 + $0x53]]
          %v1660 = vstv %s1659
          %v1661 = vmul.f32 %v1660, %v1582
          %v1662 = vmul.f32 %v1660, %v1583
          %1665 = vrot.lane.b32.xlu0 %v1661, 122
          %v1666 = vpop.permute.xlu0 %1665
          %1667 = vrot.lane.b32.xlu0 %v1662, 122
          %v1668 = vpop.permute.xlu0 %1667
          %v1671 = vadd.f32 %v1657, %v1666
          %v1672 = vadd.f32 %v1658, %v1668
          %s1673 = sld [smem:[#allocation6 + $0x54]]
          %v1674 = vld [vmem:[#allocation5 + $0x5] sm:$0xff]
          %v1675 = vld [vmem:[#allocation5 + $0xd] sm:$0xff]
          %v1676 = vstv %s1673
          %v1677 = vmul.f32 %v1676, %v1674
          %v1678 = vmul.f32 %v1676, %v1675
          %v1679 = vadd.f32 %v1671, %v1677
          %v1680 = vadd.f32 %v1672, %v1678
          %s1681 = sld [smem:[#allocation6 + $0x55]]
          %v1682 = vstv %s1681
          %v1683 = vmul.f32 %v1682, %v1674
          %v1684 = vmul.f32 %v1682, %v1675
          %1687 = vrot.lane.b32.xlu0 %v1683, 127
          %v1688 = vpop.permute.xlu0 %1687
          %1689 = vrot.lane.b32.xlu0 %v1684, 127
          %v1690 = vpop.permute.xlu0 %1689
          %v1693 = vadd.f32 %v1679, %v1688
          %v1694 = vadd.f32 %v1680, %v1690
          %s1695 = sld [smem:[#allocation6 + $0x56]]
          %v1696 = vstv %s1695
          %v1697 = vmul.f32 %v1696, %v1674
          %v1698 = vmul.f32 %v1696, %v1675
          %1701 = vrot.lane.b32.xlu0 %v1697, 126
          %v1702 = vpop.permute.xlu0 %1701
          %1703 = vrot.lane.b32.xlu0 %v1698, 126
          %v1704 = vpop.permute.xlu0 %1703
          %v1707 = vadd.f32 %v1693, %v1702
          %v1708 = vadd.f32 %v1694, %v1704
          %s1709 = sld [smem:[#allocation6 + $0x57]]
          %v1710 = vstv %s1709
          %v1711 = vmul.f32 %v1710, %v1674
          %v1712 = vmul.f32 %v1710, %v1675
          %1715 = vrot.lane.b32.xlu0 %v1711, 125
          %v1716 = vpop.permute.xlu0 %1715
          %1717 = vrot.lane.b32.xlu0 %v1712, 125
          %v1718 = vpop.permute.xlu0 %1717
          %v1721 = vadd.f32 %v1707, %v1716
          %v1722 = vadd.f32 %v1708, %v1718
          %s1723 = sld [smem:[#allocation6 + $0x58]]
          %v1724 = vstv %s1723
          %v1725 = vmul.f32 %v1724, %v1674
          %v1726 = vmul.f32 %v1724, %v1675
          %1729 = vrot.lane.b32.xlu0 %v1725, 124
          %v1730 = vpop.permute.xlu0 %1729
          %1731 = vrot.lane.b32.xlu0 %v1726, 124
          %v1732 = vpop.permute.xlu0 %1731
          %v1735 = vadd.f32 %v1721, %v1730
          %v1736 = vadd.f32 %v1722, %v1732
          %s1737 = sld [smem:[#allocation6 + $0x59]]
          %v1738 = vstv %s1737
          %v1739 = vmul.f32 %v1738, %v1674
          %v1740 = vmul.f32 %v1738, %v1675
          %1743 = vrot.lane.b32.xlu0 %v1739, 123
          %v1744 = vpop.permute.xlu0 %1743
          %1745 = vrot.lane.b32.xlu0 %v1740, 123
          %v1746 = vpop.permute.xlu0 %1745
          %v1749 = vadd.f32 %v1735, %v1744
          %v1750 = vadd.f32 %v1736, %v1746
          %s1751 = sld [smem:[#allocation6 + $0x5a]]
          %v1752 = vstv %s1751
          %v1753 = vmul.f32 %v1752, %v1674
          %v1754 = vmul.f32 %v1752, %v1675
          %1757 = vrot.lane.b32.xlu0 %v1753, 122
          %v1758 = vpop.permute.xlu0 %1757
          %1759 = vrot.lane.b32.xlu0 %v1754, 122
          %v1760 = vpop.permute.xlu0 %1759
          %v1763 = vadd.f32 %v1749, %v1758
          %v1764 = vadd.f32 %v1750, %v1760
          %s1765 = sld [smem:[#allocation6 + $0x5b]]
          %v1766 = vld [vmem:[#allocation5 + $0x6] sm:$0xff]
          %v1767 = vld [vmem:[#allocation5 + $0xe] sm:$0xff]
          %v1768 = vstv %s1765
          %v1769 = vmul.f32 %v1768, %v1766
          %v1770 = vmul.f32 %v1768, %v1767
          %v1771 = vadd.f32 %v1763, %v1769
          %v1772 = vadd.f32 %v1764, %v1770
          %s1773 = sld [smem:[#allocation6 + $0x5c]]
          %v1774 = vstv %s1773
          %v1775 = vmul.f32 %v1774, %v1766
          %v1776 = vmul.f32 %v1774, %v1767
          %1779 = vrot.lane.b32.xlu0 %v1775, 127
          %v1780 = vpop.permute.xlu0 %1779
          %1781 = vrot.lane.b32.xlu0 %v1776, 127
          %v1782 = vpop.permute.xlu0 %1781
          %v1785 = vadd.f32 %v1771, %v1780
          %v1786 = vadd.f32 %v1772, %v1782
          %s1787 = sld [smem:[#allocation6 + $0x5d]]
          %v1788 = vstv %s1787
          %v1789 = vmul.f32 %v1788, %v1766
          %v1790 = vmul.f32 %v1788, %v1767
          %1793 = vrot.lane.b32.xlu0 %v1789, 126
          %v1794 = vpop.permute.xlu0 %1793
          %1795 = vrot.lane.b32.xlu0 %v1790, 126
          %v1796 = vpop.permute.xlu0 %1795
          %v1799 = vadd.f32 %v1785, %v1794
          %v1800 = vadd.f32 %v1786, %v1796
          %s1801 = sld [smem:[#allocation6 + $0x5e]]
          %v1802 = vstv %s1801
          %v1803 = vmul.f32 %v1802, %v1766
          %v1804 = vmul.f32 %v1802, %v1767
          %1807 = vrot.lane.b32.xlu0 %v1803, 125
          %v1808 = vpop.permute.xlu0 %1807
          %1809 = vrot.lane.b32.xlu0 %v1804, 125
          %v1810 = vpop.permute.xlu0 %1809
          %v1813 = vadd.f32 %v1799, %v1808
          %v1814 = vadd.f32 %v1800, %v1810
          %s1815 = sld [smem:[#allocation6 + $0x5f]]
          %v1816 = vstv %s1815
          %v1817 = vmul.f32 %v1816, %v1766
          %v1818 = vmul.f32 %v1816, %v1767
          %1821 = vrot.lane.b32.xlu0 %v1817, 124
          %v1822 = vpop.permute.xlu0 %1821
          %1823 = vrot.lane.b32.xlu0 %v1818, 124
          %v1824 = vpop.permute.xlu0 %1823
          %v1827 = vadd.f32 %v1813, %v1822
          %v1828 = vadd.f32 %v1814, %v1824
          %s1829 = sld [smem:[#allocation6 + $0x60]]
          %v1830 = vstv %s1829
          %v1831 = vmul.f32 %v1830, %v1766
          %v1832 = vmul.f32 %v1830, %v1767
          %1835 = vrot.lane.b32.xlu0 %v1831, 123
          %v1836 = vpop.permute.xlu0 %1835
          %1837 = vrot.lane.b32.xlu0 %v1832, 123
          %v1838 = vpop.permute.xlu0 %1837
          %v1841 = vadd.f32 %v1827, %v1836
          %v1842 = vadd.f32 %v1828, %v1838
          %s1843 = sld [smem:[#allocation6 + $0x61]]
          %v1844 = vstv %s1843
          %v1845 = vmul.f32 %v1844, %v1766
          %v1846 = vmul.f32 %v1844, %v1767
          %1849 = vrot.lane.b32.xlu0 %v1845, 122
          %v1850 = vpop.permute.xlu0 %1849
          %1851 = vrot.lane.b32.xlu0 %v1846, 122
          %v1852 = vpop.permute.xlu0 %1851
          %v1855 = vadd.f32 %v1841, %v1850
          %v1856 = vadd.f32 %v1842, %v1852
          %v1857 = vxor.u32 %v1855, 2147483648
          %v1858 = vxor.u32 %v1856, 2147483648
          %v1859 = vmul.f32 %v1857, 1.442695
          %v1860 = vpow.pop %v1859
          %v1861 = vmul.f32 %v1858, 1.442695
          %v1862 = vpow.pop %v1861
          %v1863 = vadd.f32 %v1860, 1.0
          %v1864 = vadd.f32 %v1862, 1.0
          %v1865 = vrcp.pop %v1863
          %v1866 = vmul.f32 1.0, %v1865
          %v1867 = vrcp.pop %v1864
          %v1868 = vmul.f32 1.0, %v1867
          %vm1869 = vcmp.lt.s32.totalorder %v215, 16
          %vm1870 = vmand %vm216, %vm1869
          %1871 = vst.msk [vmem:[%s187] sm:$0x1] %vm1870, %v1866
          %v1874 = vunpack.c.l.s4 1966171168
          %v1875 = vunpack.c.0.s8 %v1874
          %v1876 = vlaneseq
          %v1877 = vshrl.u32 %v1876, 7
          %v1878 = vsub.s32 %v1875, %v1877
          %v1879 = vrot.slane %v1866, %v1878
          %v1880 = vcombine.high %v1879, %v1879
          %v1882 = vunpack.c.l.s4 1966171168
          %v1883 = vunpack.c.0.s8 %v1882
          %v1884 = vlaneseq
          %v1885 = vshrl.u32 %v1884, 7
          %v1886 = vsub.s32 %v1883, %v1885
          %v1887 = vrot.slane %v1879, %v1886
          %v1889 = vunpack.c.l.s4 1966171168
          %v1890 = vunpack.c.0.s8 %v1889
          %v1891 = vlaneseq
          %v1892 = vshrl.u32 %v1891, 7
          %v1893 = vsub.s32 %v1890, %v1892
          %v1894 = vrot.slane %v1880, %v1893
          %1895 = vrot.lane.b32.xlu0 %v1894, 16
          %v1896 = vpop.permute.xlu0 %1895
          %vm1898 = vcmp.ge.s32.totalorder %v215, 16
          %vm1899 = vcmp.lt.s32.totalorder %v215, 32
          %vm1900 = vmand %vm1898, %vm1899
          %1901 = vst.msk [vmem:[%s187] sm:$0x1] %vm1900, %v1896
          %v1902 = vcombine.high %v1887, %v1887
          %1903 = vrot.lane.b32.xlu0 %v1902, 32
          %v1904 = vpop.permute.xlu0 %1903
          %vm1906 = vcmp.ge.s32.totalorder %v215, 32
          %vm1907 = vcmp.lt.s32.totalorder %v215, 48
          %vm1908 = vmand %vm1906, %vm1907
          %1909 = vst.msk [vmem:[%s187] sm:$0x1] %vm1908, %v1904
          %v1910 = vcombine.high %v1894, %v1894
          %1911 = vrot.lane.b32.xlu0 %v1910, 48
          %v1912 = vpop.permute.xlu0 %1911
          %vm1914 = vcmp.ge.s32.totalorder %v215, 48
          %vm1915 = vcmp.lt.s32.totalorder %v215, 64
          %vm1916 = vmand %vm1914, %vm1915
          %1917 = vst.msk [vmem:[%s187] sm:$0x1] %vm1916, %v1912
          %v1918 = vcombine.high %v1866, %v1866
          %v1920 = vunpack.c.l.s4 1966171168
          %v1921 = vunpack.c.0.s8 %v1920
          %v1922 = vlaneseq
          %v1923 = vshrl.u32 %v1922, 7
          %v1924 = vsub.s32 %v1921, %v1923
          %v1925 = vrot.slane %v1918, %v1924
          %v1927 = vunpack.c.l.s4 1966171168
          %v1928 = vunpack.c.0.s8 %v1927
          %v1929 = vlaneseq
          %v1930 = vshrl.u32 %v1929, 7
          %v1931 = vsub.s32 %v1928, %v1930
          %v1932 = vrot.slane %v1925, %v1931
          %1933 = vrot.lane.b32.xlu0 %v1932, 64
          %v1934 = vpop.permute.xlu0 %1933
          %vm1936 = vcmp.ge.s32.totalorder %v215, 64
          %vm1937 = vcmp.lt.s32.totalorder %v215, 80
          %vm1938 = vmand %vm1936, %vm1937
          %1939 = vst.msk [vmem:[%s187] sm:$0x1] %vm1938, %v1934
          %v1940 = vcombine.high %v1925, %v1925
          %v1942 = vunpack.c.l.s4 1966171168
          %v1943 = vunpack.c.0.s8 %v1942
          %v1944 = vlaneseq
          %v1945 = vshrl.u32 %v1944, 7
          %v1946 = vsub.s32 %v1943, %v1945
          %v1947 = vrot.slane %v1940, %v1946
          %1948 = vrot.lane.b32.xlu0 %v1947, 80
          %v1949 = vpop.permute.xlu0 %1948
          %vm1951 = vcmp.ge.s32.totalorder %v215, 80
          %vm1952 = vcmp.lt.s32.totalorder %v215, 96
          %vm1953 = vmand %vm1951, %vm1952
          %1954 = vst.msk [vmem:[%s187] sm:$0x1] %vm1953, %v1949
          %v1955 = vcombine.high %v1932, %v1932
          %1956 = vrot.lane.b32.xlu0 %v1955, 96
          %v1957 = vpop.permute.xlu0 %1956
          %vm1959 = vcmp.ge.s32.totalorder %v215, 96
          %vm1960 = vcmp.lt.s32.totalorder %v215, 112
          %vm1961 = vmand %vm1959, %vm1960
          %1962 = vst.msk [vmem:[%s187] sm:$0x1] %vm1961, %v1957
          %v1963 = vcombine.high %v1947, %v1947
          %1964 = vrot.lane.b32.xlu0 %v1963, 112
          %v1965 = vpop.permute.xlu0 %1964
          %vm1967 = vcmp.ge.s32.totalorder %v215, 112
          %vm1968 = vcmp.lt.s32.totalorder %v215, 128
          %vm1969 = vmand %vm1967, %vm1968
          %1970 = vst.msk [vmem:[%s187] sm:$0x1] %vm1969, %v1965
          %1971 = vst.msk [vmem:[%s187 + $0x1] sm:$0x1] %vm1870, %v1868
          %v1974 = vunpack.c.l.s4 1966171168
          %v1975 = vunpack.c.0.s8 %v1974
          %v1976 = vlaneseq
          %v1977 = vshrl.u32 %v1976, 7
          %v1978 = vsub.s32 %v1975, %v1977
          %v1979 = vrot.slane %v1868, %v1978
          %v1980 = vcombine.high %v1979, %v1979
          %v1982 = vunpack.c.l.s4 1966171168
          %v1983 = vunpack.c.0.s8 %v1982
          %v1984 = vlaneseq
          %v1985 = vshrl.u32 %v1984, 7
          %v1986 = vsub.s32 %v1983, %v1985
          %v1987 = vrot.slane %v1979, %v1986
          %v1989 = vunpack.c.l.s4 1966171168
          %v1990 = vunpack.c.0.s8 %v1989
          %v1991 = vlaneseq
          %v1992 = vshrl.u32 %v1991, 7
          %v1993 = vsub.s32 %v1990, %v1992
          %v1994 = vrot.slane %v1980, %v1993
          %1995 = vrot.lane.b32.xlu0 %v1994, 16
          %v1996 = vpop.permute.xlu0 %1995
          %1998 = vst.msk [vmem:[%s187 + $0x1] sm:$0x1] %vm1900, %v1996
          %v1999 = vcombine.high %v1987, %v1987
          %2000 = vrot.lane.b32.xlu0 %v1999, 32
          %v2001 = vpop.permute.xlu0 %2000
          %2003 = vst.msk [vmem:[%s187 + $0x1] sm:$0x1] %vm1908, %v2001
          %v2004 = vcombine.high %v1994, %v1994
          %2005 = vrot.lane.b32.xlu0 %v2004, 48
          %v2006 = vpop.permute.xlu0 %2005
          %2008 = vst.msk [vmem:[%s187 + $0x1] sm:$0x1] %vm1916, %v2006
          %v2009 = vcombine.high %v1868, %v1868
          %v2011 = vunpack.c.l.s4 1966171168
          %v2012 = vunpack.c.0.s8 %v2011
          %v2013 = vlaneseq
          %v2014 = vshrl.u32 %v2013, 7
          %v2015 = vsub.s32 %v2012, %v2014
          %v2016 = vrot.slane %v2009, %v2015
          %v2018 = vunpack.c.l.s4 1966171168
          %v2019 = vunpack.c.0.s8 %v2018
          %v2020 = vlaneseq
          %v2021 = vshrl.u32 %v2020, 7
          %v2022 = vsub.s32 %v2019, %v2021
          %v2023 = vrot.slane %v2016, %v2022
          %2024 = vrot.lane.b32.xlu0 %v2023, 64
          %v2025 = vpop.permute.xlu0 %2024
          %2027 = vst.msk [vmem:[%s187 + $0x1] sm:$0x1] %vm1938, %v2025
          %v2028 = vcombine.high %v2016, %v2016
          %v2030 = vunpack.c.l.s4 1966171168
          %v2031 = vunpack.c.0.s8 %v2030
          %v2032 = vlaneseq
          %v2033 = vshrl.u32 %v2032, 7
          %v2034 = vsub.s32 %v2031, %v2033
          %v2035 = vrot.slane %v2028, %v2034
          %2036 = vrot.lane.b32.xlu0 %v2035, 80
          %v2037 = vpop.permute.xlu0 %2036
          %2039 = vst.msk [vmem:[%s187 + $0x1] sm:$0x1] %vm1953, %v2037
          %v2040 = vcombine.high %v2023, %v2023
          %2041 = vrot.lane.b32.xlu0 %v2040, 96
          %v2042 = vpop.permute.xlu0 %2041
          %2044 = vst.msk [vmem:[%s187 + $0x1] sm:$0x1] %vm1961, %v2042
          %v2045 = vcombine.high %v2035, %v2035
          %2046 = vrot.lane.b32.xlu0 %v2045, 112
          %v2047 = vpop.permute.xlu0 %2046
          %2049 = vst.msk [vmem:[%s187 + $0x1] sm:$0x1] %vm1969, %v2047
        $region44: #{tpu_custom_call.1} parent=27 // pred_fallthru
          _
        %s2050 = sand.u32 %s89, 1
        %s2051 = scalar_lea.sflag [#allocation8], %s2050
        %s2052 = sand.u32 %s89, 1
        %s2053 = smul.addr %s2052, 2
        %s2054 = scalar_lea.vmem [#allocation11], %s2053
        // Predicated region
        $region45: #{tpu_custom_call.1} parent=27 // pred_check
          %p2055 = pneg %p99
        $region46: #{tpu_custom_call.1} parent=27 // pred_check_branch
          %2057 = sbr.rel (%p2055) target = $region48
        $region47: #{tpu_custom_call.1} parent=27 // pred_region
          %s2059 = ssub.s32 32, 32
          %2060 = vsyncadd %s2051, %s2059
          %s2061 = smul.addr %s24, 2
          %s2062 = smul.addr %s2061, 16
          %s2063 = scalar_lea.hbm %s2, %s2062
          %s2065 = sshll.u32 %s2054, 4
          %s2066 = int_to_ptr.vmem [resolvable:$true] %s2065
          %2068 = dma.vmem_to_hbm [thread:$0]  %s2066, 32, %s2063, %s2051
        $region48: #{tpu_custom_call.1} parent=27 // pred_fallthru
          _
      $region28: #{tpu_custom_call.1} parent=5 // pred_fallthru
        _
      %p2069 = scmp.le.s32.totalorder 2, %s15
      // Predicated region
      $region49: #{tpu_custom_call.1} parent=5 // pred_check
        %p2070 = pneg %p2069
      $region50: #{tpu_custom_call.1} parent=5 // pred_check_branch
        %2072 = sbr.rel (%p2070) target = $region52
      $region51: #{tpu_custom_call.1} parent=5 // pred_region
        %s2073 = ssub.s32 %s15, 2
        // Predicated region
        $region53: #{tpu_custom_call.1} parent=51 // pred_check
          %p2074 = pneg %p105
        $region54: #{tpu_custom_call.1} parent=51 // pred_check_branch
          %2076 = sbr.rel (%p2074) target = $region56
        $region55: #{tpu_custom_call.1} parent=51 // pred_region
          %s2077 = sand.u32 %s90, 1
          %s2078 = scalar_lea.sflag [#allocation8], %s2077
          %s2079 = sand.u32 %s90, 1
          %s2080 = smul.addr %s2079, 2
          %s2081 = scalar_lea.vmem [#allocation11], %s2080
          %2082 = dma.done %s2078, 32
        $region56: #{tpu_custom_call.1} parent=51 // pred_fallthru
          _
      $region52: #{tpu_custom_call.1} parent=5 // pred_fallthru
        _
    $region6: #{tpu_custom_call.1} parent=1 // loop_footer
      %s19 = sadd.s32 1, %s15
    $region7: #{tpu_custom_call.1} parent=1 // loop_footer_branch
      %14 = sbr.rel target = $region3
    $region8: #{tpu_custom_call.1} parent=1 // loop_exit
      _
    %2083 = vsyncpa [#allocation7], 1
    %s2084 = scalar_lea.sflag [#allocation7], 1
    %2085 = vsyncpa %s2084, 1
    %2086 = vsyncpa [#allocation8], 1
    %s2087 = scalar_lea.sflag [#allocation8], 1
    %2088 = vsyncpa %s2087, 1
    %2089 = vsyncpa [#allocation9], 1
    %s2090 = scalar_lea.sflag [#allocation9], 1
    %2091 = vsyncpa %s2090, 1

</llo_original>
